<compile_context>
chip_gen: v5e
topology: v5e:2x2
jax: 0.10.0
libtpu: 0.0.40
codegen_flags: <defaults>
</compile_context>

<pallas_src>
import jax
import jax.numpy as jnp
from jax.experimental import pallas as pl
from jax.experimental.pallas import tpu as pltpu

EPS = 1e-5


# --------------------------------------------------------------------------- #
# Kernels
# --------------------------------------------------------------------------- #
def ffn_kernel_resident(x_ref, z1_ref,
                        g1_ref, b1_ref, g2_ref, b2_ref,
                        w1_ref, c1_ref, w2_ref, c2_ref,
                        out_ref):
    """Path A: grid = (row tiles,); full bf16 weights resident in VMEM."""
    x = x_ref[...].astype(jnp.float32)                               # (TM, D)
    mu1 = jnp.mean(x, axis=-1, keepdims=True)
    var1 = jnp.mean((x - mu1) ** 2, axis=-1, keepdims=True)
    x_ln = (x - mu1) * jax.lax.rsqrt(var1 + EPS) * g1_ref[...] + b1_ref[...]

    s1 = x_ln + z1_ref[...].astype(jnp.float32)                      # (TM, D)

    mu2 = jnp.mean(s1, axis=-1, keepdims=True)
    var2 = jnp.mean((s1 - mu2) ** 2, axis=-1, keepdims=True)
    z2 = (s1 - mu2) * jax.lax.rsqrt(var2 + EPS) * g2_ref[...] + b2_ref[...]

    h = jnp.dot(z2.astype(w1_ref.dtype), w1_ref[...],
                preferred_element_type=jnp.float32) + c1_ref[...]    # (TM, H)
    h = jnp.maximum(h, 0.0)
    mlp = jnp.dot(h.astype(w2_ref.dtype), w2_ref[...],
                  preferred_element_type=jnp.float32)                # (TM, D)

    out_ref[...] = (s1 + mlp + c2_ref[...]).astype(out_ref.dtype)


def ffn_kernel_tiled(x_ref, z1_ref,
                     g1_ref, b1_ref, g2_ref, b2_ref,
                     w1_ref, c1_ref, w2_ref, c2_ref,
                     out_ref,
                     z2_sc):
    """Path B: grid = (row tiles [parallel], H tiles [arbitrary, reduction]).

    out_ref is f32 and keeps a constant block index along k, so it stays
    VMEM-resident across the whole reduction and doubles as the accumulator
    (initialized with s1 + c2 at k == 0)."""
    k = pl.program_id(1)

    @pl.when(k == 0)
    def _():
        x = x_ref[...].astype(jnp.float32)                           # (TM, D)
        mu1 = jnp.mean(x, axis=-1, keepdims=True)
        var1 = jnp.mean((x - mu1) ** 2, axis=-1, keepdims=True)
        x_ln = (x - mu1) * jax.lax.rsqrt(var1 + EPS) * g1_ref[...] + b1_ref[...]

        s1 = x_ln + z1_ref[...].astype(jnp.float32)

        mu2 = jnp.mean(s1, axis=-1, keepdims=True)
        var2 = jnp.mean((s1 - mu2) ** 2, axis=-1, keepdims=True)
        z2 = (s1 - mu2) * jax.lax.rsqrt(var2 + EPS) * g2_ref[...] + b2_ref[...]

        z2_sc[...] = z2.astype(z2_sc.dtype)          # bf16 MXU operand, reused per k
        out_ref[...] = s1 + c2_ref[...]              # fold residual + output bias

    h = jnp.dot(z2_sc[...], w1_ref[...],
                preferred_element_type=jnp.float32) + c1_ref[...]    # (TM, tH)
    h = jnp.maximum(h, 0.0)
    out_ref[...] += jnp.dot(h.astype(w2_ref.dtype), w2_ref[...],
                            preferred_element_type=jnp.float32)      # (TM, D)


# --------------------------------------------------------------------------- #
# Tiling helpers
# --------------------------------------------------------------------------- #
def _vmem_budget_bytes():
    """Generation-aware scoped-VMEM cap: ~3/4 of physical, >=24 MiB headroom."""
    phys = 64 * 2**20                                    # conservative default (v7x)
    try:
        info = pltpu.get_tpu_info()
        v = getattr(info, "vmem_capacity_bytes", None)
        if v:
            phys = int(v)
    except Exception:
        pass
    return max(16 * 2**20, min(phys * 3 // 4, phys - 24 * 2**20))


def _largest_tile(n, cap, align):
    """Largest multiple of `align` that divides `n` and is <= cap."""
    assert n % align == 0
    cap = max(align, min(cap, n))
    t = (cap // align) * align
    while n % t != 0:
        t -= align
    return t


# --------------------------------------------------------------------------- #
# Wrapper
# --------------------------------------------------------------------------- #
def ffn_forward(x, z1, params, *, tile_m=None, tile_h=None, force_h_tiling=False):
    """x, z1: (B, S, D).  params: dict of LayerNorm / MLP weights (f32)."""
    B, S, D = x.shape
    H = params["w1"].shape[1]
    N = B * S

    x2 = x.reshape(N, D)
    z1_2 = z1.reshape(N, D)
    # Pad rows to a multiple of 8 so row tiles always satisfy the (8,128) rule
    # and tile selection never degenerates (padding is sliced off below;
    # LayerNorm of an all-zero row is finite thanks to eps).
    pad = (-N) % 8
    if pad:
        x2 = jnp.pad(x2, ((0, pad), (0, 0)))
        z1_2 = jnp.pad(z1_2, ((0, pad), (0, 0)))
    Np = N + pad

    # bf16 weights: halves DMA/VMEM bytes and hits the bf16 MXU peak.
    w1 = params["w1"].astype(jnp.bfloat16)
    w2 = params["w2"].astype(jnp.bfloat16)
    g1, b1 = params["g1"], params["b1"]
    g2, b2 = params["g2"], params["b2"]
    c1, c2 = params["c1"], params["c2"]

    budget = _vmem_budget_bytes()
    small = 2 * (5 * D + H) * 4 + (1 << 20)          # param vectors + compiler slack
    weight_alloc = 2 * (D * H * 2 + H * D * 2)       # bf16 pair, 2x buffering headroom

    align_m = 256 if (Np % 256 == 0) else 8          # 256x256 MXU on v6e/v7x
    resident = (not force_h_tiling) and (weight_alloc + small <= budget // 2)

    if resident:
        # ---- Path A: H axis collapsed; weights fetched from HBM exactly once.
        per_row = 3 * 2 * D * 4                      # x, z1, out f32, double-buffered
        cap_rows = max(8, (budget - weight_alloc - small) // per_row)
        if tile_m is None:
            # keep >=2 row tiles so the parallel axis shards across v7x's 2 TCs
            cap = min(cap_rows, Np // 2 if Np >= 2 * align_m else Np)
            tile_m = _largest_tile(Np, cap, align_m)
        assert Np % tile_m == 0 and tile_m % 8 == 0

        grid = (Np // tile_m,)
        row_spec = pl.BlockSpec((tile_m, D), lambda i: (i, 0))
        vecD_spec = pl.BlockSpec((1, D), lambda i: (0, 0))
        vecH_spec = pl.BlockSpec((1, H), lambda i: (0, 0))
        w1_spec = pl.BlockSpec((D, H), lambda i: (0, 0))   # constant -> single DMA
        w2_spec = pl.BlockSpec((H, D), lambda i: (0, 0))   # constant -> single DMA

        est = per_row * tile_m + weight_alloc + small
        vmem_limit = int(min(budget, max(2 * est, 16 * 2**20)))

        out = pl.pallas_call(
            ffn_kernel_resident,
            out_shape=jax.ShapeDtypeStruct((Np, D), x.dtype),
            grid_spec=pltpu.PrefetchScalarGridSpec(
                num_scalar_prefetch=0,
                grid=grid,
                in_specs=[
                    row_spec,            # x
                    row_spec,            # z1
                    vecD_spec,           # ln1 gamma
                    vecD_spec,           # ln1 beta
                    vecD_spec,           # ln2 gamma
                    vecD_spec,           # ln2 beta
                    w1_spec,             # mlp w1 (D, H)  bf16
                    vecH_spec,           # mlp b1 (1, H)
                    w2_spec,             # mlp w2 (H, D)  bf16
                    vecD_spec,           # mlp b2 (1, D)
                ],
                out_specs=row_spec,
            ),
            compiler_params=pltpu.CompilerParams(
                dimension_semantics=("parallel",),
                vmem_limit_bytes=vmem_limit),
        )(x2, z1_2, g1, b1, g2, b2, w1, c1, w2, c2)
    else:
        # ---- Path B: H tiled (weights too big for VMEM); accumulate directly
        #      into the f32 output block (constant block index along k).
        align_h = 256 if H % 256 == 0 else 128
        if H % align_h != 0:
            raise ValueError("H must be a multiple of 128 when weights are tiled")
        if tile_h is None:
            th_cap = max(align_h, (budget // 2) // (8 * D))
            tile_h = _largest_tile(H, min(th_cap, H), align_h)
        assert H % tile_h == 0 and tile_h % 128 == 0

        wtile_alloc = 2 * (D * tile_h * 2 + tile_h * D * 2)   # double-buffered bf16
        per_row = (3 * 2 * 4 + 2) * D                # x, z1, out f32 (2x) + z2 bf16
        cap_rows = max(8, (budget - wtile_alloc - small) // per_row)
        if tile_m is None:
            cap = min(cap_rows, Np // 2 if Np >= 2 * align_m else Np)
            tile_m = _largest_tile(Np, cap, align_m)
        assert Np % tile_m == 0 and tile_m % 8 == 0

        grid = (Np // tile_m, H // tile_h)
        row_spec = pl.BlockSpec((tile_m, D), lambda i, k: (i, 0))
        vecD_spec = pl.BlockSpec((1, D), lambda i, k: (0, 0))
        c1_spec = pl.BlockSpec((1, tile_h), lambda i, k: (0, k))
        w1_spec = pl.BlockSpec((D, tile_h), lambda i, k: (0, k))
        w2_spec = pl.BlockSpec((tile_h, D), lambda i, k: (k, 0))

        est = per_row * tile_m + wtile_alloc + small
        vmem_limit = int(min(budget, max(2 * est, 16 * 2**20)))

        out = pl.pallas_call(
            ffn_kernel_tiled,
            out_shape=jax.ShapeDtypeStruct((Np, D), jnp.float32),  # f32 accumulation
            grid_spec=pltpu.PrefetchScalarGridSpec(
                num_scalar_prefetch=0,
                grid=grid,
                in_specs=[
                    row_spec,            # x
                    row_spec,            # z1
                    vecD_spec,           # ln1 gamma
                    vecD_spec,           # ln1 beta
                    vecD_spec,           # ln2 gamma
                    vecD_spec,           # ln2 beta
                    w1_spec,             # mlp w1 (D, tH)  bf16
                    c1_spec,             # mlp b1 (1, tH)
                    w2_spec,             # mlp w2 (tH, D)  bf16
                    vecD_spec,           # mlp b2 (1, D)
                ],
                out_specs=row_spec,
                scratch_shapes=[
                    pltpu.VMEM((tile_m, D), jnp.bfloat16),   # z2 (MXU operand)
                ],
            ),
            compiler_params=pltpu.CompilerParams(
                dimension_semantics=("parallel", "arbitrary"),
                vmem_limit_bytes=vmem_limit),
        )(x2, z1_2, g1, b1, g2, b2, w1, c1, w2, c2)
        out = out.astype(x.dtype)

    return out[:N].reshape(B, S, D)


# --------------------------------------------------------------------------- #
# Params + reference
# --------------------------------------------------------------------------- #
def init_params(key, input_dim, output_dim, hidden_dim):
    assert output_dim == input_dim, "residual s1 + mlp(z2) requires out==in dim"
    k1, k2 = jax.random.split(key)
    # LayerNorm affine params (PyTorch default: gamma=1, beta=0).
    g1 = jnp.ones((1, input_dim), jnp.float32)
    b1 = jnp.zeros((1, input_dim), jnp.float32)
    g2 = jnp.ones((1, input_dim), jnp.float32)
    b2 = jnp.zeros((1, input_dim), jnp.float32)
    # MLP weights: deterministic small init.
    w1 = (jax.random.normal(k1, (input_dim, hidden_dim), jnp.float32)
          * (1.0 / jnp.sqrt(input_dim)))
    c1 = jnp.zeros((1, hidden_dim), jnp.float32)
    w2 = (jax.random.normal(k2, (hidden_dim, output_dim), jnp.float32)
          * (1.0 / jnp.sqrt(hidden_dim)))
    c2 = jnp.zeros((1, output_dim), jnp.float32)
    return dict(g1=g1, b1=b1, g2=g2, b2=b2, w1=w1, c1=c1, w2=w2, c2=c2)


def ffn_reference(x, z1, p):
    """Pure-JAX reference of the PyTorch forward, mirroring the kernel's bf16
    MXU operands / f32 accumulation so the comparison is apples-to-apples.
    (bf16 weights are a documented perf choice; not bit-identical to f32 torch.)"""
    def ln(v, g, b):
        mu = jnp.mean(v, axis=-1, keepdims=True)
        var = jnp.mean((v - mu) ** 2, axis=-1, keepdims=True)
        return (v - mu) * jax.lax.rsqrt(var + EPS) * g[0] + b[0]

    x_ln = ln(x, p["g1"], p["b1"])
    s1 = x_ln + z1
    z2 = ln(s1, p["g2"], p["b2"])
    w1 = p["w1"].astype(jnp.bfloat16)
    w2 = p["w2"].astype(jnp.bfloat16)
    h = jnp.maximum(
        jnp.dot(z2.astype(jnp.bfloat16), w1,
                preferred_element_type=jnp.float32) + p["c1"][0], 0.0)
    mlp = jnp.dot(h.astype(jnp.bfloat16), w2,
                  preferred_element_type=jnp.float32) + p["c2"][0]
    return s1 + mlp


if __name__ == "__main__":
    # Small but lane-dense demo: D, H multiples of 128; N = 512 rows gives
    # 2 row tiles (keeps both v7x TensorCores busy).  NOTE: at these toy sizes
    # the kernel is overhead/VPU-bound; the weight-residency / tiling logic is
    # what matters at real FFN sizes (D>=1024, H>=4096).
    B, S, D, H = 2, 256, 128, 512

    key = jax.random.PRNGKey(0)
    kx, kz, kp = jax.random.split(key, 3)
    x = jax.random.normal(kx, (B, S, D), jnp.float32)
    z1 = jax.random.normal(kz, (B, S, D), jnp.float32)
    params = init_params(kp, D, D, H)

    ref = ffn_reference(x, z1, params)

    # Path A (auto-selected): bf16 weights resident in VMEM, single-pass kernel.
    out_a = jax.block_until_ready(ffn_forward(x, z1, params))
    assert out_a.shape == (B, S, D)
    assert jnp.allclose(out_a, ref, atol=5e-2, rtol=5e-2), "Path A mismatch vs reference"

    # Path B (forced): exercise the H-tiled reduction / out_ref-accumulation path.
    out_b = jax.block_until_ready(
        ffn_forward(x, z1, params, tile_m=256, tile_h=256, force_h_tiling=True))
    assert out_b.shape == (B, S, D)
    assert jnp.allclose(out_b, ref, atol=5e-2, rtol=5e-2), "Path B mismatch vs reference"

    print("KERNEL_OK")
</pallas_src>

<mosaic_0001>
module attributes {stable_mosaic.version = 11 : i64} {
  func.func @ffn_kernel_resident(%arg0: i32, %arg1: memref<256x128xf32, #tpu.memory_space<vmem>>, %arg2: memref<256x128xf32, #tpu.memory_space<vmem>>, %arg3: memref<1x128xf32, #tpu.memory_space<vmem>>, %arg4: memref<1x128xf32, #tpu.memory_space<vmem>>, %arg5: memref<1x128xf32, #tpu.memory_space<vmem>>, %arg6: memref<1x128xf32, #tpu.memory_space<vmem>>, %arg7: memref<128x512xbf16, #tpu.memory_space<vmem>>, %arg8: memref<1x512xf32, #tpu.memory_space<vmem>>, %arg9: memref<512x128xbf16, #tpu.memory_space<vmem>>, %arg10: memref<1x128xf32, #tpu.memory_space<vmem>>, %arg11: memref<256x128xf32, #tpu.memory_space<vmem>>) attributes {dimension_semantics = [#tpu.dimension_semantics<parallel>], iteration_bounds = array<i64: 2>, scalar_prefetch = 0 : i64, scratch_operands = 0 : i64, tpu.core_type = #tpu.core_type<tc>, window_params = [{transform_indices = @transform_0, window_bounds = array<i64: 256, 128>}, {transform_indices = @transform_1, window_bounds = array<i64: 256, 128>}, {pipeline_mode = #tpu.pipeline_mode<synchronous>, transform_indices = @transform_2, window_bounds = array<i64: 1, 128>}, {pipeline_mode = #tpu.pipeline_mode<synchronous>, transform_indices = @transform_3, window_bounds = array<i64: 1, 128>}, {pipeline_mode = #tpu.pipeline_mode<synchronous>, transform_indices = @transform_4, window_bounds = array<i64: 1, 128>}, {pipeline_mode = #tpu.pipeline_mode<synchronous>, transform_indices = @transform_5, window_bounds = array<i64: 1, 128>}, {pipeline_mode = #tpu.pipeline_mode<synchronous>, transform_indices = @transform_6, window_bounds = array<i64: 128, 512>}, {pipeline_mode = #tpu.pipeline_mode<synchronous>, transform_indices = @transform_7, window_bounds = array<i64: 1, 512>}, {pipeline_mode = #tpu.pipeline_mode<synchronous>, transform_indices = @transform_8, window_bounds = array<i64: 512, 128>}, {pipeline_mode = #tpu.pipeline_mode<synchronous>, transform_indices = @transform_9, window_bounds = array<i64: 1, 128>}, {transform_indices = @transform_10, window_bounds = array<i64: 256, 128>}]} {
    %c0 = arith.constant 0 : index
    %c0_0 = arith.constant 0 : index
    %0 = vector.load %arg1[%c0, %c0_0] : memref<256x128xf32, #tpu.memory_space<vmem>>, vector<256x128xf32>
    %cst = arith.constant dense<0.000000e+00> : vector<256xf32>
    %1 = vector.multi_reduction <add>, %0, %cst [1] : vector<256x128xf32> to vector<256xf32>
    %2 = vector.shape_cast %1 : vector<256xf32> to vector<256x1xf32>
    %cst_1 = arith.constant 1.280000e+02 : f32
    %3 = vector.broadcast %cst_1 : f32 to vector<256x1xf32>
    %4 = arith.divf %2, %3 : vector<256x1xf32>
    %5 = vector.broadcast %4 : vector<256x1xf32> to vector<256x128xf32>
    %6 = arith.subf %0, %5 : vector<256x128xf32>
    %7 = arith.mulf %6, %6 : vector<256x128xf32>
    %cst_2 = arith.constant dense<0.000000e+00> : vector<256xf32>
    %8 = vector.multi_reduction <add>, %7, %cst_2 [1] : vector<256x128xf32> to vector<256xf32>
    %9 = vector.shape_cast %8 : vector<256xf32> to vector<256x1xf32>
    %cst_3 = arith.constant 1.280000e+02 : f32
    %10 = vector.broadcast %cst_3 : f32 to vector<256x1xf32>
    %11 = arith.divf %9, %10 : vector<256x1xf32>
    %12 = vector.broadcast %4 : vector<256x1xf32> to vector<256x128xf32>
    %13 = arith.subf %0, %12 : vector<256x128xf32>
    %cst_4 = arith.constant 9.99999974E-6 : f32
    %14 = vector.broadcast %cst_4 : f32 to vector<256x1xf32>
    %15 = arith.addf %11, %14 : vector<256x1xf32>
    %16 = math.rsqrt %15 : vector<256x1xf32>
    %17 = vector.broadcast %16 : vector<256x1xf32> to vector<256x128xf32>
    %18 = arith.mulf %13, %17 : vector<256x128xf32>
    %c0_5 = arith.constant 0 : index
    %c0_6 = arith.constant 0 : index
    %19 = vector.load %arg3[%c0_5, %c0_6] : memref<1x128xf32, #tpu.memory_space<vmem>>, vector<1x128xf32>
    %20 = vector.broadcast %19 : vector<1x128xf32> to vector<256x128xf32>
    %21 = arith.mulf %18, %20 : vector<256x128xf32>
    %c0_7 = arith.constant 0 : index
    %c0_8 = arith.constant 0 : index
    %22 = vector.load %arg4[%c0_7, %c0_8] : memref<1x128xf32, #tpu.memory_space<vmem>>, vector<1x128xf32>
    %23 = vector.broadcast %22 : vector<1x128xf32> to vector<256x128xf32>
    %24 = arith.addf %21, %23 : vector<256x128xf32>
    %c0_9 = arith.constant 0 : index
    %c0_10 = arith.constant 0 : index
    %25 = vector.load %arg2[%c0_9, %c0_10] : memref<256x128xf32, #tpu.memory_space<vmem>>, vector<256x128xf32>
    %26 = arith.addf %24, %25 : vector<256x128xf32>
    %cst_11 = arith.constant dense<0.000000e+00> : vector<256xf32>
    %27 = vector.multi_reduction <add>, %26, %cst_11 [1] : vector<256x128xf32> to vector<256xf32>
    %28 = vector.shape_cast %27 : vector<256xf32> to vector<256x1xf32>
    %cst_12 = arith.constant 1.280000e+02 : f32
    %29 = vector.broadcast %cst_12 : f32 to vector<256x1xf32>
    %30 = arith.divf %28, %29 : vector<256x1xf32>
    %31 = vector.broadcast %30 : vector<256x1xf32> to vector<256x128xf32>
    %32 = arith.subf %26, %31 : vector<256x128xf32>
    %33 = arith.mulf %32, %32 : vector<256x128xf32>
    %cst_13 = arith.constant dense<0.000000e+00> : vector<256xf32>
    %34 = vector.multi_reduction <add>, %33, %cst_13 [1] : vector<256x128xf32> to vector<256xf32>
    %35 = vector.shape_cast %34 : vector<256xf32> to vector<256x1xf32>
    %cst_14 = arith.constant 1.280000e+02 : f32
    %36 = vector.broadcast %cst_14 : f32 to vector<256x1xf32>
    %37 = arith.divf %35, %36 : vector<256x1xf32>
    %38 = vector.broadcast %30 : vector<256x1xf32> to vector<256x128xf32>
    %39 = arith.subf %26, %38 : vector<256x128xf32>
    %cst_15 = arith.constant 9.99999974E-6 : f32
    %40 = vector.broadcast %cst_15 : f32 to vector<256x1xf32>
    %41 = arith.addf %37, %40 : vector<256x1xf32>
    %42 = math.rsqrt %41 : vector<256x1xf32>
    %43 = vector.broadcast %42 : vector<256x1xf32> to vector<256x128xf32>
    %44 = arith.mulf %39, %43 : vector<256x128xf32>
    %c0_16 = arith.constant 0 : index
    %c0_17 = arith.constant 0 : index
    %45 = vector.load %arg5[%c0_16, %c0_17] : memref<1x128xf32, #tpu.memory_space<vmem>>, vector<1x128xf32>
    %46 = vector.broadcast %45 : vector<1x128xf32> to vector<256x128xf32>
    %47 = arith.mulf %44, %46 : vector<256x128xf32>
    %c0_18 = arith.constant 0 : index
    %c0_19 = arith.constant 0 : index
    %48 = vector.load %arg6[%c0_18, %c0_19] : memref<1x128xf32, #tpu.memory_space<vmem>>, vector<1x128xf32>
    %49 = vector.broadcast %48 : vector<1x128xf32> to vector<256x128xf32>
    %50 = arith.addf %47, %49 : vector<256x128xf32>
    %51 = arith.truncf %50 : vector<256x128xf32> to vector<256x128xbf16>
    %c0_20 = arith.constant 0 : index
    %c0_21 = arith.constant 0 : index
    %52 = vector.load %arg7[%c0_20, %c0_21] : memref<128x512xbf16, #tpu.memory_space<vmem>>, vector<128x512xbf16>
    %cst_22 = arith.constant dense<0.000000e+00> : vector<256x512xf32>
    %53 = tpu.matmul %51, %52, %cst_22 {dimension_numbers = #tpu.dot_dimension_numbers<[1], [0], [0], [1], [0, 0, 1, 1], [], []>} : vector<256x128xbf16>, vector<128x512xbf16>, vector<256x512xf32> -> vector<256x512xf32>
    %c0_23 = arith.constant 0 : index
    %c0_24 = arith.constant 0 : index
    %54 = vector.load %arg8[%c0_23, %c0_24] : memref<1x512xf32, #tpu.memory_space<vmem>>, vector<1x512xf32>
    %55 = vector.broadcast %54 : vector<1x512xf32> to vector<256x512xf32>
    %56 = arith.addf %53, %55 : vector<256x512xf32>
    %cst_25 = arith.constant 0.000000e+00 : f32
    %57 = vector.broadcast %cst_25 : f32 to vector<256x512xf32>
    %58 = arith.maximumf %56, %57 : vector<256x512xf32>
    %59 = arith.truncf %58 : vector<256x512xf32> to vector<256x512xbf16>
    %c0_26 = arith.constant 0 : index
    %c0_27 = arith.constant 0 : index
    %60 = vector.load %arg9[%c0_26, %c0_27] : memref<512x128xbf16, #tpu.memory_space<vmem>>, vector<512x128xbf16>
    %cst_28 = arith.constant dense<0.000000e+00> : vector<256x128xf32>
    %61 = tpu.matmul %59, %60, %cst_28 {dimension_numbers = #tpu.dot_dimension_numbers<[1], [0], [0], [1], [0, 0, 1, 1], [], []>} : vector<256x512xbf16>, vector<512x128xbf16>, vector<256x128xf32> -> vector<256x128xf32>
    %62 = arith.addf %26, %61 : vector<256x128xf32>
    %c0_29 = arith.constant 0 : index
    %c0_30 = arith.constant 0 : index
    %63 = vector.load %arg10[%c0_29, %c0_30] : memref<1x128xf32, #tpu.memory_space<vmem>>, vector<1x128xf32>
    %64 = vector.broadcast %63 : vector<1x128xf32> to vector<256x128xf32>
    %65 = arith.addf %62, %64 : vector<256x128xf32>
    %c0_31 = arith.constant 0 : index
    %c0_32 = arith.constant 0 : index
    %66 = vector.load %arg11[%c0_31, %c0_32] : memref<256x128xf32, #tpu.memory_space<vmem>>, vector<256x128xf32>
    tpu.vector_store %arg11[%c0_31, %c0_32], %65 {strides = array<i32>} : memref<256x128xf32, #tpu.memory_space<vmem>>, vector<256x128xf32>,
    return
  }
  func.func @transform_0(%arg0: i32) -> (i32, i32) {
    %c0_i32 = arith.constant 0 : i32
    %c0_i32_0 = arith.constant 0 : i32
    return %arg0, %c0_i32 : i32, i32
  }
  func.func @transform_1(%arg0: i32) -> (i32, i32) {
    %c0_i32 = arith.constant 0 : i32
    %c0_i32_0 = arith.constant 0 : i32
    return %arg0, %c0_i32 : i32, i32
  }
  func.func @transform_2(%arg0: i32) -> (i32, i32) {
    %c0_i32 = arith.constant 0 : i32
    %c0_i32_0 = arith.constant 0 : i32
    %c0_i32_1 = arith.constant 0 : i32
    return %c0_i32, %c0_i32_0 : i32, i32
  }
  func.func @transform_3(%arg0: i32) -> (i32, i32) {
    %c0_i32 = arith.constant 0 : i32
    %c0_i32_0 = arith.constant 0 : i32
    %c0_i32_1 = arith.constant 0 : i32
    return %c0_i32, %c0_i32_0 : i32, i32
  }
  func.func @transform_4(%arg0: i32) -> (i32, i32) {
    %c0_i32 = arith.constant 0 : i32
    %c0_i32_0 = arith.constant 0 : i32
    %c0_i32_1 = arith.constant 0 : i32
    return %c0_i32, %c0_i32_0 : i32, i32
  }
  func.func @transform_5(%arg0: i32) -> (i32, i32) {
    %c0_i32 = arith.constant 0 : i32
    %c0_i32_0 = arith.constant 0 : i32
    %c0_i32_1 = arith.constant 0 : i32
    return %c0_i32, %c0_i32_0 : i32, i32
  }
  func.func @transform_6(%arg0: i32) -> (i32, i32) {
    %c0_i32 = arith.constant 0 : i32
    %c0_i32_0 = arith.constant 0 : i32
    %c0_i32_1 = arith.constant 0 : i32
    return %c0_i32, %c0_i32_0 : i32, i32
  }
  func.func @transform_7(%arg0: i32) -> (i32, i32) {
    %c0_i32 = arith.constant 0 : i32
    %c0_i32_0 = arith.constant 0 : i32
    %c0_i32_1 = arith.constant 0 : i32
    return %c0_i32, %c0_i32_0 : i32, i32
  }
  func.func @transform_8(%arg0: i32) -> (i32, i32) {
    %c0_i32 = arith.constant 0 : i32
    %c0_i32_0 = arith.constant 0 : i32
    %c0_i32_1 = arith.constant 0 : i32
    return %c0_i32, %c0_i32_0 : i32, i32
  }
  func.func @transform_9(%arg0: i32) -> (i32, i32) {
    %c0_i32 = arith.constant 0 : i32
    %c0_i32_0 = arith.constant 0 : i32
    %c0_i32_1 = arith.constant 0 : i32
    return %c0_i32, %c0_i32_0 : i32, i32
  }
  func.func @transform_10(%arg0: i32) -> (i32, i32) {
    %c0_i32 = arith.constant 0 : i32
    %c0_i32_0 = arith.constant 0 : i32
    return %arg0, %c0_i32 : i32, i32
  }
}

</mosaic_0001>

<llo_original>
// kernel: tpu_custom_call.1
$region0: #{tpu_custom_call.1}
  #allocation0 [shape = 'u32[]', space=smem, size = 0x4, offset = 0x4, fixed_abs, tag = 'smem constant byte address 0x4 - core index']
  #allocation1 [shape = 'u32[72,128]{1,0:T(1,128)}', space=vmem, size = 0x9000, scoped, tag = 'internal scratch']
  %s0 = inlined_call_operand.hbm [shape: f32[512,128], index: 0, kind: input, shape index: {}]
  %s1 = inlined_call_operand.hbm [shape: f32[512,128], index: 1, kind: input, shape index: {}]
  %s2 = inlined_call_operand.vmem [shape: f32[1,128], index: 2, kind: input, shape index: {}]
  %s3 = inlined_call_operand.vmem [shape: f32[1,128], index: 3, kind: input, shape index: {}]
  %s4 = inlined_call_operand.hbm [shape: f32[1,128], index: 4, kind: input, shape index: {}]
  %s5 = inlined_call_operand.hbm [shape: f32[1,128], index: 5, kind: input, shape index: {}]
  %s6 = inlined_call_operand.hbm [shape: bf16[128,512], index: 6, kind: input, shape index: {}]
  %s7 = inlined_call_operand.vmem [shape: f32[1,512], index: 7, kind: input, shape index: {}]
  %s8 = inlined_call_operand.hbm [shape: bf16[512,128], index: 8, kind: input, shape index: {}]
  %s9 = inlined_call_operand.vmem [shape: f32[1,128], index: 9, kind: input, shape index: {}]
  %s10 = inlined_call_operand.hbm [shape: f32[512,128], index: 10, kind: output, shape index: {}]
  %s11 = sld [smem:[#allocation0]]
  $region97: #{tpu_custom_call.1} parent=0
    _
  %s13 = ssub.s32 1, %s11
  %s14 = scalar_select 0, %s13, %s11
  $region1: #{tpu_custom_call.1} parent=0
    #allocation2 [shape = 'u8[262144]{0}', space=vmem, size = 0x40000, scoped, tag = 'input window, operand 0']
    #allocation3 [shape = 's32[2]{0}', space=sflag, size = 0x8, scoped, tag = 'scoped memory for tpu_custom_call.1']
    #allocation4 [shape = 's32[2]{0}', space=sflag, size = 0x8, scoped, tag = 'scoped memory for tpu_custom_call.1']
    #allocation5 [shape = 'u8[262144]{0}', space=vmem, size = 0x40000, scoped, tag = 'input window, operand 1']
    #allocation6 [shape = 's32[2]{0}', space=sflag, size = 0x8, scoped, tag = 'scoped memory for tpu_custom_call.1']
    #allocation7 [shape = 'u8[512]{0}', space=vmem, size = 0x400, scoped, tag = 'input window, operand 4, single buffered']
    #allocation8 [shape = 'u8[512]{0}', space=vmem, size = 0x400, scoped, tag = 'input window, operand 5, single buffered']
    #allocation9 [shape = 's32[1]{0}', space=sflag, size = 0x4, scoped, tag = 'scoped memory for tpu_custom_call.1']
    #allocation10 [shape = 'u8[131072]{0}', space=vmem, size = 0x20000, scoped, tag = 'input window, operand 6, single buffered']
    #allocation11 [shape = 'u8[131072]{0}', space=vmem, size = 0x20000, scoped, tag = 'input window, operand 8, single buffered']
    #allocation12 [shape = 's32[1]{0}', space=sflag, size = 0x4, scoped, tag = 'scoped memory for tpu_custom_call.1']
    #allocation13 [shape = 'u8[262144]{0}', space=vmem, size = 0x40000, scoped, tag = 'output window, operand 0']
    %15 = vsyncpa [#allocation3], 0
    %s16 = scalar_lea.sflag [#allocation3], 1
    %17 = vsyncpa %s16, 0
    %18 = vsyncpa [#allocation6], 0
    %s19 = scalar_lea.sflag [#allocation6], 1
    %20 = vsyncpa %s19, 0
    %21 = vsyncpa [#allocation9], 0
    %22 = vsyncpa [#allocation12], 0
    %23 = vsyncpa [#allocation4], 0
    %s24 = scalar_lea.sflag [#allocation4], 1
    %25 = vsyncpa %s24, 0
    loop: start=0, step=1, limit=4
    $region2: #{tpu_custom_call.1} parent=1 // loop_pre_header
      _
    $region3: #{tpu_custom_call.1} parent=1 // loop_header
      %s27 = sphi 0, %s31
      %p28 = scmp.ge.s32.totalorder %s27, 4
      %s37 = sphi 0, %s39
      %s40 = sphi 0, %s37
      %s41 = sphi 0, %s40
      %s57 = sphi 0, %s41
      %s63 = sphi 0, %s65
      %s66 = sphi 0, %s63
      %s67 = sphi 0, %s66
      %s83 = sphi 0, %s67
      %s87 = sphi 0, %s87
      %s89 = sphi 0, %s87
      %s90 = sphi 0, %s89
      %s104 = sphi 0, %s90
      %s108 = sphi 0, %s108
      %s110 = sphi 0, %s108
      %s111 = sphi 0, %s110
      %s125 = sphi 0, %s111
      %s129 = sphi 0, %s129
      %s131 = sphi 0, %s129
      %s132 = sphi 0, %s131
      %s146 = sphi 0, %s132
      %s150 = sphi 0, %s150
      %s152 = sphi 0, %s150
      %s153 = sphi 0, %s152
      %s167 = sphi 0, %s153
      %s171 = sphi 0, %s171
      %s173 = sphi 0, %s171
      %s174 = sphi 0, %s173
      %s188 = sphi 0, %s174
      %s192 = sphi 0, %s192
      %s194 = sphi 0, %s192
      %s195 = sphi 0, %s194
      %s209 = sphi 0, %s195
      %s213 = sphi 0, %s213
      %s215 = sphi 0, %s213
      %s216 = sphi 0, %s215
      %s230 = sphi 0, %s216
      %s234 = sphi 0, %s234
      %s236 = sphi 0, %s234
      %s237 = sphi 0, %s236
      %s251 = sphi 0, %s237
      %s257 = sphi 0, %s259
      %s260 = sphi 0, %s257
      %s261 = sphi 0, %s260
      %s277 = sphi 0, %s261
    $region4: #{tpu_custom_call.1} parent=1 // loop_header_branch
      %30 = sbr.rel (%p28) target = $region8
    $region5: #{tpu_custom_call.1} parent=1 // loop_body
      %s32 = ssub.s32 %s27, 1
      %s33 = ssub.s32 %s27, 2
      %s34 = sadd.s32 %s27, 1
      %s35 = ssub.s32 %s27, %s34
      %p36 = scmp.eq.s32.totalorder %s35, 0
      %s38 = sadd.s32 %s37, 1
      %s39 = scalar_select %p36, %s37, %s38
      %p42 = pneg %p36
      %p43 = scmp.eq.s32.totalorder %s27, 1
      %p44 = por %p42, %p43
      %p45 = scmp.ne.s32.totalorder %s37, %s40
      %p46 = scmp.eq.s32.totalorder %s27, 0
      %p47 = por %p45, %p46
      %p48 = scmp.ne.s32.totalorder %s37, %s40
      %p49 = scmp.eq.s32.totalorder %s32, 1
      %p50 = por %p48, %p49
      %p51 = scmp.ne.s32.totalorder %s40, %s41
      %p52 = scmp.eq.s32.totalorder %s32, 0
      %p53 = por %p51, %p52
      %p54 = scmp.ne.s32.totalorder %s40, %s41
      %p55 = scmp.eq.s32.totalorder %s33, 1
      %p56 = por %p54, %p55
      %p58 = scmp.ne.s32.totalorder %s41, %s57
      %p59 = scmp.eq.s32.totalorder %s33, 0
      %p60 = por %p58, %p59
      %s61 = ssub.s32 %s27, %s34
      %p62 = scmp.eq.s32.totalorder %s61, 0
      %s64 = sadd.s32 %s63, 1
      %s65 = scalar_select %p62, %s63, %s64
      %p68 = pneg %p62
      %p69 = scmp.eq.s32.totalorder %s27, 1
      %p70 = por %p68, %p69
      %p71 = scmp.ne.s32.totalorder %s63, %s66
      %p72 = scmp.eq.s32.totalorder %s27, 0
      %p73 = por %p71, %p72
      %p74 = scmp.ne.s32.totalorder %s63, %s66
      %p75 = scmp.eq.s32.totalorder %s32, 1
      %p76 = por %p74, %p75
      %p77 = scmp.ne.s32.totalorder %s66, %s67
      %p78 = scmp.eq.s32.totalorder %s32, 0
      %p79 = por %p77, %p78
      %p80 = scmp.ne.s32.totalorder %s66, %s67
      %p81 = scmp.eq.s32.totalorder %s33, 1
      %p82 = por %p80, %p81
      %p84 = scmp.ne.s32.totalorder %s67, %s83
      %p85 = scmp.eq.s32.totalorder %s33, 0
      %p86 = por %p84, %p85
      %s88 = sadd.s32 %s87, 1
      %p91 = scmp.eq.s32.totalorder %s27, 1
      %p92 = scmp.ne.s32.totalorder %s87, %s89
      %p93 = scmp.eq.s32.totalorder %s27, 0
      %p94 = por %p92, %p93
      %p95 = scmp.ne.s32.totalorder %s87, %s89
      %p96 = scmp.eq.s32.totalorder %s32, 1
      %p97 = por %p95, %p96
      %p98 = scmp.ne.s32.totalorder %s89, %s90
      %p99 = scmp.eq.s32.totalorder %s32, 0
      %p100 = por %p98, %p99
      %p101 = scmp.ne.s32.totalorder %s89, %s90
      %p102 = scmp.eq.s32.totalorder %s33, 1
      %p103 = por %p101, %p102
      %p105 = scmp.ne.s32.totalorder %s90, %s104
      %p106 = scmp.eq.s32.totalorder %s33, 0
      %p107 = por %p105, %p106
      %s109 = sadd.s32 %s108, 1
      %p112 = scmp.eq.s32.totalorder %s27, 1
      %p113 = scmp.ne.s32.totalorder %s108, %s110
      %p114 = scmp.eq.s32.totalorder %s27, 0
      %p115 = por %p113, %p114
      %p116 = scmp.ne.s32.totalorder %s108, %s110
      %p117 = scmp.eq.s32.totalorder %s32, 1
      %p118 = por %p116, %p117
      %p119 = scmp.ne.s32.totalorder %s110, %s111
      %p120 = scmp.eq.s32.totalorder %s32, 0
      %p121 = por %p119, %p120
      %p122 = scmp.ne.s32.totalorder %s110, %s111
      %p123 = scmp.eq.s32.totalorder %s33, 1
      %p124 = por %p122, %p123
      %p126 = scmp.ne.s32.totalorder %s111, %s125
      %p127 = scmp.eq.s32.totalorder %s33, 0
      %p128 = por %p126, %p127
      %s130 = sadd.s32 %s129, 1
      %p133 = scmp.eq.s32.totalorder %s27, 1
      %p134 = scmp.ne.s32.totalorder %s129, %s131
      %p135 = scmp.eq.s32.totalorder %s27, 0
      %p136 = por %p134, %p135
      %p137 = scmp.ne.s32.totalorder %s129, %s131
      %p138 = scmp.eq.s32.totalorder %s32, 1
      %p139 = por %p137, %p138
      %p140 = scmp.ne.s32.totalorder %s131, %s132
      %p141 = scmp.eq.s32.totalorder %s32, 0
      %p142 = por %p140, %p141
      %p143 = scmp.ne.s32.totalorder %s131, %s132
      %p144 = scmp.eq.s32.totalorder %s33, 1
      %p145 = por %p143, %p144
      %p147 = scmp.ne.s32.totalorder %s132, %s146
      %p148 = scmp.eq.s32.totalorder %s33, 0
      %p149 = por %p147, %p148
      %s151 = sadd.s32 %s150, 1
      %p154 = scmp.eq.s32.totalorder %s27, 1
      %p155 = scmp.ne.s32.totalorder %s150, %s152
      %p156 = scmp.eq.s32.totalorder %s27, 0
      %p157 = por %p155, %p156
      %p158 = scmp.ne.s32.totalorder %s150, %s152
      %p159 = scmp.eq.s32.totalorder %s32, 1
      %p160 = por %p158, %p159
      %p161 = scmp.ne.s32.totalorder %s152, %s153
      %p162 = scmp.eq.s32.totalorder %s32, 0
      %p163 = por %p161, %p162
      %p164 = scmp.ne.s32.totalorder %s152, %s153
      %p165 = scmp.eq.s32.totalorder %s33, 1
      %p166 = por %p164, %p165
      %p168 = scmp.ne.s32.totalorder %s153, %s167
      %p169 = scmp.eq.s32.totalorder %s33, 0
      %p170 = por %p168, %p169
      %s172 = sadd.s32 %s171, 1
      %p175 = scmp.eq.s32.totalorder %s27, 1
      %p176 = scmp.ne.s32.totalorder %s171, %s173
      %p177 = scmp.eq.s32.totalorder %s27, 0
      %p178 = por %p176, %p177
      %p179 = scmp.ne.s32.totalorder %s171, %s173
      %p180 = scmp.eq.s32.totalorder %s32, 1
      %p181 = por %p179, %p180
      %p182 = scmp.ne.s32.totalorder %s173, %s174
      %p183 = scmp.eq.s32.totalorder %s32, 0
      %p184 = por %p182, %p183
      %p185 = scmp.ne.s32.totalorder %s173, %s174
      %p186 = scmp.eq.s32.totalorder %s33, 1
      %p187 = por %p185, %p186
      %p189 = scmp.ne.s32.totalorder %s174, %s188
      %p190 = scmp.eq.s32.totalorder %s33, 0
      %p191 = por %p189, %p190
      %s193 = sadd.s32 %s192, 1
      %p196 = scmp.eq.s32.totalorder %s27, 1
      %p197 = scmp.ne.s32.totalorder %s192, %s194
      %p198 = scmp.eq.s32.totalorder %s27, 0
      %p199 = por %p197, %p198
      %p200 = scmp.ne.s32.totalorder %s192, %s194
      %p201 = scmp.eq.s32.totalorder %s32, 1
      %p202 = por %p200, %p201
      %p203 = scmp.ne.s32.totalorder %s194, %s195
      %p204 = scmp.eq.s32.totalorder %s32, 0
      %p205 = por %p203, %p204
      %p206 = scmp.ne.s32.totalorder %s194, %s195
      %p207 = scmp.eq.s32.totalorder %s33, 1
      %p208 = por %p206, %p207
      %p210 = scmp.ne.s32.totalorder %s195, %s209
      %p211 = scmp.eq.s32.totalorder %s33, 0
      %p212 = por %p210, %p211
      %s214 = sadd.s32 %s213, 1
      %p217 = scmp.eq.s32.totalorder %s27, 1
      %p218 = scmp.ne.s32.totalorder %s213, %s215
      %p219 = scmp.eq.s32.totalorder %s27, 0
      %p220 = por %p218, %p219
      %p221 = scmp.ne.s32.totalorder %s213, %s215
      %p222 = scmp.eq.s32.totalorder %s32, 1
      %p223 = por %p221, %p222
      %p224 = scmp.ne.s32.totalorder %s215, %s216
      %p225 = scmp.eq.s32.totalorder %s32, 0
      %p226 = por %p224, %p225
      %p227 = scmp.ne.s32.totalorder %s215, %s216
      %p228 = scmp.eq.s32.totalorder %s33, 1
      %p229 = por %p227, %p228
      %p231 = scmp.ne.s32.totalorder %s216, %s230
      %p232 = scmp.eq.s32.totalorder %s33, 0
      %p233 = por %p231, %p232
      %s235 = sadd.s32 %s234, 1
      %p238 = scmp.eq.s32.totalorder %s27, 1
      %p239 = scmp.ne.s32.totalorder %s234, %s236
      %p240 = scmp.eq.s32.totalorder %s27, 0
      %p241 = por %p239, %p240
      %p242 = scmp.ne.s32.totalorder %s234, %s236
      %p243 = scmp.eq.s32.totalorder %s32, 1
      %p244 = por %p242, %p243
      %p245 = scmp.ne.s32.totalorder %s236, %s237
      %p246 = scmp.eq.s32.totalorder %s32, 0
      %p247 = por %p245, %p246
      %p248 = scmp.ne.s32.totalorder %s236, %s237
      %p249 = scmp.eq.s32.totalorder %s33, 1
      %p250 = por %p248, %p249
      %p252 = scmp.ne.s32.totalorder %s237, %s251
      %p253 = scmp.eq.s32.totalorder %s33, 0
      %p254 = por %p252, %p253
      %s255 = ssub.s32 %s27, %s34
      %p256 = scmp.eq.s32.totalorder %s255, 0
      %s258 = sadd.s32 %s257, 1
      %s259 = scalar_select %p256, %s257, %s258
      %p262 = pneg %p256
      %p263 = scmp.eq.s32.totalorder %s27, 1
      %p264 = por %p262, %p263
      %p265 = scmp.ne.s32.totalorder %s257, %s260
      %p266 = scmp.eq.s32.totalorder %s27, 0
      %p267 = por %p265, %p266
      %p268 = scmp.ne.s32.totalorder %s257, %s260
      %p269 = scmp.eq.s32.totalorder %s32, 1
      %p270 = por %p268, %p269
      %p271 = scmp.ne.s32.totalorder %s260, %s261
      %p272 = scmp.eq.s32.totalorder %s32, 0
      %p273 = por %p271, %p272
      %p274 = scmp.ne.s32.totalorder %s260, %s261
      %p275 = scmp.eq.s32.totalorder %s33, 1
      %p276 = por %p274, %p275
      %p278 = scmp.ne.s32.totalorder %s261, %s277
      %p279 = scmp.eq.s32.totalorder %s33, 0
      %p280 = por %p278, %p279
      %p281 = scmp.le.s32.totalorder 1, %s27
      %p282 = scmp.lt.s32.totalorder %s27, 3
      %p283 = pnand %p281, %p282
      %p284 = pneg %p283
      // Predicated region
      $region9: #{tpu_custom_call.1} parent=5 // pred_check
        _
      $region10: #{tpu_custom_call.1} parent=5 // pred_check_branch
        %286 = sbr.rel (%p283) target = $region12
      $region11: #{tpu_custom_call.1} parent=5 // pred_region
        %s287 = ssub.s32 %s27, 1
        // Predicated region
        $region13: #{tpu_custom_call.1} parent=11 // pred_check
          %p288 = pneg %p100
        $region14: #{tpu_custom_call.1} parent=11 // pred_check_branch
          %290 = sbr.rel (%p288) target = $region16
        $region15: #{tpu_custom_call.1} parent=11 // pred_region
          _
        $region16: #{tpu_custom_call.1} parent=11 // pred_fallthru
          _
        // Predicated region
        $region17: #{tpu_custom_call.1} parent=11 // pred_check
          %p291 = pneg %p121
        $region18: #{tpu_custom_call.1} parent=11 // pred_check_branch
          %293 = sbr.rel (%p291) target = $region20
        $region19: #{tpu_custom_call.1} parent=11 // pred_region
          _
        $region20: #{tpu_custom_call.1} parent=11 // pred_fallthru
          _
        // Predicated region
        $region21: #{tpu_custom_call.1} parent=11 // pred_check
          %p294 = pneg %p142
        $region22: #{tpu_custom_call.1} parent=11 // pred_check_branch
          %296 = sbr.rel (%p294) target = $region24
        $region23: #{tpu_custom_call.1} parent=11 // pred_region
          %298 = vsyncadd [#allocation6], 0
          %s300 = sshll.u32 %s4, 4
          %s301 = int_to_ptr.hbm [resolvable:$true] %s300
          %s302 = sshll.u32 [#allocation7], 4
          %s303 = int_to_ptr.vmem [resolvable:$true] %s302
          %305 = dma.hbm_to_vmem [thread:$0]  %s301, 16, %s303, [#allocation6]
        $region24: #{tpu_custom_call.1} parent=11 // pred_fallthru
          _
        // Predicated region
        $region25: #{tpu_custom_call.1} parent=11 // pred_check
          %p306 = pneg %p163
        $region26: #{tpu_custom_call.1} parent=11 // pred_check_branch
          %308 = sbr.rel (%p306) target = $region28
        $region27: #{tpu_custom_call.1} parent=11 // pred_region
          %310 = vsyncadd [#allocation9], 0
          %s312 = sshll.u32 %s5, 4
          %s313 = int_to_ptr.hbm [resolvable:$true] %s312
          %s314 = sshll.u32 [#allocation8], 4
          %s315 = int_to_ptr.vmem [resolvable:$true] %s314
          %317 = dma.hbm_to_vmem [thread:$0]  %s313, 16, %s315, [#allocation9]
        $region28: #{tpu_custom_call.1} parent=11 // pred_fallthru
          _
        // Predicated region
        $region29: #{tpu_custom_call.1} parent=11 // pred_check
          %p318 = pneg %p184
        $region30: #{tpu_custom_call.1} parent=11 // pred_check_branch
          %320 = sbr.rel (%p318) target = $region32
        $region31: #{tpu_custom_call.1} parent=11 // pred_region
          %322 = vsyncadd [#allocation9], 0
          %s323 = sshll.u32 %s6, 4
          %s324 = int_to_ptr.hbm [resolvable:$true] %s323
          %s325 = sshll.u32 [#allocation10], 4
          %s326 = int_to_ptr.vmem [resolvable:$true] %s325
          %331 = dma.hbm_to_vmem [thread:$0]  %s324, 4096, %s326, [#allocation9], 256, 256, 16
        $region32: #{tpu_custom_call.1} parent=11 // pred_fallthru
          _
        // Predicated region
        $region33: #{tpu_custom_call.1} parent=11 // pred_check
          %p332 = pneg %p205
        $region34: #{tpu_custom_call.1} parent=11 // pred_check_branch
          %334 = sbr.rel (%p332) target = $region36
        $region35: #{tpu_custom_call.1} parent=11 // pred_region
          _
        $region36: #{tpu_custom_call.1} parent=11 // pred_fallthru
          _
        // Predicated region
        $region37: #{tpu_custom_call.1} parent=11 // pred_check
          %p335 = pneg %p226
        $region38: #{tpu_custom_call.1} parent=11 // pred_check_branch
          %337 = sbr.rel (%p335) target = $region40
        $region39: #{tpu_custom_call.1} parent=11 // pred_region
          %339 = vsyncadd [#allocation12], 0
          %s340 = sshll.u32 %s8, 4
          %s341 = int_to_ptr.hbm [resolvable:$true] %s340
          %s342 = sshll.u32 [#allocation11], 4
          %s343 = int_to_ptr.vmem [resolvable:$true] %s342
          %348 = dma.hbm_to_vmem [thread:$0]  %s341, 4096, %s343, [#allocation12], 64, 64, 4
        $region40: #{tpu_custom_call.1} parent=11 // pred_fallthru
          _
        // Predicated region
        $region41: #{tpu_custom_call.1} parent=11 // pred_check
          %p349 = pneg %p247
        $region42: #{tpu_custom_call.1} parent=11 // pred_check_branch
          %351 = sbr.rel (%p349) target = $region44
        $region43: #{tpu_custom_call.1} parent=11 // pred_region
          _
        $region44: #{tpu_custom_call.1} parent=11 // pred_fallthru
          _
      $region12: #{tpu_custom_call.1} parent=5 // pred_fallthru
        _
      %p352 = scmp.lt.s32.totalorder %s27, 2
      // Predicated region
      $region45: #{tpu_custom_call.1} parent=5 // pred_check
        %p353 = pneg %p352
      $region46: #{tpu_custom_call.1} parent=5 // pred_check_branch
        %355 = sbr.rel (%p353) target = $region48
      $region47: #{tpu_custom_call.1} parent=5 // pred_region
        // Predicated region
        $region49: #{tpu_custom_call.1} parent=47 // pred_check
          %p356 = pneg %p47
        $region50: #{tpu_custom_call.1} parent=47 // pred_check_branch
          %358 = sbr.rel (%p356) target = $region52
        $region51: #{tpu_custom_call.1} parent=47 // pred_region
          %s359 = sand.u32 %s37, 1
          %s360 = scalar_lea.sflag [#allocation3], %s359
          %s361 = sand.u32 %s37, 1
          %s362 = smul.addr %s361, 256
          %s363 = scalar_lea.vmem [#allocation2], %s362
          %s364 = smul.u32 32, %s27
          %366 = vsyncadd %s360, 0
          %s367 = smul.addr %s364, 8
          %s368 = scalar_lea.hbm %s0, %s367
          %s369 = sshll.u32 %s368, 4
          %s370 = int_to_ptr.hbm [resolvable:$true] %s369
          %s371 = sshll.u32 %s363, 4
          %s372 = int_to_ptr.vmem [resolvable:$true] %s371
          %377 = dma.hbm_to_vmem [thread:$0]  %s370, 4096, %s372, %s360, 128, 128, 8
        $region52: #{tpu_custom_call.1} parent=47 // pred_fallthru
          _
        // Predicated region
        $region53: #{tpu_custom_call.1} parent=47 // pred_check
          %p378 = pneg %p73
        $region54: #{tpu_custom_call.1} parent=47 // pred_check_branch
          %380 = sbr.rel (%p378) target = $region56
        $region55: #{tpu_custom_call.1} parent=47 // pred_region
          %s381 = sand.u32 %s27, 1
          %s382 = scalar_lea.sflag [#allocation6], %s381
          %s383 = sand.u32 %s63, 1
          %s384 = smul.addr %s383, 256
          %s385 = scalar_lea.vmem [#allocation5], %s384
          %s386 = smul.u32 32, %s27
          %388 = vsyncadd %s382, 0
          %s389 = smul.addr %s386, 8
          %s390 = scalar_lea.hbm %s1, %s389
          %s391 = sshll.u32 %s390, 4
          %s392 = int_to_ptr.hbm [resolvable:$true] %s391
          %s393 = sshll.u32 %s385, 4
          %s394 = int_to_ptr.vmem [resolvable:$true] %s393
          %399 = dma.hbm_to_vmem [thread:$0]  %s392, 4096, %s394, %s382, 128, 128, 8
        $region56: #{tpu_custom_call.1} parent=47 // pred_fallthru
          _
      $region48: #{tpu_custom_call.1} parent=5 // pred_fallthru
        _
      %p400 = scmp.le.s32.totalorder 1, %s27
      %p401 = scmp.lt.s32.totalorder %s27, 3
      %p402 = pnand %p400, %p401
      %p403 = pneg %p402
      // Predicated region
      $region57: #{tpu_custom_call.1} parent=5 // pred_check
        _
      $region58: #{tpu_custom_call.1} parent=5 // pred_check_branch
        %405 = sbr.rel (%p402) target = $region60
      $region59: #{tpu_custom_call.1} parent=5 // pred_region
        %s406 = ssub.s32 %s27, 1
        %s407 = sand.u32 %s40, 1
        %s408 = scalar_lea.sflag [#allocation3], %s407
        %s409 = sand.u32 %s40, 1
        %s410 = smul.addr %s409, 256
        %s411 = scalar_lea.vmem [#allocation2], %s410
        // Predicated region
        $region61: #{tpu_custom_call.1} parent=59 // pred_check
          %p412 = pneg %p53
        $region62: #{tpu_custom_call.1} parent=59 // pred_check_branch
          %414 = sbr.rel (%p412) target = $region64
        $region63: #{tpu_custom_call.1} parent=59 // pred_region
          %416 = dma.done %s408, 4096
        $region64: #{tpu_custom_call.1} parent=59 // pred_fallthru
          _
        %s417 = sand.u32 %s32, 1
        %s418 = scalar_lea.sflag [#allocation6], %s417
        %s419 = sand.u32 %s66, 1
        %s420 = smul.addr %s419, 256
        %s421 = scalar_lea.vmem [#allocation5], %s420
        // Predicated region
        $region65: #{tpu_custom_call.1} parent=59 // pred_check
          %p422 = pneg %p79
        $region66: #{tpu_custom_call.1} parent=59 // pred_check_branch
          %424 = sbr.rel (%p422) target = $region68
        $region67: #{tpu_custom_call.1} parent=59 // pred_region
          %426 = dma.done %s418, 4096
        $region68: #{tpu_custom_call.1} parent=59 // pred_fallthru
          _
        // Predicated region
        $region69: #{tpu_custom_call.1} parent=59 // pred_check
          %p427 = pneg %p142
        $region70: #{tpu_custom_call.1} parent=59 // pred_check_branch
          %429 = sbr.rel (%p427) target = $region72
        $region71: #{tpu_custom_call.1} parent=59 // pred_region
          %431 = dma.done [#allocation6], 16
        $region72: #{tpu_custom_call.1} parent=59 // pred_fallthru
          _
        // Predicated region
        $region73: #{tpu_custom_call.1} parent=59 // pred_check
          %p432 = pneg %p163
        $region74: #{tpu_custom_call.1} parent=59 // pred_check_branch
          %434 = sbr.rel (%p432) target = $region76
        $region75: #{tpu_custom_call.1} parent=59 // pred_region
          %436 = dma.done [#allocation9], 16
        $region76: #{tpu_custom_call.1} parent=59 // pred_fallthru
          _
        // Predicated region
        $region77: #{tpu_custom_call.1} parent=59 // pred_check
          %p437 = pneg %p184
        $region78: #{tpu_custom_call.1} parent=59 // pred_check_branch
          %439 = sbr.rel (%p437) target = $region80
        $region79: #{tpu_custom_call.1} parent=59 // pred_region
          %441 = dma.done [#allocation9], 4096
        $region80: #{tpu_custom_call.1} parent=59 // pred_fallthru
          _
        // Predicated region
        $region81: #{tpu_custom_call.1} parent=59 // pred_check
          %p442 = pneg %p226
        $region82: #{tpu_custom_call.1} parent=59 // pred_check_branch
          %444 = sbr.rel (%p442) target = $region84
        $region83: #{tpu_custom_call.1} parent=59 // pred_region
          %446 = dma.done [#allocation12], 4096
        $region84: #{tpu_custom_call.1} parent=59 // pred_fallthru
          _
        %s447 = sand.u32 %s40, 1
        %s448 = scalar_lea.sflag [#allocation3], %s447
        %s449 = sand.u32 %s40, 1
        %s450 = smul.addr %s449, 256
        %s451 = scalar_lea.vmem [#allocation2], %s450
        %p452 = pneg %p53
        %p453 = pneg %p50
        %s454 = sand.u32 %s32, 1
        %s455 = scalar_lea.sflag [#allocation6], %s454
        %s456 = sand.u32 %s66, 1
        %s457 = smul.addr %s456, 256
        %s458 = scalar_lea.vmem [#allocation5], %s457
        %p459 = pneg %p79
        %p460 = pneg %p76
        %p461 = pneg %p100
        %p462 = pneg %p97
        %p463 = pneg %p121
        %p464 = pneg %p118
        %p465 = pneg %p142
        %p466 = pneg %p139
        %p467 = pneg %p163
        %p468 = pneg %p160
        %p469 = pneg %p184
        %p470 = pneg %p181
        %p471 = pneg %p205
        %p472 = pneg %p202
        %p473 = pneg %p226
        %p474 = pneg %p223
        %p475 = pneg %p247
        %p476 = pneg %p244
        %p477 = pneg %p273
        %p478 = pneg %p270
        %s479 = sand.u32 %s260, 1
        %s480 = scalar_lea.sflag [#allocation4], %s479
        %s481 = sand.u32 %s260, 1
        %s482 = smul.addr %s481, 256
        %s483 = scalar_lea.vmem [#allocation13], %s482
        %s484 = smul.u32 32, %s32
        %s485 = smul.u32 32, %s32
        %s486 = smul.u32 32, %s32
        %v487 = vld [vmem:[%s411] sm:$0xff]
        %v488 = vld [vmem:[%s411 + $0x8] sm:$0xff]
        %v489 = vld [vmem:[%s411 + $0x10] sm:$0xff]
        %v490 = vld [vmem:[%s411 + $0x18] sm:$0xff]
        %v491 = vld [vmem:[%s411 + $0x20] sm:$0xff]
        %v492 = vld [vmem:[%s411 + $0x28] sm:$0xff]
        %v493 = vld [vmem:[%s411 + $0x30] sm:$0xff]
        %v494 = vld [vmem:[%s411 + $0x38] sm:$0xff]
        %v495 = vld [vmem:[%s411 + $0x40] sm:$0xff]
        %v496 = vld [vmem:[%s411 + $0x48] sm:$0xff]
        %v497 = vld [vmem:[%s411 + $0x50] sm:$0xff]
        %v498 = vld [vmem:[%s411 + $0x58] sm:$0xff]
        %v499 = vld [vmem:[%s411 + $0x60] sm:$0xff]
        %v500 = vld [vmem:[%s411 + $0x68] sm:$0xff]
        %v501 = vld [vmem:[%s411 + $0x70] sm:$0xff]
        %v502 = vld [vmem:[%s411 + $0x78] sm:$0xff]
        %v503 = vld [vmem:[%s411 + $0x80] sm:$0xff]
        %v504 = vld [vmem:[%s411 + $0x88] sm:$0xff]
        %v505 = vld [vmem:[%s411 + $0x90] sm:$0xff]
        %v506 = vld [vmem:[%s411 + $0x98] sm:$0xff]
        %v507 = vld [vmem:[%s411 + $0xa0] sm:$0xff]
        %v508 = vld [vmem:[%s411 + $0xa8] sm:$0xff]
        %v509 = vld [vmem:[%s411 + $0xb0] sm:$0xff]
        %v510 = vld [vmem:[%s411 + $0xb8] sm:$0xff]
        %v511 = vld [vmem:[%s411 + $0xc0] sm:$0xff]
        %v512 = vld [vmem:[%s411 + $0xc8] sm:$0xff]
        %v513 = vld [vmem:[%s411 + $0xd0] sm:$0xff]
        %v514 = vld [vmem:[%s411 + $0xd8] sm:$0xff]
        %v515 = vld [vmem:[%s411 + $0xe0] sm:$0xff]
        %v516 = vld [vmem:[%s411 + $0xe8] sm:$0xff]
        %v517 = vld [vmem:[%s411 + $0xf0] sm:$0xff]
        %v518 = vld [vmem:[%s411 + $0xf8] sm:$0xff]
        %519 = vadd.xlane.f32.xlu0 %v487
        %v520 = vpop.xlane.xlu0 %519
        %521 = vadd.xlane.f32.xlu0 %v488
        %v522 = vpop.xlane.xlu0 %521
        %523 = vadd.xlane.f32.xlu0 %v489
        %v524 = vpop.xlane.xlu0 %523
        %525 = vadd.xlane.f32.xlu0 %v490
        %v526 = vpop.xlane.xlu0 %525
        %527 = vadd.xlane.f32.xlu0 %v491
        %v528 = vpop.xlane.xlu0 %527
        %529 = vadd.xlane.f32.xlu0 %v492
        %v530 = vpop.xlane.xlu0 %529
        %531 = vadd.xlane.f32.xlu0 %v493
        %v532 = vpop.xlane.xlu0 %531
        %533 = vadd.xlane.f32.xlu0 %v494
        %v534 = vpop.xlane.xlu0 %533
        %535 = vadd.xlane.f32.xlu0 %v495
        %v536 = vpop.xlane.xlu0 %535
        %537 = vadd.xlane.f32.xlu0 %v496
        %v538 = vpop.xlane.xlu0 %537
        %539 = vadd.xlane.f32.xlu0 %v497
        %v540 = vpop.xlane.xlu0 %539
        %541 = vadd.xlane.f32.xlu0 %v498
        %v542 = vpop.xlane.xlu0 %541
        %543 = vadd.xlane.f32.xlu0 %v499
        %v544 = vpop.xlane.xlu0 %543
        %545 = vadd.xlane.f32.xlu0 %v500
        %v546 = vpop.xlane.xlu0 %545
        %547 = vadd.xlane.f32.xlu0 %v501
        %v548 = vpop.xlane.xlu0 %547
        %549 = vadd.xlane.f32.xlu0 %v502
        %v550 = vpop.xlane.xlu0 %549
        %551 = vadd.xlane.f32.xlu0 %v503
        %v552 = vpop.xlane.xlu0 %551
        %553 = vadd.xlane.f32.xlu0 %v504
        %v554 = vpop.xlane.xlu0 %553
        %555 = vadd.xlane.f32.xlu0 %v505
        %v556 = vpop.xlane.xlu0 %555
        %557 = vadd.xlane.f32.xlu0 %v506
        %v558 = vpop.xlane.xlu0 %557
        %559 = vadd.xlane.f32.xlu0 %v507
        %v560 = vpop.xlane.xlu0 %559
        %561 = vadd.xlane.f32.xlu0 %v508
        %v562 = vpop.xlane.xlu0 %561
        %563 = vadd.xlane.f32.xlu0 %v509
        %v564 = vpop.xlane.xlu0 %563
        %565 = vadd.xlane.f32.xlu0 %v510
        %v566 = vpop.xlane.xlu0 %565
        %567 = vadd.xlane.f32.xlu0 %v511
        %v568 = vpop.xlane.xlu0 %567
        %569 = vadd.xlane.f32.xlu0 %v512
        %v570 = vpop.xlane.xlu0 %569
        %571 = vadd.xlane.f32.xlu0 %v513
        %v572 = vpop.xlane.xlu0 %571
        %573 = vadd.xlane.f32.xlu0 %v514
        %v574 = vpop.xlane.xlu0 %573
        %575 = vadd.xlane.f32.xlu0 %v515
        %v576 = vpop.xlane.xlu0 %575
        %577 = vadd.xlane.f32.xlu0 %v516
        %v578 = vpop.xlane.xlu0 %577
        %579 = vadd.xlane.f32.xlu0 %v517
        %v580 = vpop.xlane.xlu0 %579
        %581 = vadd.xlane.f32.xlu0 %v518
        %v582 = vpop.xlane.xlu0 %581
        %v583 = vrcp.pop 128.0
        %v584 = vmul.f32 128.0, %v583
        %v585 = vsub.f32 1.0, %v584
        %v586 = vmul.f32 %v583, %v585
        %v587 = vadd.f32 %v583, %v586
        %vm588 = vweird.f32 %v583
        %v589 = vsel %vm588, %v583, %v587
        %v590 = vmul.f32 %v520, %v589
        %v591 = vmul.f32 %v522, %v589
        %v592 = vmul.f32 %v524, %v589
        %v593 = vmul.f32 %v526, %v589
        %v594 = vmul.f32 %v528, %v589
        %v595 = vmul.f32 %v530, %v589
        %v596 = vmul.f32 %v532, %v589
        %v597 = vmul.f32 %v534, %v589
        %v598 = vmul.f32 %v536, %v589
        %v599 = vmul.f32 %v538, %v589
        %v600 = vmul.f32 %v540, %v589
        %v601 = vmul.f32 %v542, %v589
        %v602 = vmul.f32 %v544, %v589
        %v603 = vmul.f32 %v546, %v589
        %v604 = vmul.f32 %v548, %v589
        %v605 = vmul.f32 %v550, %v589
        %v606 = vmul.f32 %v552, %v589
        %v607 = vmul.f32 %v554, %v589
        %v608 = vmul.f32 %v556, %v589
        %v609 = vmul.f32 %v558, %v589
        %v610 = vmul.f32 %v560, %v589
        %v611 = vmul.f32 %v562, %v589
        %v612 = vmul.f32 %v564, %v589
        %v613 = vmul.f32 %v566, %v589
        %v614 = vmul.f32 %v568, %v589
        %v615 = vmul.f32 %v570, %v589
        %v616 = vmul.f32 %v572, %v589
        %v617 = vmul.f32 %v574, %v589
        %v618 = vmul.f32 %v576, %v589
        %v619 = vmul.f32 %v578, %v589
        %v620 = vmul.f32 %v580, %v589
        %v621 = vmul.f32 %v582, %v589
        %v622 = vsub.f32 %v487, %v590
        %v623 = vsub.f32 %v488, %v591
        %v624 = vsub.f32 %v489, %v592
        %v625 = vsub.f32 %v490, %v593
        %v626 = vsub.f32 %v491, %v594
        %v627 = vsub.f32 %v492, %v595
        %v628 = vsub.f32 %v493, %v596
        %v629 = vsub.f32 %v494, %v597
        %v630 = vsub.f32 %v495, %v598
        %v631 = vsub.f32 %v496, %v599
        %v632 = vsub.f32 %v497, %v600
        %v633 = vsub.f32 %v498, %v601
        %v634 = vsub.f32 %v499, %v602
        %v635 = vsub.f32 %v500, %v603
        %v636 = vsub.f32 %v501, %v604
        %v637 = vsub.f32 %v502, %v605
        %v638 = vsub.f32 %v503, %v606
        %v639 = vsub.f32 %v504, %v607
        %v640 = vsub.f32 %v505, %v608
        %v641 = vsub.f32 %v506, %v609
        %v642 = vsub.f32 %v507, %v610
        %v643 = vsub.f32 %v508, %v611
        %v644 = vsub.f32 %v509, %v612
        %v645 = vsub.f32 %v510, %v613
        %v646 = vsub.f32 %v511, %v614
        %v647 = vsub.f32 %v512, %v615
        %v648 = vsub.f32 %v513, %v616
        %v649 = vsub.f32 %v514, %v617
        %v650 = vsub.f32 %v515, %v618
        %v651 = vsub.f32 %v516, %v619
        %v652 = vsub.f32 %v517, %v620
        %v653 = vsub.f32 %v518, %v621
        %v654 = vmul.f32 %v622, %v622
        %v655 = vmul.f32 %v623, %v623
        %v656 = vmul.f32 %v624, %v624
        %v657 = vmul.f32 %v625, %v625
        %v658 = vmul.f32 %v626, %v626
        %v659 = vmul.f32 %v627, %v627
        %v660 = vmul.f32 %v628, %v628
        %v661 = vmul.f32 %v629, %v629
        %v662 = vmul.f32 %v630, %v630
        %v663 = vmul.f32 %v631, %v631
        %v664 = vmul.f32 %v632, %v632
        %v665 = vmul.f32 %v633, %v633
        %v666 = vmul.f32 %v634, %v634
        %v667 = vmul.f32 %v635, %v635
        %v668 = vmul.f32 %v636, %v636
        %v669 = vmul.f32 %v637, %v637
        %v670 = vmul.f32 %v638, %v638
        %v671 = vmul.f32 %v639, %v639
        %v672 = vmul.f32 %v640, %v640
        %v673 = vmul.f32 %v641, %v641
        %v674 = vmul.f32 %v642, %v642
        %v675 = vmul.f32 %v643, %v643
        %v676 = vmul.f32 %v644, %v644
        %v677 = vmul.f32 %v645, %v645
        %v678 = vmul.f32 %v646, %v646
        %v679 = vmul.f32 %v647, %v647
        %v680 = vmul.f32 %v648, %v648
        %v681 = vmul.f32 %v649, %v649
        %v682 = vmul.f32 %v650, %v650
        %v683 = vmul.f32 %v651, %v651
        %v684 = vmul.f32 %v652, %v652
        %v685 = vmul.f32 %v653, %v653
        %686 = vadd.xlane.f32.xlu0 %v654
        %v687 = vpop.xlane.xlu0 %686
        %688 = vadd.xlane.f32.xlu0 %v655
        %v689 = vpop.xlane.xlu0 %688
        %690 = vadd.xlane.f32.xlu0 %v656
        %v691 = vpop.xlane.xlu0 %690
        %692 = vadd.xlane.f32.xlu0 %v657
        %v693 = vpop.xlane.xlu0 %692
        %694 = vadd.xlane.f32.xlu0 %v658
        %v695 = vpop.xlane.xlu0 %694
        %696 = vadd.xlane.f32.xlu0 %v659
        %v697 = vpop.xlane.xlu0 %696
        %698 = vadd.xlane.f32.xlu0 %v660
        %v699 = vpop.xlane.xlu0 %698
        %700 = vadd.xlane.f32.xlu0 %v661
        %v701 = vpop.xlane.xlu0 %700
        %702 = vadd.xlane.f32.xlu0 %v662
        %v703 = vpop.xlane.xlu0 %702
        %704 = vadd.xlane.f32.xlu0 %v663
        %v705 = vpop.xlane.xlu0 %704
        %706 = vadd.xlane.f32.xlu0 %v664
        %v707 = vpop.xlane.xlu0 %706
        %708 = vadd.xlane.f32.xlu0 %v665
        %v709 = vpop.xlane.xlu0 %708
        %710 = vadd.xlane.f32.xlu0 %v666
        %v711 = vpop.xlane.xlu0 %710
        %712 = vadd.xlane.f32.xlu0 %v667
        %v713 = vpop.xlane.xlu0 %712
        %714 = vadd.xlane.f32.xlu0 %v668
        %v715 = vpop.xlane.xlu0 %714
        %716 = vadd.xlane.f32.xlu0 %v669
        %v717 = vpop.xlane.xlu0 %716
        %718 = vadd.xlane.f32.xlu0 %v670
        %v719 = vpop.xlane.xlu0 %718
        %720 = vadd.xlane.f32.xlu0 %v671
        %v721 = vpop.xlane.xlu0 %720
        %722 = vadd.xlane.f32.xlu0 %v672
        %v723 = vpop.xlane.xlu0 %722
        %724 = vadd.xlane.f32.xlu0 %v673
        %v725 = vpop.xlane.xlu0 %724
        %726 = vadd.xlane.f32.xlu0 %v674
        %v727 = vpop.xlane.xlu0 %726
        %728 = vadd.xlane.f32.xlu0 %v675
        %v729 = vpop.xlane.xlu0 %728
        %730 = vadd.xlane.f32.xlu0 %v676
        %v731 = vpop.xlane.xlu0 %730
        %732 = vadd.xlane.f32.xlu0 %v677
        %v733 = vpop.xlane.xlu0 %732
        %734 = vadd.xlane.f32.xlu0 %v678
        %v735 = vpop.xlane.xlu0 %734
        %736 = vadd.xlane.f32.xlu0 %v679
        %v737 = vpop.xlane.xlu0 %736
        %738 = vadd.xlane.f32.xlu0 %v680
        %v739 = vpop.xlane.xlu0 %738
        %740 = vadd.xlane.f32.xlu0 %v681
        %v741 = vpop.xlane.xlu0 %740
        %742 = vadd.xlane.f32.xlu0 %v682
        %v743 = vpop.xlane.xlu0 %742
        %744 = vadd.xlane.f32.xlu0 %v683
        %v745 = vpop.xlane.xlu0 %744
        %746 = vadd.xlane.f32.xlu0 %v684
        %v747 = vpop.xlane.xlu0 %746
        %748 = vadd.xlane.f32.xlu0 %v685
        %v749 = vpop.xlane.xlu0 %748
        %v750 = vmul.f32 %v687, %v589
        %v751 = vmul.f32 %v689, %v589
        %v752 = vmul.f32 %v691, %v589
        %v753 = vmul.f32 %v693, %v589
        %v754 = vmul.f32 %v695, %v589
        %v755 = vmul.f32 %v697, %v589
        %v756 = vmul.f32 %v699, %v589
        %v757 = vmul.f32 %v701, %v589
        %v758 = vmul.f32 %v703, %v589
        %v759 = vmul.f32 %v705, %v589
        %v760 = vmul.f32 %v707, %v589
        %v761 = vmul.f32 %v709, %v589
        %v762 = vmul.f32 %v711, %v589
        %v763 = vmul.f32 %v713, %v589
        %v764 = vmul.f32 %v715, %v589
        %v765 = vmul.f32 %v717, %v589
        %v766 = vmul.f32 %v719, %v589
        %v767 = vmul.f32 %v721, %v589
        %v768 = vmul.f32 %v723, %v589
        %v769 = vmul.f32 %v725, %v589
        %v770 = vmul.f32 %v727, %v589
        %v771 = vmul.f32 %v729, %v589
        %v772 = vmul.f32 %v731, %v589
        %v773 = vmul.f32 %v733, %v589
        %v774 = vmul.f32 %v735, %v589
        %v775 = vmul.f32 %v737, %v589
        %v776 = vmul.f32 %v739, %v589
        %v777 = vmul.f32 %v741, %v589
        %v778 = vmul.f32 %v743, %v589
        %v779 = vmul.f32 %v745, %v589
        %v780 = vmul.f32 %v747, %v589
        %v781 = vmul.f32 %v749, %v589
        %v782 = vadd.f32 %v750, 1e-05
        %v783 = vadd.f32 %v751, 1e-05
        %v784 = vadd.f32 %v752, 1e-05
        %v785 = vadd.f32 %v753, 1e-05
        %v786 = vadd.f32 %v754, 1e-05
        %v787 = vadd.f32 %v755, 1e-05
        %v788 = vadd.f32 %v756, 1e-05
        %v789 = vadd.f32 %v757, 1e-05
        %v790 = vadd.f32 %v758, 1e-05
        %v791 = vadd.f32 %v759, 1e-05
        %v792 = vadd.f32 %v760, 1e-05
        %v793 = vadd.f32 %v761, 1e-05
        %v794 = vadd.f32 %v762, 1e-05
        %v795 = vadd.f32 %v763, 1e-05
        %v796 = vadd.f32 %v764, 1e-05
        %v797 = vadd.f32 %v765, 1e-05
        %v798 = vadd.f32 %v766, 1e-05
        %v799 = vadd.f32 %v767, 1e-05
        %v800 = vadd.f32 %v768, 1e-05
        %v801 = vadd.f32 %v769, 1e-05
        %v802 = vadd.f32 %v770, 1e-05
        %v803 = vadd.f32 %v771, 1e-05
        %v804 = vadd.f32 %v772, 1e-05
        %v805 = vadd.f32 %v773, 1e-05
        %v806 = vadd.f32 %v774, 1e-05
        %v807 = vadd.f32 %v775, 1e-05
        %v808 = vadd.f32 %v776, 1e-05
        %v809 = vadd.f32 %v777, 1e-05
        %v810 = vadd.f32 %v778, 1e-05
        %v811 = vadd.f32 %v779, 1e-05
        %v812 = vadd.f32 %v780, 1e-05
        %v813 = vadd.f32 %v781, 1e-05
        %v814 = vrsqrt.pop %v782
        %v815 = vmul.f32 %v814, %v782
        %v816 = vmul.f32 %v815, %v814
        %v817 = vmul.f32 0.5, %v816
        %v818 = vsub.f32 1.5, %v817
        %v819 = vmul.f32 %v814, %v818
        %vm820 = vweird.f32 %v782
        %vm821 = vweird.f32 %v814
        %vm822 = vmor %vm820, %vm821
        %v823 = vsel %vm822, %v814, %v819
        %v824 = vrsqrt.pop %v783
        %v825 = vmul.f32 %v824, %v783
        %v826 = vmul.f32 %v825, %v824
        %v827 = vmul.f32 0.5, %v826
        %v828 = vsub.f32 1.5, %v827
        %v829 = vmul.f32 %v824, %v828
        %vm830 = vweird.f32 %v783
        %vm831 = vweird.f32 %v824
        %vm832 = vmor %vm830, %vm831
        %v833 = vsel %vm832, %v824, %v829
        %v834 = vrsqrt.pop %v784
        %v835 = vmul.f32 %v834, %v784
        %v836 = vmul.f32 %v835, %v834
        %v837 = vmul.f32 0.5, %v836
        %v838 = vsub.f32 1.5, %v837
        %v839 = vmul.f32 %v834, %v838
        %vm840 = vweird.f32 %v784
        %vm841 = vweird.f32 %v834
        %vm842 = vmor %vm840, %vm841
        %v843 = vsel %vm842, %v834, %v839
        %v844 = vrsqrt.pop %v785
        %v845 = vmul.f32 %v844, %v785
        %v846 = vmul.f32 %v845, %v844
        %v847 = vmul.f32 0.5, %v846
        %v848 = vsub.f32 1.5, %v847
        %v849 = vmul.f32 %v844, %v848
        %vm850 = vweird.f32 %v785
        %vm851 = vweird.f32 %v844
        %vm852 = vmor %vm850, %vm851
        %v853 = vsel %vm852, %v844, %v849
        %v854 = vrsqrt.pop %v786
        %v855 = vmul.f32 %v854, %v786
        %v856 = vmul.f32 %v855, %v854
        %v857 = vmul.f32 0.5, %v856
        %v858 = vsub.f32 1.5, %v857
        %v859 = vmul.f32 %v854, %v858
        %vm860 = vweird.f32 %v786
        %vm861 = vweird.f32 %v854
        %vm862 = vmor %vm860, %vm861
        %v863 = vsel %vm862, %v854, %v859
        %v864 = vrsqrt.pop %v787
        %v865 = vmul.f32 %v864, %v787
        %v866 = vmul.f32 %v865, %v864
        %v867 = vmul.f32 0.5, %v866
        %v868 = vsub.f32 1.5, %v867
        %v869 = vmul.f32 %v864, %v868
        %vm870 = vweird.f32 %v787
        %vm871 = vweird.f32 %v864
        %vm872 = vmor %vm870, %vm871
        %v873 = vsel %vm872, %v864, %v869
        %v874 = vrsqrt.pop %v788
        %v875 = vmul.f32 %v874, %v788
        %v876 = vmul.f32 %v875, %v874
        %v877 = vmul.f32 0.5, %v876
        %v878 = vsub.f32 1.5, %v877
        %v879 = vmul.f32 %v874, %v878
        %vm880 = vweird.f32 %v788
        %vm881 = vweird.f32 %v874
        %vm882 = vmor %vm880, %vm881
        %v883 = vsel %vm882, %v874, %v879
        %v884 = vrsqrt.pop %v789
        %v885 = vmul.f32 %v884, %v789
        %v886 = vmul.f32 %v885, %v884
        %v887 = vmul.f32 0.5, %v886
        %v888 = vsub.f32 1.5, %v887
        %v889 = vmul.f32 %v884, %v888
        %vm890 = vweird.f32 %v789
        %vm891 = vweird.f32 %v884
        %vm892 = vmor %vm890, %vm891
        %v893 = vsel %vm892, %v884, %v889
        %v894 = vrsqrt.pop %v790
        %v895 = vmul.f32 %v894, %v790
        %v896 = vmul.f32 %v895, %v894
        %v897 = vmul.f32 0.5, %v896
        %v898 = vsub.f32 1.5, %v897
        %v899 = vmul.f32 %v894, %v898
        %vm900 = vweird.f32 %v790
        %vm901 = vweird.f32 %v894
        %vm902 = vmor %vm900, %vm901
        %v903 = vsel %vm902, %v894, %v899
        %v904 = vrsqrt.pop %v791
        %v905 = vmul.f32 %v904, %v791
        %v906 = vmul.f32 %v905, %v904
        %v907 = vmul.f32 0.5, %v906
        %v908 = vsub.f32 1.5, %v907
        %v909 = vmul.f32 %v904, %v908
        %vm910 = vweird.f32 %v791
        %vm911 = vweird.f32 %v904
        %vm912 = vmor %vm910, %vm911
        %v913 = vsel %vm912, %v904, %v909
        %v914 = vrsqrt.pop %v792
        %v915 = vmul.f32 %v914, %v792
        %v916 = vmul.f32 %v915, %v914
        %v917 = vmul.f32 0.5, %v916
        %v918 = vsub.f32 1.5, %v917
        %v919 = vmul.f32 %v914, %v918
        %vm920 = vweird.f32 %v792
        %vm921 = vweird.f32 %v914
        %vm922 = vmor %vm920, %vm921
        %v923 = vsel %vm922, %v914, %v919
        %v924 = vrsqrt.pop %v793
        %v925 = vmul.f32 %v924, %v793
        %v926 = vmul.f32 %v925, %v924
        %v927 = vmul.f32 0.5, %v926
        %v928 = vsub.f32 1.5, %v927
        %v929 = vmul.f32 %v924, %v928
        %vm930 = vweird.f32 %v793
        %vm931 = vweird.f32 %v924
        %vm932 = vmor %vm930, %vm931
        %v933 = vsel %vm932, %v924, %v929
        %v934 = vrsqrt.pop %v794
        %v935 = vmul.f32 %v934, %v794
        %v936 = vmul.f32 %v935, %v934
        %v937 = vmul.f32 0.5, %v936
        %v938 = vsub.f32 1.5, %v937
        %v939 = vmul.f32 %v934, %v938
        %vm940 = vweird.f32 %v794
        %vm941 = vweird.f32 %v934
        %vm942 = vmor %vm940, %vm941
        %v943 = vsel %vm942, %v934, %v939
        %v944 = vrsqrt.pop %v795
        %v945 = vmul.f32 %v944, %v795
        %v946 = vmul.f32 %v945, %v944
        %v947 = vmul.f32 0.5, %v946
        %v948 = vsub.f32 1.5, %v947
        %v949 = vmul.f32 %v944, %v948
        %vm950 = vweird.f32 %v795
        %vm951 = vweird.f32 %v944
        %vm952 = vmor %vm950, %vm951
        %v953 = vsel %vm952, %v944, %v949
        %v954 = vrsqrt.pop %v796
        %v955 = vmul.f32 %v954, %v796
        %v956 = vmul.f32 %v955, %v954
        %v957 = vmul.f32 0.5, %v956
        %v958 = vsub.f32 1.5, %v957
        %v959 = vmul.f32 %v954, %v958
        %vm960 = vweird.f32 %v796
        %vm961 = vweird.f32 %v954
        %vm962 = vmor %vm960, %vm961
        %v963 = vsel %vm962, %v954, %v959
        %v964 = vrsqrt.pop %v797
        %v965 = vmul.f32 %v964, %v797
        %v966 = vmul.f32 %v965, %v964
        %v967 = vmul.f32 0.5, %v966
        %v968 = vsub.f32 1.5, %v967
        %v969 = vmul.f32 %v964, %v968
        %vm970 = vweird.f32 %v797
        %vm971 = vweird.f32 %v964
        %vm972 = vmor %vm970, %vm971
        %v973 = vsel %vm972, %v964, %v969
        %v974 = vrsqrt.pop %v798
        %v975 = vmul.f32 %v974, %v798
        %v976 = vmul.f32 %v975, %v974
        %v977 = vmul.f32 0.5, %v976
        %v978 = vsub.f32 1.5, %v977
        %v979 = vmul.f32 %v974, %v978
        %vm980 = vweird.f32 %v798
        %vm981 = vweird.f32 %v974
        %vm982 = vmor %vm980, %vm981
        %v983 = vsel %vm982, %v974, %v979
        %v984 = vrsqrt.pop %v799
        %v985 = vmul.f32 %v984, %v799
        %v986 = vmul.f32 %v985, %v984
        %v987 = vmul.f32 0.5, %v986
        %v988 = vsub.f32 1.5, %v987
        %v989 = vmul.f32 %v984, %v988
        %vm990 = vweird.f32 %v799
        %vm991 = vweird.f32 %v984
        %vm992 = vmor %vm990, %vm991
        %v993 = vsel %vm992, %v984, %v989
        %v994 = vrsqrt.pop %v800
        %v995 = vmul.f32 %v994, %v800
        %v996 = vmul.f32 %v995, %v994
        %v997 = vmul.f32 0.5, %v996
        %v998 = vsub.f32 1.5, %v997
        %v999 = vmul.f32 %v994, %v998
        %vm1000 = vweird.f32 %v800
        %vm1001 = vweird.f32 %v994
        %vm1002 = vmor %vm1000, %vm1001
        %v1003 = vsel %vm1002, %v994, %v999
        %v1004 = vrsqrt.pop %v801
        %v1005 = vmul.f32 %v1004, %v801
        %v1006 = vmul.f32 %v1005, %v1004
        %v1007 = vmul.f32 0.5, %v1006
        %v1008 = vsub.f32 1.5, %v1007
        %v1009 = vmul.f32 %v1004, %v1008
        %vm1010 = vweird.f32 %v801
        %vm1011 = vweird.f32 %v1004
        %vm1012 = vmor %vm1010, %vm1011
        %v1013 = vsel %vm1012, %v1004, %v1009
        %v1014 = vrsqrt.pop %v802
        %v1015 = vmul.f32 %v1014, %v802
        %v1016 = vmul.f32 %v1015, %v1014
        %v1017 = vmul.f32 0.5, %v1016
        %v1018 = vsub.f32 1.5, %v1017
        %v1019 = vmul.f32 %v1014, %v1018
        %vm1020 = vweird.f32 %v802
        %vm1021 = vweird.f32 %v1014
        %vm1022 = vmor %vm1020, %vm1021
        %v1023 = vsel %vm1022, %v1014, %v1019
        %v1024 = vrsqrt.pop %v803
        %v1025 = vmul.f32 %v1024, %v803
        %v1026 = vmul.f32 %v1025, %v1024
        %v1027 = vmul.f32 0.5, %v1026
        %v1028 = vsub.f32 1.5, %v1027
        %v1029 = vmul.f32 %v1024, %v1028
        %vm1030 = vweird.f32 %v803
        %vm1031 = vweird.f32 %v1024
        %vm1032 = vmor %vm1030, %vm1031
        %v1033 = vsel %vm1032, %v1024, %v1029
        %v1034 = vrsqrt.pop %v804
        %v1035 = vmul.f32 %v1034, %v804
        %v1036 = vmul.f32 %v1035, %v1034
        %v1037 = vmul.f32 0.5, %v1036
        %v1038 = vsub.f32 1.5, %v1037
        %v1039 = vmul.f32 %v1034, %v1038
        %vm1040 = vweird.f32 %v804
        %vm1041 = vweird.f32 %v1034
        %vm1042 = vmor %vm1040, %vm1041
        %v1043 = vsel %vm1042, %v1034, %v1039
        %v1044 = vrsqrt.pop %v805
        %v1045 = vmul.f32 %v1044, %v805
        %v1046 = vmul.f32 %v1045, %v1044
        %v1047 = vmul.f32 0.5, %v1046
        %v1048 = vsub.f32 1.5, %v1047
        %v1049 = vmul.f32 %v1044, %v1048
        %vm1050 = vweird.f32 %v805
        %vm1051 = vweird.f32 %v1044
        %vm1052 = vmor %vm1050, %vm1051
        %v1053 = vsel %vm1052, %v1044, %v1049
        %v1054 = vrsqrt.pop %v806
        %v1055 = vmul.f32 %v1054, %v806
        %v1056 = vmul.f32 %v1055, %v1054
        %v1057 = vmul.f32 0.5, %v1056
        %v1058 = vsub.f32 1.5, %v1057
        %v1059 = vmul.f32 %v1054, %v1058
        %vm1060 = vweird.f32 %v806
        %vm1061 = vweird.f32 %v1054
        %vm1062 = vmor %vm1060, %vm1061
        %v1063 = vsel %vm1062, %v1054, %v1059
        %v1064 = vrsqrt.pop %v807
        %v1065 = vmul.f32 %v1064, %v807
        %v1066 = vmul.f32 %v1065, %v1064
        %v1067 = vmul.f32 0.5, %v1066
        %v1068 = vsub.f32 1.5, %v1067
        %v1069 = vmul.f32 %v1064, %v1068
        %vm1070 = vweird.f32 %v807
        %vm1071 = vweird.f32 %v1064
        %vm1072 = vmor %vm1070, %vm1071
        %v1073 = vsel %vm1072, %v1064, %v1069
        %v1074 = vrsqrt.pop %v808
        %v1075 = vmul.f32 %v1074, %v808
        %v1076 = vmul.f32 %v1075, %v1074
        %v1077 = vmul.f32 0.5, %v1076
        %v1078 = vsub.f32 1.5, %v1077
        %v1079 = vmul.f32 %v1074, %v1078
        %vm1080 = vweird.f32 %v808
        %vm1081 = vweird.f32 %v1074
        %vm1082 = vmor %vm1080, %vm1081
        %v1083 = vsel %vm1082, %v1074, %v1079
        %v1084 = vrsqrt.pop %v809
        %v1085 = vmul.f32 %v1084, %v809
        %v1086 = vmul.f32 %v1085, %v1084
        %v1087 = vmul.f32 0.5, %v1086
        %v1088 = vsub.f32 1.5, %v1087
        %v1089 = vmul.f32 %v1084, %v1088
        %vm1090 = vweird.f32 %v809
        %vm1091 = vweird.f32 %v1084
        %vm1092 = vmor %vm1090, %vm1091
        %v1093 = vsel %vm1092, %v1084, %v1089
        %v1094 = vrsqrt.pop %v810
        %v1095 = vmul.f32 %v1094, %v810
        %v1096 = vmul.f32 %v1095, %v1094
        %v1097 = vmul.f32 0.5, %v1096
        %v1098 = vsub.f32 1.5, %v1097
        %v1099 = vmul.f32 %v1094, %v1098
        %vm1100 = vweird.f32 %v810
        %vm1101 = vweird.f32 %v1094
        %vm1102 = vmor %vm1100, %vm1101
        %v1103 = vsel %vm1102, %v1094, %v1099
        %v1104 = vrsqrt.pop %v811
        %v1105 = vmul.f32 %v1104, %v811
        %v1106 = vmul.f32 %v1105, %v1104
        %v1107 = vmul.f32 0.5, %v1106
        %v1108 = vsub.f32 1.5, %v1107
        %v1109 = vmul.f32 %v1104, %v1108
        %vm1110 = vweird.f32 %v811
        %vm1111 = vweird.f32 %v1104
        %vm1112 = vmor %vm1110, %vm1111
        %v1113 = vsel %vm1112, %v1104, %v1109
        %v1114 = vrsqrt.pop %v812
        %v1115 = vmul.f32 %v1114, %v812
        %v1116 = vmul.f32 %v1115, %v1114
        %v1117 = vmul.f32 0.5, %v1116
        %v1118 = vsub.f32 1.5, %v1117
        %v1119 = vmul.f32 %v1114, %v1118
        %vm1120 = vweird.f32 %v812
        %vm1121 = vweird.f32 %v1114
        %vm1122 = vmor %vm1120, %vm1121
        %v1123 = vsel %vm1122, %v1114, %v1119
        %v1124 = vrsqrt.pop %v813
        %v1125 = vmul.f32 %v1124, %v813
        %v1126 = vmul.f32 %v1125, %v1124
        %v1127 = vmul.f32 0.5, %v1126
        %v1128 = vsub.f32 1.5, %v1127
        %v1129 = vmul.f32 %v1124, %v1128
        %vm1130 = vweird.f32 %v813
        %vm1131 = vweird.f32 %v1124
        %vm1132 = vmor %vm1130, %vm1131
        %v1133 = vsel %vm1132, %v1124, %v1129
        %v1134 = vmul.f32 %v622, %v823
        %v1135 = vmul.f32 %v623, %v833
        %v1136 = vmul.f32 %v624, %v843
        %v1137 = vmul.f32 %v625, %v853
        %v1138 = vmul.f32 %v626, %v863
        %v1139 = vmul.f32 %v627, %v873
        %v1140 = vmul.f32 %v628, %v883
        %v1141 = vmul.f32 %v629, %v893
        %v1142 = vmul.f32 %v630, %v903
        %v1143 = vmul.f32 %v631, %v913
        %v1144 = vmul.f32 %v632, %v923
        %v1145 = vmul.f32 %v633, %v933
        %v1146 = vmul.f32 %v634, %v943
        %v1147 = vmul.f32 %v635, %v953
        %v1148 = vmul.f32 %v636, %v963
        %v1149 = vmul.f32 %v637, %v973
        %v1150 = vmul.f32 %v638, %v983
        %v1151 = vmul.f32 %v639, %v993
        %v1152 = vmul.f32 %v640, %v1003
        %v1153 = vmul.f32 %v641, %v1013
        %v1154 = vmul.f32 %v642, %v1023
        %v1155 = vmul.f32 %v643, %v1033
        %v1156 = vmul.f32 %v644, %v1043
        %v1157 = vmul.f32 %v645, %v1053
        %v1158 = vmul.f32 %v646, %v1063
        %v1159 = vmul.f32 %v647, %v1073
        %v1160 = vmul.f32 %v648, %v1083
        %v1161 = vmul.f32 %v649, %v1093
        %v1162 = vmul.f32 %v650, %v1103
        %v1163 = vmul.f32 %v651, %v1113
        %v1164 = vmul.f32 %v652, %v1123
        %v1165 = vmul.f32 %v653, %v1133
        %v1166 = vld [vmem:[%s2] sm:$0x1]
        %v1168 = vperm.slane %v1166, 0
        %v1170 = vmul.f32 %v1134, %v1168
        %v1171 = vmul.f32 %v1135, %v1168
        %v1172 = vmul.f32 %v1136, %v1168
        %v1173 = vmul.f32 %v1137, %v1168
        %v1174 = vmul.f32 %v1138, %v1168
        %v1175 = vmul.f32 %v1139, %v1168
        %v1176 = vmul.f32 %v1140, %v1168
        %v1177 = vmul.f32 %v1141, %v1168
        %v1178 = vmul.f32 %v1142, %v1168
        %v1179 = vmul.f32 %v1143, %v1168
        %v1180 = vmul.f32 %v1144, %v1168
        %v1181 = vmul.f32 %v1145, %v1168
        %v1182 = vmul.f32 %v1146, %v1168
        %v1183 = vmul.f32 %v1147, %v1168
        %v1184 = vmul.f32 %v1148, %v1168
        %v1185 = vmul.f32 %v1149, %v1168
        %v1186 = vmul.f32 %v1150, %v1168
        %v1187 = vmul.f32 %v1151, %v1168
        %v1188 = vmul.f32 %v1152, %v1168
        %v1189 = vmul.f32 %v1153, %v1168
        %v1190 = vmul.f32 %v1154, %v1168
        %v1191 = vmul.f32 %v1155, %v1168
        %v1192 = vmul.f32 %v1156, %v1168
        %v1193 = vmul.f32 %v1157, %v1168
        %v1194 = vmul.f32 %v1158, %v1168
        %v1195 = vmul.f32 %v1159, %v1168
        %v1196 = vmul.f32 %v1160, %v1168
        %v1197 = vmul.f32 %v1161, %v1168
        %v1198 = vmul.f32 %v1162, %v1168
        %v1199 = vmul.f32 %v1163, %v1168
        %v1200 = vmul.f32 %v1164, %v1168
        %v1201 = vmul.f32 %v1165, %v1168
        %v1202 = vld [vmem:[%s3] sm:$0x1]
        %v1204 = vperm.slane %v1202, 0
        %v1206 = vadd.f32 %v1170, %v1204
        %v1207 = vadd.f32 %v1171, %v1204
        %v1208 = vadd.f32 %v1172, %v1204
        %v1209 = vadd.f32 %v1173, %v1204
        %v1210 = vadd.f32 %v1174, %v1204
        %v1211 = vadd.f32 %v1175, %v1204
        %v1212 = vadd.f32 %v1176, %v1204
        %v1213 = vadd.f32 %v1177, %v1204
        %v1214 = vadd.f32 %v1178, %v1204
        %v1215 = vadd.f32 %v1179, %v1204
        %v1216 = vadd.f32 %v1180, %v1204
        %v1217 = vadd.f32 %v1181, %v1204
        %v1218 = vadd.f32 %v1182, %v1204
        %v1219 = vadd.f32 %v1183, %v1204
        %v1220 = vadd.f32 %v1184, %v1204
        %v1221 = vadd.f32 %v1185, %v1204
        %v1222 = vadd.f32 %v1186, %v1204
        %v1223 = vadd.f32 %v1187, %v1204
        %v1224 = vadd.f32 %v1188, %v1204
        %v1225 = vadd.f32 %v1189, %v1204
        %v1226 = vadd.f32 %v1190, %v1204
        %v1227 = vadd.f32 %v1191, %v1204
        %v1228 = vadd.f32 %v1192, %v1204
        %v1229 = vadd.f32 %v1193, %v1204
        %v1230 = vadd.f32 %v1194, %v1204
        %v1231 = vadd.f32 %v1195, %v1204
        %v1232 = vadd.f32 %v1196, %v1204
        %v1233 = vadd.f32 %v1197, %v1204
        %v1234 = vadd.f32 %v1198, %v1204
        %v1235 = vadd.f32 %v1199, %v1204
        %v1236 = vadd.f32 %v1200, %v1204
        %v1237 = vadd.f32 %v1201, %v1204
        %v1238 = vld [vmem:[%s421] sm:$0xff]
        %v1239 = vld [vmem:[%s421 + $0x8] sm:$0xff]
        %v1240 = vld [vmem:[%s421 + $0x10] sm:$0xff]
        %v1241 = vld [vmem:[%s421 + $0x18] sm:$0xff]
        %v1242 = vld [vmem:[%s421 + $0x20] sm:$0xff]
        %v1243 = vld [vmem:[%s421 + $0x28] sm:$0xff]
        %v1244 = vld [vmem:[%s421 + $0x30] sm:$0xff]
        %v1245 = vld [vmem:[%s421 + $0x38] sm:$0xff]
        %v1246 = vld [vmem:[%s421 + $0x40] sm:$0xff]
        %v1247 = vld [vmem:[%s421 + $0x48] sm:$0xff]
        %v1248 = vld [vmem:[%s421 + $0x50] sm:$0xff]
        %v1249 = vld [vmem:[%s421 + $0x58] sm:$0xff]
        %v1250 = vld [vmem:[%s421 + $0x60] sm:$0xff]
        %v1251 = vld [vmem:[%s421 + $0x68] sm:$0xff]
        %v1252 = vld [vmem:[%s421 + $0x70] sm:$0xff]
        %v1253 = vld [vmem:[%s421 + $0x78] sm:$0xff]
        %v1254 = vld [vmem:[%s421 + $0x80] sm:$0xff]
        %v1255 = vld [vmem:[%s421 + $0x88] sm:$0xff]
        %v1256 = vld [vmem:[%s421 + $0x90] sm:$0xff]
        %v1257 = vld [vmem:[%s421 + $0x98] sm:$0xff]
        %v1258 = vld [vmem:[%s421 + $0xa0] sm:$0xff]
        %v1259 = vld [vmem:[%s421 + $0xa8] sm:$0xff]
        %v1260 = vld [vmem:[%s421 + $0xb0] sm:$0xff]
        %v1261 = vld [vmem:[%s421 + $0xb8] sm:$0xff]
        %v1262 = vld [vmem:[%s421 + $0xc0] sm:$0xff]
        %v1263 = vld [vmem:[%s421 + $0xc8] sm:$0xff]
        %v1264 = vld [vmem:[%s421 + $0xd0] sm:$0xff]
        %v1265 = vld [vmem:[%s421 + $0xd8] sm:$0xff]
        %v1266 = vld [vmem:[%s421 + $0xe0] sm:$0xff]
        %v1267 = vld [vmem:[%s421 + $0xe8] sm:$0xff]
        %v1268 = vld [vmem:[%s421 + $0xf0] sm:$0xff]
        %v1269 = vld [vmem:[%s421 + $0xf8] sm:$0xff]
        %v1270 = vadd.f32 %v1206, %v1238
        %v1271 = vadd.f32 %v1207, %v1239
        %v1272 = vadd.f32 %v1208, %v1240
        %v1273 = vadd.f32 %v1209, %v1241
        %v1274 = vadd.f32 %v1210, %v1242
        %v1275 = vadd.f32 %v1211, %v1243
        %v1276 = vadd.f32 %v1212, %v1244
        %v1277 = vadd.f32 %v1213, %v1245
        %v1278 = vadd.f32 %v1214, %v1246
        %v1279 = vadd.f32 %v1215, %v1247
        %v1280 = vadd.f32 %v1216, %v1248
        %v1281 = vadd.f32 %v1217, %v1249
        %v1282 = vadd.f32 %v1218, %v1250
        %v1283 = vadd.f32 %v1219, %v1251
        %v1284 = vadd.f32 %v1220, %v1252
        %v1285 = vadd.f32 %v1221, %v1253
        %v1286 = vadd.f32 %v1222, %v1254
        %v1287 = vadd.f32 %v1223, %v1255
        %v1288 = vadd.f32 %v1224, %v1256
        %v1289 = vadd.f32 %v1225, %v1257
        %v1290 = vadd.f32 %v1226, %v1258
        %v1291 = vadd.f32 %v1227, %v1259
        %v1292 = vadd.f32 %v1228, %v1260
        %v1293 = vadd.f32 %v1229, %v1261
        %v1294 = vadd.f32 %v1230, %v1262
        %v1295 = vadd.f32 %v1231, %v1263
        %v1296 = vadd.f32 %v1232, %v1264
        %v1297 = vadd.f32 %v1233, %v1265
        %v1298 = vadd.f32 %v1234, %v1266
        %v1299 = vadd.f32 %v1235, %v1267
        %v1300 = vadd.f32 %v1236, %v1268
        %v1301 = vadd.f32 %v1237, %v1269
        %1302 = vadd.xlane.f32.xlu0 %v1270
        %v1303 = vpop.xlane.xlu0 %1302
        %1304 = vadd.xlane.f32.xlu0 %v1271
        %v1305 = vpop.xlane.xlu0 %1304
        %1306 = vadd.xlane.f32.xlu0 %v1272
        %v1307 = vpop.xlane.xlu0 %1306
        %1308 = vadd.xlane.f32.xlu0 %v1273
        %v1309 = vpop.xlane.xlu0 %1308
        %1310 = vadd.xlane.f32.xlu0 %v1274
        %v1311 = vpop.xlane.xlu0 %1310
        %1312 = vadd.xlane.f32.xlu0 %v1275
        %v1313 = vpop.xlane.xlu0 %1312
        %1314 = vadd.xlane.f32.xlu0 %v1276
        %v1315 = vpop.xlane.xlu0 %1314
        %1316 = vadd.xlane.f32.xlu0 %v1277
        %v1317 = vpop.xlane.xlu0 %1316
        %1318 = vadd.xlane.f32.xlu0 %v1278
        %v1319 = vpop.xlane.xlu0 %1318
        %1320 = vadd.xlane.f32.xlu0 %v1279
        %v1321 = vpop.xlane.xlu0 %1320
        %1322 = vadd.xlane.f32.xlu0 %v1280
        %v1323 = vpop.xlane.xlu0 %1322
        %1324 = vadd.xlane.f32.xlu0 %v1281
        %v1325 = vpop.xlane.xlu0 %1324
        %1326 = vadd.xlane.f32.xlu0 %v1282
        %v1327 = vpop.xlane.xlu0 %1326
        %1328 = vadd.xlane.f32.xlu0 %v1283
        %v1329 = vpop.xlane.xlu0 %1328
        %1330 = vadd.xlane.f32.xlu0 %v1284
        %v1331 = vpop.xlane.xlu0 %1330
        %1332 = vadd.xlane.f32.xlu0 %v1285
        %v1333 = vpop.xlane.xlu0 %1332
        %1334 = vadd.xlane.f32.xlu0 %v1286
        %v1335 = vpop.xlane.xlu0 %1334
        %1336 = vadd.xlane.f32.xlu0 %v1287
        %v1337 = vpop.xlane.xlu0 %1336
        %1338 = vadd.xlane.f32.xlu0 %v1288
        %v1339 = vpop.xlane.xlu0 %1338
        %1340 = vadd.xlane.f32.xlu0 %v1289
        %v1341 = vpop.xlane.xlu0 %1340
        %1342 = vadd.xlane.f32.xlu0 %v1290
        %v1343 = vpop.xlane.xlu0 %1342
        %1344 = vadd.xlane.f32.xlu0 %v1291
        %v1345 = vpop.xlane.xlu0 %1344
        %1346 = vadd.xlane.f32.xlu0 %v1292
        %v1347 = vpop.xlane.xlu0 %1346
        %1348 = vadd.xlane.f32.xlu0 %v1293
        %v1349 = vpop.xlane.xlu0 %1348
        %1350 = vadd.xlane.f32.xlu0 %v1294
        %v1351 = vpop.xlane.xlu0 %1350
        %1352 = vadd.xlane.f32.xlu0 %v1295
        %v1353 = vpop.xlane.xlu0 %1352
        %1354 = vadd.xlane.f32.xlu0 %v1296
        %v1355 = vpop.xlane.xlu0 %1354
        %1356 = vadd.xlane.f32.xlu0 %v1297
        %v1357 = vpop.xlane.xlu0 %1356
        %1358 = vadd.xlane.f32.xlu0 %v1298
        %v1359 = vpop.xlane.xlu0 %1358
        %1360 = vadd.xlane.f32.xlu0 %v1299
        %v1361 = vpop.xlane.xlu0 %1360
        %1362 = vadd.xlane.f32.xlu0 %v1300
        %v1363 = vpop.xlane.xlu0 %1362
        %1364 = vadd.xlane.f32.xlu0 %v1301
        %v1365 = vpop.xlane.xlu0 %1364
        %v1366 = vmul.f32 %v1303, %v589
        %v1367 = vmul.f32 %v1305, %v589
        %v1368 = vmul.f32 %v1307, %v589
        %v1369 = vmul.f32 %v1309, %v589
        %v1370 = vmul.f32 %v1311, %v589
        %v1371 = vmul.f32 %v1313, %v589
        %v1372 = vmul.f32 %v1315, %v589
        %v1373 = vmul.f32 %v1317, %v589
        %v1374 = vmul.f32 %v1319, %v589
        %v1375 = vmul.f32 %v1321, %v589
        %v1376 = vmul.f32 %v1323, %v589
        %v1377 = vmul.f32 %v1325, %v589
        %v1378 = vmul.f32 %v1327, %v589
        %v1379 = vmul.f32 %v1329, %v589
        %v1380 = vmul.f32 %v1331, %v589
        %v1381 = vmul.f32 %v1333, %v589
        %v1382 = vmul.f32 %v1335, %v589
        %v1383 = vmul.f32 %v1337, %v589
        %v1384 = vmul.f32 %v1339, %v589
        %v1385 = vmul.f32 %v1341, %v589
        %v1386 = vmul.f32 %v1343, %v589
        %v1387 = vmul.f32 %v1345, %v589
        %v1388 = vmul.f32 %v1347, %v589
        %v1389 = vmul.f32 %v1349, %v589
        %v1390 = vmul.f32 %v1351, %v589
        %v1391 = vmul.f32 %v1353, %v589
        %v1392 = vmul.f32 %v1355, %v589
        %v1393 = vmul.f32 %v1357, %v589
        %v1394 = vmul.f32 %v1359, %v589
        %v1395 = vmul.f32 %v1361, %v589
        %v1396 = vmul.f32 %v1363, %v589
        %v1397 = vmul.f32 %v1365, %v589
        %v1398 = vsub.f32 %v1270, %v1366
        %v1399 = vsub.f32 %v1271, %v1367
        %v1400 = vsub.f32 %v1272, %v1368
        %v1401 = vsub.f32 %v1273, %v1369
        %v1402 = vsub.f32 %v1274, %v1370
        %v1403 = vsub.f32 %v1275, %v1371
        %v1404 = vsub.f32 %v1276, %v1372
        %v1405 = vsub.f32 %v1277, %v1373
        %v1406 = vsub.f32 %v1278, %v1374
        %v1407 = vsub.f32 %v1279, %v1375
        %v1408 = vsub.f32 %v1280, %v1376
        %v1409 = vsub.f32 %v1281, %v1377
        %v1410 = vsub.f32 %v1282, %v1378
        %v1411 = vsub.f32 %v1283, %v1379
        %v1412 = vsub.f32 %v1284, %v1380
        %v1413 = vsub.f32 %v1285, %v1381
        %v1414 = vsub.f32 %v1286, %v1382
        %v1415 = vsub.f32 %v1287, %v1383
        %v1416 = vsub.f32 %v1288, %v1384
        %v1417 = vsub.f32 %v1289, %v1385
        %v1418 = vsub.f32 %v1290, %v1386
        %v1419 = vsub.f32 %v1291, %v1387
        %v1420 = vsub.f32 %v1292, %v1388
        %v1421 = vsub.f32 %v1293, %v1389
        %v1422 = vsub.f32 %v1294, %v1390
        %v1423 = vsub.f32 %v1295, %v1391
        %v1424 = vsub.f32 %v1296, %v1392
        %v1425 = vsub.f32 %v1297, %v1393
        %v1426 = vsub.f32 %v1298, %v1394
        %v1427 = vsub.f32 %v1299, %v1395
        %v1428 = vsub.f32 %v1300, %v1396
        %v1429 = vsub.f32 %v1301, %v1397
        %v1430 = vmul.f32 %v1398, %v1398
        %v1431 = vmul.f32 %v1399, %v1399
        %v1432 = vmul.f32 %v1400, %v1400
        %v1433 = vmul.f32 %v1401, %v1401
        %v1434 = vmul.f32 %v1402, %v1402
        %v1435 = vmul.f32 %v1403, %v1403
        %v1436 = vmul.f32 %v1404, %v1404
        %v1437 = vmul.f32 %v1405, %v1405
        %v1438 = vmul.f32 %v1406, %v1406
        %v1439 = vmul.f32 %v1407, %v1407
        %v1440 = vmul.f32 %v1408, %v1408
        %v1441 = vmul.f32 %v1409, %v1409
        %v1442 = vmul.f32 %v1410, %v1410
        %v1443 = vmul.f32 %v1411, %v1411
        %v1444 = vmul.f32 %v1412, %v1412
        %v1445 = vmul.f32 %v1413, %v1413
        %v1446 = vmul.f32 %v1414, %v1414
        %v1447 = vmul.f32 %v1415, %v1415
        %v1448 = vmul.f32 %v1416, %v1416
        %v1449 = vmul.f32 %v1417, %v1417
        %v1450 = vmul.f32 %v1418, %v1418
        %v1451 = vmul.f32 %v1419, %v1419
        %v1452 = vmul.f32 %v1420, %v1420
        %v1453 = vmul.f32 %v1421, %v1421
        %v1454 = vmul.f32 %v1422, %v1422
        %v1455 = vmul.f32 %v1423, %v1423
        %v1456 = vmul.f32 %v1424, %v1424
        %v1457 = vmul.f32 %v1425, %v1425
        %v1458 = vmul.f32 %v1426, %v1426
        %v1459 = vmul.f32 %v1427, %v1427
        %v1460 = vmul.f32 %v1428, %v1428
        %v1461 = vmul.f32 %v1429, %v1429
        %1462 = vadd.xlane.f32.xlu0 %v1430
        %v1463 = vpop.xlane.xlu0 %1462
        %1464 = vadd.xlane.f32.xlu0 %v1431
        %v1465 = vpop.xlane.xlu0 %1464
        %1466 = vadd.xlane.f32.xlu0 %v1432
        %v1467 = vpop.xlane.xlu0 %1466
        %1468 = vadd.xlane.f32.xlu0 %v1433
        %v1469 = vpop.xlane.xlu0 %1468
        %1470 = vadd.xlane.f32.xlu0 %v1434
        %v1471 = vpop.xlane.xlu0 %1470
        %1472 = vadd.xlane.f32.xlu0 %v1435
        %v1473 = vpop.xlane.xlu0 %1472
        %1474 = vadd.xlane.f32.xlu0 %v1436
        %v1475 = vpop.xlane.xlu0 %1474
        %1476 = vadd.xlane.f32.xlu0 %v1437
        %v1477 = vpop.xlane.xlu0 %1476
        %1478 = vadd.xlane.f32.xlu0 %v1438
        %v1479 = vpop.xlane.xlu0 %1478
        %1480 = vadd.xlane.f32.xlu0 %v1439
        %v1481 = vpop.xlane.xlu0 %1480
        %1482 = vadd.xlane.f32.xlu0 %v1440
        %v1483 = vpop.xlane.xlu0 %1482
        %1484 = vadd.xlane.f32.xlu0 %v1441
        %v1485 = vpop.xlane.xlu0 %1484
        %1486 = vadd.xlane.f32.xlu0 %v1442
        %v1487 = vpop.xlane.xlu0 %1486
        %1488 = vadd.xlane.f32.xlu0 %v1443
        %v1489 = vpop.xlane.xlu0 %1488
        %1490 = vadd.xlane.f32.xlu0 %v1444
        %v1491 = vpop.xlane.xlu0 %1490
        %1492 = vadd.xlane.f32.xlu0 %v1445
        %v1493 = vpop.xlane.xlu0 %1492
        %1494 = vadd.xlane.f32.xlu0 %v1446
        %v1495 = vpop.xlane.xlu0 %1494
        %1496 = vadd.xlane.f32.xlu0 %v1447
        %v1497 = vpop.xlane.xlu0 %1496
        %1498 = vadd.xlane.f32.xlu0 %v1448
        %v1499 = vpop.xlane.xlu0 %1498
        %1500 = vadd.xlane.f32.xlu0 %v1449
        %v1501 = vpop.xlane.xlu0 %1500
        %1502 = vadd.xlane.f32.xlu0 %v1450
        %v1503 = vpop.xlane.xlu0 %1502
        %1504 = vadd.xlane.f32.xlu0 %v1451
        %v1505 = vpop.xlane.xlu0 %1504
        %1506 = vadd.xlane.f32.xlu0 %v1452
        %v1507 = vpop.xlane.xlu0 %1506
        %1508 = vadd.xlane.f32.xlu0 %v1453
        %v1509 = vpop.xlane.xlu0 %1508
        %1510 = vadd.xlane.f32.xlu0 %v1454
        %v1511 = vpop.xlane.xlu0 %1510
        %1512 = vadd.xlane.f32.xlu0 %v1455
        %v1513 = vpop.xlane.xlu0 %1512
        %1514 = vadd.xlane.f32.xlu0 %v1456
        %v1515 = vpop.xlane.xlu0 %1514
        %1516 = vadd.xlane.f32.xlu0 %v1457
        %v1517 = vpop.xlane.xlu0 %1516
        %1518 = vadd.xlane.f32.xlu0 %v1458
        %v1519 = vpop.xlane.xlu0 %1518
        %1520 = vadd.xlane.f32.xlu0 %v1459
        %v1521 = vpop.xlane.xlu0 %1520
        %1522 = vadd.xlane.f32.xlu0 %v1460
        %v1523 = vpop.xlane.xlu0 %1522
        %1524 = vadd.xlane.f32.xlu0 %v1461
        %v1525 = vpop.xlane.xlu0 %1524
        %v1526 = vmul.f32 %v1463, %v589
        %v1527 = vmul.f32 %v1465, %v589
        %v1528 = vmul.f32 %v1467, %v589
        %v1529 = vmul.f32 %v1469, %v589
        %v1530 = vmul.f32 %v1471, %v589
        %v1531 = vmul.f32 %v1473, %v589
        %v1532 = vmul.f32 %v1475, %v589
        %v1533 = vmul.f32 %v1477, %v589
        %v1534 = vmul.f32 %v1479, %v589
        %v1535 = vmul.f32 %v1481, %v589
        %v1536 = vmul.f32 %v1483, %v589
        %v1537 = vmul.f32 %v1485, %v589
        %v1538 = vmul.f32 %v1487, %v589
        %v1539 = vmul.f32 %v1489, %v589
        %v1540 = vmul.f32 %v1491, %v589
        %v1541 = vmul.f32 %v1493, %v589
        %v1542 = vmul.f32 %v1495, %v589
        %v1543 = vmul.f32 %v1497, %v589
        %v1544 = vmul.f32 %v1499, %v589
        %v1545 = vmul.f32 %v1501, %v589
        %v1546 = vmul.f32 %v1503, %v589
        %v1547 = vmul.f32 %v1505, %v589
        %v1548 = vmul.f32 %v1507, %v589
        %v1549 = vmul.f32 %v1509, %v589
        %v1550 = vmul.f32 %v1511, %v589
        %v1551 = vmul.f32 %v1513, %v589
        %v1552 = vmul.f32 %v1515, %v589
        %v1553 = vmul.f32 %v1517, %v589
        %v1554 = vmul.f32 %v1519, %v589
        %v1555 = vmul.f32 %v1521, %v589
        %v1556 = vmul.f32 %v1523, %v589
        %v1557 = vmul.f32 %v1525, %v589
        %v1558 = vadd.f32 %v1526, 1e-05
        %v1559 = vadd.f32 %v1527, 1e-05
        %v1560 = vadd.f32 %v1528, 1e-05
        %v1561 = vadd.f32 %v1529, 1e-05
        %v1562 = vadd.f32 %v1530, 1e-05
        %v1563 = vadd.f32 %v1531, 1e-05
        %v1564 = vadd.f32 %v1532, 1e-05
        %v1565 = vadd.f32 %v1533, 1e-05
        %v1566 = vadd.f32 %v1534, 1e-05
        %v1567 = vadd.f32 %v1535, 1e-05
        %v1568 = vadd.f32 %v1536, 1e-05
        %v1569 = vadd.f32 %v1537, 1e-05
        %v1570 = vadd.f32 %v1538, 1e-05
        %v1571 = vadd.f32 %v1539, 1e-05
        %v1572 = vadd.f32 %v1540, 1e-05
        %v1573 = vadd.f32 %v1541, 1e-05
        %v1574 = vadd.f32 %v1542, 1e-05
        %v1575 = vadd.f32 %v1543, 1e-05
        %v1576 = vadd.f32 %v1544, 1e-05
        %v1577 = vadd.f32 %v1545, 1e-05
        %v1578 = vadd.f32 %v1546, 1e-05
        %v1579 = vadd.f32 %v1547, 1e-05
        %v1580 = vadd.f32 %v1548, 1e-05
        %v1581 = vadd.f32 %v1549, 1e-05
        %v1582 = vadd.f32 %v1550, 1e-05
        %v1583 = vadd.f32 %v1551, 1e-05
        %v1584 = vadd.f32 %v1552, 1e-05
        %v1585 = vadd.f32 %v1553, 1e-05
        %v1586 = vadd.f32 %v1554, 1e-05
        %v1587 = vadd.f32 %v1555, 1e-05
        %v1588 = vadd.f32 %v1556, 1e-05
        %v1589 = vadd.f32 %v1557, 1e-05
        %v1590 = vrsqrt.pop %v1558
        %v1591 = vmul.f32 %v1590, %v1558
        %v1592 = vmul.f32 %v1591, %v1590
        %v1593 = vmul.f32 0.5, %v1592
        %v1594 = vsub.f32 1.5, %v1593
        %v1595 = vmul.f32 %v1590, %v1594
        %vm1596 = vweird.f32 %v1558
        %vm1597 = vweird.f32 %v1590
        %vm1598 = vmor %vm1596, %vm1597
        %v1599 = vsel %vm1598, %v1590, %v1595
        %v1600 = vrsqrt.pop %v1559
        %v1601 = vmul.f32 %v1600, %v1559
        %v1602 = vmul.f32 %v1601, %v1600
        %v1603 = vmul.f32 0.5, %v1602
        %v1604 = vsub.f32 1.5, %v1603
        %v1605 = vmul.f32 %v1600, %v1604
        %vm1606 = vweird.f32 %v1559
        %vm1607 = vweird.f32 %v1600
        %vm1608 = vmor %vm1606, %vm1607
        %v1609 = vsel %vm1608, %v1600, %v1605
        %v1610 = vrsqrt.pop %v1560
        %v1611 = vmul.f32 %v1610, %v1560
        %v1612 = vmul.f32 %v1611, %v1610
        %v1613 = vmul.f32 0.5, %v1612
        %v1614 = vsub.f32 1.5, %v1613
        %v1615 = vmul.f32 %v1610, %v1614
        %vm1616 = vweird.f32 %v1560
        %vm1617 = vweird.f32 %v1610
        %vm1618 = vmor %vm1616, %vm1617
        %v1619 = vsel %vm1618, %v1610, %v1615
        %v1620 = vrsqrt.pop %v1561
        %v1621 = vmul.f32 %v1620, %v1561
        %v1622 = vmul.f32 %v1621, %v1620
        %v1623 = vmul.f32 0.5, %v1622
        %v1624 = vsub.f32 1.5, %v1623
        %v1625 = vmul.f32 %v1620, %v1624
        %vm1626 = vweird.f32 %v1561
        %vm1627 = vweird.f32 %v1620
        %vm1628 = vmor %vm1626, %vm1627
        %v1629 = vsel %vm1628, %v1620, %v1625
        %v1630 = vrsqrt.pop %v1562
        %v1631 = vmul.f32 %v1630, %v1562
        %v1632 = vmul.f32 %v1631, %v1630
        %v1633 = vmul.f32 0.5, %v1632
        %v1634 = vsub.f32 1.5, %v1633
        %v1635 = vmul.f32 %v1630, %v1634
        %vm1636 = vweird.f32 %v1562
        %vm1637 = vweird.f32 %v1630
        %vm1638 = vmor %vm1636, %vm1637
        %v1639 = vsel %vm1638, %v1630, %v1635
        %v1640 = vrsqrt.pop %v1563
        %v1641 = vmul.f32 %v1640, %v1563
        %v1642 = vmul.f32 %v1641, %v1640
        %v1643 = vmul.f32 0.5, %v1642
        %v1644 = vsub.f32 1.5, %v1643
        %v1645 = vmul.f32 %v1640, %v1644
        %vm1646 = vweird.f32 %v1563
        %vm1647 = vweird.f32 %v1640
        %vm1648 = vmor %vm1646, %vm1647
        %v1649 = vsel %vm1648, %v1640, %v1645
        %v1650 = vrsqrt.pop %v1564
        %v1651 = vmul.f32 %v1650, %v1564
        %v1652 = vmul.f32 %v1651, %v1650
        %v1653 = vmul.f32 0.5, %v1652
        %v1654 = vsub.f32 1.5, %v1653
        %v1655 = vmul.f32 %v1650, %v1654
        %vm1656 = vweird.f32 %v1564
        %vm1657 = vweird.f32 %v1650
        %vm1658 = vmor %vm1656, %vm1657
        %v1659 = vsel %vm1658, %v1650, %v1655
        %v1660 = vrsqrt.pop %v1565
        %v1661 = vmul.f32 %v1660, %v1565
        %v1662 = vmul.f32 %v1661, %v1660
        %v1663 = vmul.f32 0.5, %v1662
        %v1664 = vsub.f32 1.5, %v1663
        %v1665 = vmul.f32 %v1660, %v1664
        %vm1666 = vweird.f32 %v1565
        %vm1667 = vweird.f32 %v1660
        %vm1668 = vmor %vm1666, %vm1667
        %v1669 = vsel %vm1668, %v1660, %v1665
        %v1670 = vrsqrt.pop %v1566
        %v1671 = vmul.f32 %v1670, %v1566
        %v1672 = vmul.f32 %v1671, %v1670
        %v1673 = vmul.f32 0.5, %v1672
        %v1674 = vsub.f32 1.5, %v1673
        %v1675 = vmul.f32 %v1670, %v1674
        %vm1676 = vweird.f32 %v1566
        %vm1677 = vweird.f32 %v1670
        %vm1678 = vmor %vm1676, %vm1677
        %v1679 = vsel %vm1678, %v1670, %v1675
        %v1680 = vrsqrt.pop %v1567
        %v1681 = vmul.f32 %v1680, %v1567
        %v1682 = vmul.f32 %v1681, %v1680
        %v1683 = vmul.f32 0.5, %v1682
        %v1684 = vsub.f32 1.5, %v1683
        %v1685 = vmul.f32 %v1680, %v1684
        %vm1686 = vweird.f32 %v1567
        %vm1687 = vweird.f32 %v1680
        %vm1688 = vmor %vm1686, %vm1687
        %v1689 = vsel %vm1688, %v1680, %v1685
        %v1690 = vrsqrt.pop %v1568
        %v1691 = vmul.f32 %v1690, %v1568
        %v1692 = vmul.f32 %v1691, %v1690
        %v1693 = vmul.f32 0.5, %v1692
        %v1694 = vsub.f32 1.5, %v1693
        %v1695 = vmul.f32 %v1690, %v1694
        %vm1696 = vweird.f32 %v1568
        %vm1697 = vweird.f32 %v1690
        %vm1698 = vmor %vm1696, %vm1697
        %v1699 = vsel %vm1698, %v1690, %v1695
        %v1700 = vrsqrt.pop %v1569
        %v1701 = vmul.f32 %v1700, %v1569
        %v1702 = vmul.f32 %v1701, %v1700
        %v1703 = vmul.f32 0.5, %v1702
        %v1704 = vsub.f32 1.5, %v1703
        %v1705 = vmul.f32 %v1700, %v1704
        %vm1706 = vweird.f32 %v1569
        %vm1707 = vweird.f32 %v1700
        %vm1708 = vmor %vm1706, %vm1707
        %v1709 = vsel %vm1708, %v1700, %v1705
        %v1710 = vrsqrt.pop %v1570
        %v1711 = vmul.f32 %v1710, %v1570
        %v1712 = vmul.f32 %v1711, %v1710
        %v1713 = vmul.f32 0.5, %v1712
        %v1714 = vsub.f32 1.5, %v1713
        %v1715 = vmul.f32 %v1710, %v1714
        %vm1716 = vweird.f32 %v1570
        %vm1717 = vweird.f32 %v1710
        %vm1718 = vmor %vm1716, %vm1717
        %v1719 = vsel %vm1718, %v1710, %v1715
        %v1720 = vrsqrt.pop %v1571
        %v1721 = vmul.f32 %v1720, %v1571
        %v1722 = vmul.f32 %v1721, %v1720
        %v1723 = vmul.f32 0.5, %v1722
        %v1724 = vsub.f32 1.5, %v1723
        %v1725 = vmul.f32 %v1720, %v1724
        %vm1726 = vweird.f32 %v1571
        %vm1727 = vweird.f32 %v1720
        %vm1728 = vmor %vm1726, %vm1727
        %v1729 = vsel %vm1728, %v1720, %v1725
        %v1730 = vrsqrt.pop %v1572
        %v1731 = vmul.f32 %v1730, %v1572
        %v1732 = vmul.f32 %v1731, %v1730
        %v1733 = vmul.f32 0.5, %v1732
        %v1734 = vsub.f32 1.5, %v1733
        %v1735 = vmul.f32 %v1730, %v1734
        %vm1736 = vweird.f32 %v1572
        %vm1737 = vweird.f32 %v1730
        %vm1738 = vmor %vm1736, %vm1737
        %v1739 = vsel %vm1738, %v1730, %v1735
        %v1740 = vrsqrt.pop %v1573
        %v1741 = vmul.f32 %v1740, %v1573
        %v1742 = vmul.f32 %v1741, %v1740
        %v1743 = vmul.f32 0.5, %v1742
        %v1744 = vsub.f32 1.5, %v1743
        %v1745 = vmul.f32 %v1740, %v1744
        %vm1746 = vweird.f32 %v1573
        %vm1747 = vweird.f32 %v1740
        %vm1748 = vmor %vm1746, %vm1747
        %v1749 = vsel %vm1748, %v1740, %v1745
        %v1750 = vrsqrt.pop %v1574
        %v1751 = vmul.f32 %v1750, %v1574
        %v1752 = vmul.f32 %v1751, %v1750
        %v1753 = vmul.f32 0.5, %v1752
        %v1754 = vsub.f32 1.5, %v1753
        %v1755 = vmul.f32 %v1750, %v1754
        %vm1756 = vweird.f32 %v1574
        %vm1757 = vweird.f32 %v1750
        %vm1758 = vmor %vm1756, %vm1757
        %v1759 = vsel %vm1758, %v1750, %v1755
        %v1760 = vrsqrt.pop %v1575
        %v1761 = vmul.f32 %v1760, %v1575
        %v1762 = vmul.f32 %v1761, %v1760
        %v1763 = vmul.f32 0.5, %v1762
        %v1764 = vsub.f32 1.5, %v1763
        %v1765 = vmul.f32 %v1760, %v1764
        %vm1766 = vweird.f32 %v1575
        %vm1767 = vweird.f32 %v1760
        %vm1768 = vmor %vm1766, %vm1767
        %v1769 = vsel %vm1768, %v1760, %v1765
        %v1770 = vrsqrt.pop %v1576
        %v1771 = vmul.f32 %v1770, %v1576
        %v1772 = vmul.f32 %v1771, %v1770
        %v1773 = vmul.f32 0.5, %v1772
        %v1774 = vsub.f32 1.5, %v1773
        %v1775 = vmul.f32 %v1770, %v1774
        %vm1776 = vweird.f32 %v1576
        %vm1777 = vweird.f32 %v1770
        %vm1778 = vmor %vm1776, %vm1777
        %v1779 = vsel %vm1778, %v1770, %v1775
        %v1780 = vrsqrt.pop %v1577
        %v1781 = vmul.f32 %v1780, %v1577
        %v1782 = vmul.f32 %v1781, %v1780
        %v1783 = vmul.f32 0.5, %v1782
        %v1784 = vsub.f32 1.5, %v1783
        %v1785 = vmul.f32 %v1780, %v1784
        %vm1786 = vweird.f32 %v1577
        %vm1787 = vweird.f32 %v1780
        %vm1788 = vmor %vm1786, %vm1787
        %v1789 = vsel %vm1788, %v1780, %v1785
        %v1790 = vrsqrt.pop %v1578
        %v1791 = vmul.f32 %v1790, %v1578
        %v1792 = vmul.f32 %v1791, %v1790
        %v1793 = vmul.f32 0.5, %v1792
        %v1794 = vsub.f32 1.5, %v1793
        %v1795 = vmul.f32 %v1790, %v1794
        %vm1796 = vweird.f32 %v1578
        %vm1797 = vweird.f32 %v1790
        %vm1798 = vmor %vm1796, %vm1797
        %v1799 = vsel %vm1798, %v1790, %v1795
        %v1800 = vrsqrt.pop %v1579
        %v1801 = vmul.f32 %v1800, %v1579
        %v1802 = vmul.f32 %v1801, %v1800
        %v1803 = vmul.f32 0.5, %v1802
        %v1804 = vsub.f32 1.5, %v1803
        %v1805 = vmul.f32 %v1800, %v1804
        %vm1806 = vweird.f32 %v1579
        %vm1807 = vweird.f32 %v1800
        %vm1808 = vmor %vm1806, %vm1807
        %v1809 = vsel %vm1808, %v1800, %v1805
        %v1810 = vrsqrt.pop %v1580
        %v1811 = vmul.f32 %v1810, %v1580
        %v1812 = vmul.f32 %v1811, %v1810
        %v1813 = vmul.f32 0.5, %v1812
        %v1814 = vsub.f32 1.5, %v1813
        %v1815 = vmul.f32 %v1810, %v1814
        %vm1816 = vweird.f32 %v1580
        %vm1817 = vweird.f32 %v1810
        %vm1818 = vmor %vm1816, %vm1817
        %v1819 = vsel %vm1818, %v1810, %v1815
        %v1820 = vrsqrt.pop %v1581
        %v1821 = vmul.f32 %v1820, %v1581
        %v1822 = vmul.f32 %v1821, %v1820
        %v1823 = vmul.f32 0.5, %v1822
        %v1824 = vsub.f32 1.5, %v1823
        %v1825 = vmul.f32 %v1820, %v1824
        %vm1826 = vweird.f32 %v1581
        %vm1827 = vweird.f32 %v1820
        %vm1828 = vmor %vm1826, %vm1827
        %v1829 = vsel %vm1828, %v1820, %v1825
        %v1830 = vrsqrt.pop %v1582
        %v1831 = vmul.f32 %v1830, %v1582
        %v1832 = vmul.f32 %v1831, %v1830
        %v1833 = vmul.f32 0.5, %v1832
        %v1834 = vsub.f32 1.5, %v1833
        %v1835 = vmul.f32 %v1830, %v1834
        %vm1836 = vweird.f32 %v1582
        %vm1837 = vweird.f32 %v1830
        %vm1838 = vmor %vm1836, %vm1837
        %v1839 = vsel %vm1838, %v1830, %v1835
        %v1840 = vrsqrt.pop %v1583
        %v1841 = vmul.f32 %v1840, %v1583
        %v1842 = vmul.f32 %v1841, %v1840
        %v1843 = vmul.f32 0.5, %v1842
        %v1844 = vsub.f32 1.5, %v1843
        %v1845 = vmul.f32 %v1840, %v1844
        %vm1846 = vweird.f32 %v1583
        %vm1847 = vweird.f32 %v1840
        %vm1848 = vmor %vm1846, %vm1847
        %v1849 = vsel %vm1848, %v1840, %v1845
        %v1850 = vrsqrt.pop %v1584
        %v1851 = vmul.f32 %v1850, %v1584
        %v1852 = vmul.f32 %v1851, %v1850
        %v1853 = vmul.f32 0.5, %v1852
        %v1854 = vsub.f32 1.5, %v1853
        %v1855 = vmul.f32 %v1850, %v1854
        %vm1856 = vweird.f32 %v1584
        %vm1857 = vweird.f32 %v1850
        %vm1858 = vmor %vm1856, %vm1857
        %v1859 = vsel %vm1858, %v1850, %v1855
        %v1860 = vrsqrt.pop %v1585
        %v1861 = vmul.f32 %v1860, %v1585
        %v1862 = vmul.f32 %v1861, %v1860
        %v1863 = vmul.f32 0.5, %v1862
        %v1864 = vsub.f32 1.5, %v1863
        %v1865 = vmul.f32 %v1860, %v1864
        %vm1866 = vweird.f32 %v1585
        %vm1867 = vweird.f32 %v1860
        %vm1868 = vmor %vm1866, %vm1867
        %v1869 = vsel %vm1868, %v1860, %v1865
        %v1870 = vrsqrt.pop %v1586
        %v1871 = vmul.f32 %v1870, %v1586
        %v1872 = vmul.f32 %v1871, %v1870
        %v1873 = vmul.f32 0.5, %v1872
        %v1874 = vsub.f32 1.5, %v1873
        %v1875 = vmul.f32 %v1870, %v1874
        %vm1876 = vweird.f32 %v1586
        %vm1877 = vweird.f32 %v1870
        %vm1878 = vmor %vm1876, %vm1877
        %v1879 = vsel %vm1878, %v1870, %v1875
        %v1880 = vrsqrt.pop %v1587
        %v1881 = vmul.f32 %v1880, %v1587
        %v1882 = vmul.f32 %v1881, %v1880
        %v1883 = vmul.f32 0.5, %v1882
        %v1884 = vsub.f32 1.5, %v1883
        %v1885 = vmul.f32 %v1880, %v1884
        %vm1886 = vweird.f32 %v1587
        %vm1887 = vweird.f32 %v1880
        %vm1888 = vmor %vm1886, %vm1887
        %v1889 = vsel %vm1888, %v1880, %v1885
        %v1890 = vrsqrt.pop %v1588
        %v1891 = vmul.f32 %v1890, %v1588
        %v1892 = vmul.f32 %v1891, %v1890
        %v1893 = vmul.f32 0.5, %v1892
        %v1894 = vsub.f32 1.5, %v1893
        %v1895 = vmul.f32 %v1890, %v1894
        %vm1896 = vweird.f32 %v1588
        %vm1897 = vweird.f32 %v1890
        %vm1898 = vmor %vm1896, %vm1897
        %v1899 = vsel %vm1898, %v1890, %v1895
        %v1900 = vrsqrt.pop %v1589
        %v1901 = vmul.f32 %v1900, %v1589
        %v1902 = vmul.f32 %v1901, %v1900
        %v1903 = vmul.f32 0.5, %v1902
        %v1904 = vsub.f32 1.5, %v1903
        %v1905 = vmul.f32 %v1900, %v1904
        %vm1906 = vweird.f32 %v1589
        %vm1907 = vweird.f32 %v1900
        %vm1908 = vmor %vm1906, %vm1907
        %v1909 = vsel %vm1908, %v1900, %v1905
        %v1910 = vmul.f32 %v1398, %v1599
        %v1911 = vmul.f32 %v1399, %v1609
        %v1912 = vmul.f32 %v1400, %v1619
        %v1913 = vmul.f32 %v1401, %v1629
        %v1914 = vmul.f32 %v1402, %v1639
        %v1915 = vmul.f32 %v1403, %v1649
        %v1916 = vmul.f32 %v1404, %v1659
        %v1917 = vmul.f32 %v1405, %v1669
        %v1918 = vmul.f32 %v1406, %v1679
        %v1919 = vmul.f32 %v1407, %v1689
        %v1920 = vmul.f32 %v1408, %v1699
        %v1921 = vmul.f32 %v1409, %v1709
        %v1922 = vmul.f32 %v1410, %v1719
        %v1923 = vmul.f32 %v1411, %v1729
        %v1924 = vmul.f32 %v1412, %v1739
        %v1925 = vmul.f32 %v1413, %v1749
        %v1926 = vmul.f32 %v1414, %v1759
        %v1927 = vmul.f32 %v1415, %v1769
        %v1928 = vmul.f32 %v1416, %v1779
        %v1929 = vmul.f32 %v1417, %v1789
        %v1930 = vmul.f32 %v1418, %v1799
        %v1931 = vmul.f32 %v1419, %v1809
        %v1932 = vmul.f32 %v1420, %v1819
        %v1933 = vmul.f32 %v1421, %v1829
        %v1934 = vmul.f32 %v1422, %v1839
        %v1935 = vmul.f32 %v1423, %v1849
        %v1936 = vmul.f32 %v1424, %v1859
        %v1937 = vmul.f32 %v1425, %v1869
        %v1938 = vmul.f32 %v1426, %v1879
        %v1939 = vmul.f32 %v1427, %v1889
        %v1940 = vmul.f32 %v1428, %v1899
        %v1941 = vmul.f32 %v1429, %v1909
        %v1942 = vld [vmem:[#allocation7] sm:$0x1]
        %v1944 = vperm.slane %v1942, 0
        %v1946 = vmul.f32 %v1910, %v1944
        %v1947 = vmul.f32 %v1911, %v1944
        %v1948 = vmul.f32 %v1912, %v1944
        %v1949 = vmul.f32 %v1913, %v1944
        %v1950 = vmul.f32 %v1914, %v1944
        %v1951 = vmul.f32 %v1915, %v1944
        %v1952 = vmul.f32 %v1916, %v1944
        %v1953 = vmul.f32 %v1917, %v1944
        %v1954 = vmul.f32 %v1918, %v1944
        %v1955 = vmul.f32 %v1919, %v1944
        %v1956 = vmul.f32 %v1920, %v1944
        %v1957 = vmul.f32 %v1921, %v1944
        %v1958 = vmul.f32 %v1922, %v1944
        %v1959 = vmul.f32 %v1923, %v1944
        %v1960 = vmul.f32 %v1924, %v1944
        %v1961 = vmul.f32 %v1925, %v1944
        %v1962 = vmul.f32 %v1926, %v1944
        %v1963 = vmul.f32 %v1927, %v1944
        %v1964 = vmul.f32 %v1928, %v1944
        %v1965 = vmul.f32 %v1929, %v1944
        %v1966 = vmul.f32 %v1930, %v1944
        %v1967 = vmul.f32 %v1931, %v1944
        %v1968 = vmul.f32 %v1932, %v1944
        %v1969 = vmul.f32 %v1933, %v1944
        %v1970 = vmul.f32 %v1934, %v1944
        %v1971 = vmul.f32 %v1935, %v1944
        %v1972 = vmul.f32 %v1936, %v1944
        %v1973 = vmul.f32 %v1937, %v1944
        %v1974 = vmul.f32 %v1938, %v1944
        %v1975 = vmul.f32 %v1939, %v1944
        %v1976 = vmul.f32 %v1940, %v1944
        %v1977 = vmul.f32 %v1941, %v1944
        %v1978 = vld [vmem:[#allocation8] sm:$0x1]
        %v1980 = vperm.slane %v1978, 0
        %v1982 = vadd.f32 %v1946, %v1980
        %v1983 = vadd.f32 %v1947, %v1980
        %v1984 = vadd.f32 %v1948, %v1980
        %v1985 = vadd.f32 %v1949, %v1980
        %v1986 = vadd.f32 %v1950, %v1980
        %v1987 = vadd.f32 %v1951, %v1980
        %v1988 = vadd.f32 %v1952, %v1980
        %v1989 = vadd.f32 %v1953, %v1980
        %v1990 = vadd.f32 %v1954, %v1980
        %v1991 = vadd.f32 %v1955, %v1980
        %v1992 = vadd.f32 %v1956, %v1980
        %v1993 = vadd.f32 %v1957, %v1980
        %v1994 = vadd.f32 %v1958, %v1980
        %v1995 = vadd.f32 %v1959, %v1980
        %v1996 = vadd.f32 %v1960, %v1980
        %v1997 = vadd.f32 %v1961, %v1980
        %v1998 = vadd.f32 %v1962, %v1980
        %v1999 = vadd.f32 %v1963, %v1980
        %v2000 = vadd.f32 %v1964, %v1980
        %v2001 = vadd.f32 %v1965, %v1980
        %v2002 = vadd.f32 %v1966, %v1980
        %v2003 = vadd.f32 %v1967, %v1980
        %v2004 = vadd.f32 %v1968, %v1980
        %v2005 = vadd.f32 %v1969, %v1980
        %v2006 = vadd.f32 %v1970, %v1980
        %v2007 = vadd.f32 %v1971, %v1980
        %v2008 = vadd.f32 %v1972, %v1980
        %v2009 = vadd.f32 %v1973, %v1980
        %v2010 = vadd.f32 %v1974, %v1980
        %v2011 = vadd.f32 %v1975, %v1980
        %v2012 = vadd.f32 %v1976, %v1980
        %v2013 = vadd.f32 %v1977, %v1980
        %v2014 = vpack.c.bf16 %v1983, %v1982
        %v2015 = vpack.c.bf16 %v1985, %v1984
        %v2016 = vpack.c.bf16 %v1987, %v1986
        %v2017 = vpack.c.bf16 %v1989, %v1988
        %v2018 = vpack.c.bf16 %v1991, %v1990
        %v2019 = vpack.c.bf16 %v1993, %v1992
        %v2020 = vpack.c.bf16 %v1995, %v1994
        %v2021 = vpack.c.bf16 %v1997, %v1996
        %v2022 = vpack.c.bf16 %v1999, %v1998
        %v2023 = vpack.c.bf16 %v2001, %v2000
        %v2024 = vpack.c.bf16 %v2003, %v2002
        %v2025 = vpack.c.bf16 %v2005, %v2004
        %v2026 = vpack.c.bf16 %v2007, %v2006
        %v2027 = vpack.c.bf16 %v2009, %v2008
        %v2028 = vpack.c.bf16 %v2011, %v2010
        %v2029 = vpack.c.bf16 %v2013, %v2012
        %v2030 = vld [vmem:[#allocation10] sm:$0xff]
        %v2031 = vld [vmem:[#allocation10 + $0x8] sm:$0xff]
        %v2032 = vld [vmem:[#allocation10 + $0x10] sm:$0xff]
        %v2033 = vld [vmem:[#allocation10 + $0x18] sm:$0xff]
        %v2034 = vld [vmem:[#allocation10 + $0x20] sm:$0xff]
        %v2035 = vld [vmem:[#allocation10 + $0x28] sm:$0xff]
        %v2036 = vld [vmem:[#allocation10 + $0x30] sm:$0xff]
        %v2037 = vld [vmem:[#allocation10 + $0x38] sm:$0xff]
        %v2038 = vld [vmem:[#allocation10 + $0x40] sm:$0xff]
        %v2039 = vld [vmem:[#allocation10 + $0x48] sm:$0xff]
        %v2040 = vld [vmem:[#allocation10 + $0x50] sm:$0xff]
        %v2041 = vld [vmem:[#allocation10 + $0x58] sm:$0xff]
        %v2042 = vld [vmem:[#allocation10 + $0x60] sm:$0xff]
        %v2043 = vld [vmem:[#allocation10 + $0x68] sm:$0xff]
        %v2044 = vld [vmem:[#allocation10 + $0x70] sm:$0xff]
        %v2045 = vld [vmem:[#allocation10 + $0x78] sm:$0xff]
        %v2046 = vld [vmem:[#allocation10 + $0x80] sm:$0xff]
        %v2047 = vld [vmem:[#allocation10 + $0x88] sm:$0xff]
        %v2048 = vld [vmem:[#allocation10 + $0x90] sm:$0xff]
        %v2049 = vld [vmem:[#allocation10 + $0x98] sm:$0xff]
        %v2050 = vld [vmem:[#allocation10 + $0xa0] sm:$0xff]
        %v2051 = vld [vmem:[#allocation10 + $0xa8] sm:$0xff]
        %v2052 = vld [vmem:[#allocation10 + $0xb0] sm:$0xff]
        %v2053 = vld [vmem:[#allocation10 + $0xb8] sm:$0xff]
        %v2054 = vld [vmem:[#allocation10 + $0xc0] sm:$0xff]
        %v2055 = vld [vmem:[#allocation10 + $0xc8] sm:$0xff]
        %v2056 = vld [vmem:[#allocation10 + $0xd0] sm:$0xff]
        %v2057 = vld [vmem:[#allocation10 + $0xd8] sm:$0xff]
        %v2058 = vld [vmem:[#allocation10 + $0xe0] sm:$0xff]
        %v2059 = vld [vmem:[#allocation10 + $0xe8] sm:$0xff]
        %v2060 = vld [vmem:[#allocation10 + $0xf0] sm:$0xff]
        %v2061 = vld [vmem:[#allocation10 + $0xf8] sm:$0xff]
        %v2062 = vld [vmem:[%s7] sm:$0xf]
        %v2064 = vperm.slane %v2062, 0
        %v2065 = vperm.slane %v2062, 1
        %v2066 = vperm.slane %v2062, 2
        %v2067 = vperm.slane %v2062, 3
        %v2104 = vunpack.c.l.b16 %v2030
        %v2105 = vunpack.c.h.b16 %v2030
        %v2106 = vunpack.c.l.b16 %v2031
        %v2107 = vunpack.c.h.b16 %v2031
        %v2108 = vunpack.c.l.b16 %v2032
        %v2109 = vunpack.c.h.b16 %v2032
        %v2110 = vunpack.c.l.b16 %v2033
        %v2111 = vunpack.c.h.b16 %v2033
        %v2112 = vunpack.c.l.b16 %v2034
        %v2113 = vunpack.c.h.b16 %v2034
        %v2114 = vunpack.c.l.b16 %v2035
        %v2115 = vunpack.c.h.b16 %v2035
        %v2116 = vunpack.c.l.b16 %v2036
        %v2117 = vunpack.c.h.b16 %v2036
        %v2118 = vunpack.c.l.b16 %v2037
        %v2119 = vunpack.c.h.b16 %v2037
        %v2120 = vunpack.c.l.b16 %v2038
        %v2121 = vunpack.c.h.b16 %v2038
        %v2122 = vunpack.c.l.b16 %v2039
        %v2123 = vunpack.c.h.b16 %v2039
        %v2124 = vunpack.c.l.b16 %v2040
        %v2125 = vunpack.c.h.b16 %v2040
        %v2126 = vunpack.c.l.b16 %v2041
        %v2127 = vunpack.c.h.b16 %v2041
        %v2128 = vunpack.c.l.b16 %v2042
        %v2129 = vunpack.c.h.b16 %v2042
        %v2130 = vunpack.c.l.b16 %v2043
        %v2131 = vunpack.c.h.b16 %v2043
        %v2132 = vunpack.c.l.b16 %v2044
        %v2133 = vunpack.c.h.b16 %v2044
        %v2134 = vunpack.c.l.b16 %v2045
        %v2135 = vunpack.c.h.b16 %v2045
        %v2136 = vunpack.c.l.b16 %v2046
        %v2137 = vunpack.c.h.b16 %v2046
        %v2138 = vunpack.c.l.b16 %v2047
        %v2139 = vunpack.c.h.b16 %v2047
        %v2140 = vunpack.c.l.b16 %v2048
        %v2141 = vunpack.c.h.b16 %v2048
        %v2142 = vunpack.c.l.b16 %v2049
        %v2143 = vunpack.c.h.b16 %v2049
        %v2144 = vunpack.c.l.b16 %v2050
        %v2145 = vunpack.c.h.b16 %v2050
        %v2146 = vunpack.c.l.b16 %v2051
        %v2147 = vunpack.c.h.b16 %v2051
        %v2148 = vunpack.c.l.b16 %v2052
        %v2149 = vunpack.c.h.b16 %v2052
        %v2150 = vunpack.c.l.b16 %v2053
        %v2151 = vunpack.c.h.b16 %v2053
        %v2152 = vunpack.c.l.b16 %v2054
        %v2153 = vunpack.c.h.b16 %v2054
        %v2154 = vunpack.c.l.b16 %v2055
        %v2155 = vunpack.c.h.b16 %v2055
        %v2156 = vunpack.c.l.b16 %v2056
        %v2157 = vunpack.c.h.b16 %v2056
        %v2158 = vunpack.c.l.b16 %v2057
        %v2159 = vunpack.c.h.b16 %v2057
        %v2160 = vunpack.c.l.b16 %v2058
        %v2161 = vunpack.c.h.b16 %v2058
        %v2162 = vunpack.c.l.b16 %v2059
        %v2163 = vunpack.c.h.b16 %v2059
        %v2164 = vunpack.c.l.b16 %v2060
        %v2165 = vunpack.c.h.b16 %v2060
        %v2166 = vunpack.c.l.b16 %v2061
        %v2167 = vunpack.c.h.b16 %v2061
        %v2168 = vpack.c.b16 %v2108, %v2104
        %v2169 = vpack.c.b16 %v2109, %v2105
        %v2170 = vpack.c.b16 %v2110, %v2106
        %v2171 = vpack.c.b16 %v2111, %v2107
        %v2172 = vpack.c.b16 %v2116, %v2112
        %v2173 = vpack.c.b16 %v2117, %v2113
        %v2174 = vpack.c.b16 %v2118, %v2114
        %v2175 = vpack.c.b16 %v2119, %v2115
        %v2176 = vpack.c.b16 %v2124, %v2120
        %v2177 = vpack.c.b16 %v2125, %v2121
        %v2178 = vpack.c.b16 %v2126, %v2122
        %v2179 = vpack.c.b16 %v2127, %v2123
        %v2180 = vpack.c.b16 %v2132, %v2128
        %v2181 = vpack.c.b16 %v2133, %v2129
        %v2182 = vpack.c.b16 %v2134, %v2130
        %v2183 = vpack.c.b16 %v2135, %v2131
        %v2184 = vpack.c.b16 %v2140, %v2136
        %v2185 = vpack.c.b16 %v2141, %v2137
        %v2186 = vpack.c.b16 %v2142, %v2138
        %v2187 = vpack.c.b16 %v2143, %v2139
        %v2188 = vpack.c.b16 %v2148, %v2144
        %v2189 = vpack.c.b16 %v2149, %v2145
        %v2190 = vpack.c.b16 %v2150, %v2146
        %v2191 = vpack.c.b16 %v2151, %v2147
        %v2192 = vpack.c.b16 %v2156, %v2152
        %v2193 = vpack.c.b16 %v2157, %v2153
        %v2194 = vpack.c.b16 %v2158, %v2154
        %v2195 = vpack.c.b16 %v2159, %v2155
        %v2196 = vpack.c.b16 %v2164, %v2160
        %v2197 = vpack.c.b16 %v2165, %v2161
        %v2198 = vpack.c.b16 %v2166, %v2162
        %v2199 = vpack.c.b16 %v2167, %v2163
        %2232 = vmatpush.bf16.msra.mxu0 %v2196
        %2233 = vmatpush.bf16.msra.mxu0 %v2192
        %2234 = vmatpush.bf16.msra.mxu0 %v2188
        %2235 = vmatpush.bf16.msra.mxu0 %v2184
        %2236 = vmatpush.bf16.msra.mxu0 %v2180
        %2237 = vmatpush.bf16.msra.mxu0 %v2176
        %2238 = vmatpush.bf16.msra.mxu0 %v2172
        %2239 = vmatpush.bf16.msra.mxu0 %v2168
        %2240 = vmatmul.bf16.gmra.mxu0 %v2014
        %v2241 = vpop.f32.mrf.mxu0
        %v2242 = vadd.f32 %v2064, %v2241
        %v2243 = vpop.f32.mrf.mxu0
        %v2244 = vadd.f32 %v2064, %v2243
        %2245 = vmatmul.bf16.gmra.mxu0 %v2015
        %v2246 = vpop.f32.mrf.mxu0
        %v2247 = vadd.f32 %v2064, %v2246
        %v2248 = vpop.f32.mrf.mxu0
        %v2249 = vadd.f32 %v2064, %v2248
        %2250 = vmatmul.bf16.gmra.mxu0 %v2016
        %v2251 = vpop.f32.mrf.mxu0
        %v2252 = vadd.f32 %v2064, %v2251
        %v2253 = vpop.f32.mrf.mxu0
        %v2254 = vadd.f32 %v2064, %v2253
        %2255 = vmatmul.bf16.gmra.mxu0 %v2017
        %v2256 = vpop.f32.mrf.mxu0
        %v2257 = vadd.f32 %v2064, %v2256
        %v2258 = vpop.f32.mrf.mxu0
        %v2259 = vadd.f32 %v2064, %v2258
        %2260 = vmatmul.bf16.gmra.mxu0 %v2018
        %v2261 = vpop.f32.mrf.mxu0
        %v2262 = vadd.f32 %v2064, %v2261
        %v2263 = vpop.f32.mrf.mxu0
        %v2264 = vadd.f32 %v2064, %v2263
        %2265 = vmatmul.bf16.gmra.mxu0 %v2019
        %v2266 = vpop.f32.mrf.mxu0
        %v2267 = vadd.f32 %v2064, %v2266
        %v2268 = vpop.f32.mrf.mxu0
        %v2269 = vadd.f32 %v2064, %v2268
        %2270 = vmatmul.bf16.gmra.mxu0 %v2020
        %v2271 = vpop.f32.mrf.mxu0
        %v2272 = vadd.f32 %v2064, %v2271
        %v2273 = vpop.f32.mrf.mxu0
        %v2274 = vadd.f32 %v2064, %v2273
        %2275 = vmatmul.bf16.gmra.mxu0 %v2021
        %v2276 = vpop.f32.mrf.mxu0
        %v2277 = vadd.f32 %v2064, %v2276
        %v2278 = vpop.f32.mrf.mxu0
        %v2279 = vadd.f32 %v2064, %v2278
        %2280 = vmatmul.bf16.gmra.mxu0 %v2022
        %v2281 = vpop.f32.mrf.mxu0
        %v2282 = vadd.f32 %v2064, %v2281
        %v2283 = vpop.f32.mrf.mxu0
        %v2284 = vadd.f32 %v2064, %v2283
        %2285 = vmatmul.bf16.gmra.mxu0 %v2023
        %v2286 = vpop.f32.mrf.mxu0
        %v2287 = vadd.f32 %v2064, %v2286
        %v2288 = vpop.f32.mrf.mxu0
        %v2289 = vadd.f32 %v2064, %v2288
        %2290 = vmatmul.bf16.gmra.mxu0 %v2024
        %v2291 = vpop.f32.mrf.mxu0
        %v2292 = vadd.f32 %v2064, %v2291
        %v2293 = vpop.f32.mrf.mxu0
        %v2294 = vadd.f32 %v2064, %v2293
        %2295 = vmatmul.bf16.gmra.mxu0 %v2025
        %v2296 = vpop.f32.mrf.mxu0
        %v2297 = vadd.f32 %v2064, %v2296
        %v2298 = vpop.f32.mrf.mxu0
        %v2299 = vadd.f32 %v2064, %v2298
        %2300 = vmatmul.bf16.gmra.mxu0 %v2026
        %v2301 = vpop.f32.mrf.mxu0
        %v2302 = vadd.f32 %v2064, %v2301
        %v2303 = vpop.f32.mrf.mxu0
        %v2304 = vadd.f32 %v2064, %v2303
        %2305 = vmatmul.bf16.gmra.mxu0 %v2027
        %v2306 = vpop.f32.mrf.mxu0
        %v2307 = vadd.f32 %v2064, %v2306
        %v2308 = vpop.f32.mrf.mxu0
        %v2309 = vadd.f32 %v2064, %v2308
        %2310 = vmatmul.bf16.gmra.mxu0 %v2028
        %v2311 = vpop.f32.mrf.mxu0
        %v2312 = vadd.f32 %v2064, %v2311
        %v2313 = vpop.f32.mrf.mxu0
        %v2314 = vadd.f32 %v2064, %v2313
        %2315 = vmatmul.bf16.gmra.mxu0 %v2029
        %v2316 = vpop.f32.mrf.mxu0
        %v2317 = vadd.f32 %v2064, %v2316
        %v2318 = vpop.f32.mrf.mxu0
        %v2319 = vadd.f32 %v2064, %v2318
        %2320 = vdwg.mxu0
        %2321 = vmatpush.bf16.msra.mxu0 %v2197
        %2322 = vmatpush.bf16.msra.mxu0 %v2193
        %2323 = vmatpush.bf16.msra.mxu0 %v2189
        %2324 = vmatpush.bf16.msra.mxu0 %v2185
        %2325 = vmatpush.bf16.msra.mxu0 %v2181
        %2326 = vmatpush.bf16.msra.mxu0 %v2177
        %2327 = vmatpush.bf16.msra.mxu0 %v2173
        %2328 = vmatpush.bf16.msra.mxu0 %v2169
        %2329 = vmatmul.bf16.gmra.mxu0 %v2014
        %v2330 = vpop.f32.mrf.mxu0
        %v2331 = vadd.f32 %v2065, %v2330
        %v2332 = vpop.f32.mrf.mxu0
        %v2333 = vadd.f32 %v2065, %v2332
        %2334 = vmatmul.bf16.gmra.mxu0 %v2015
        %v2335 = vpop.f32.mrf.mxu0
        %v2336 = vadd.f32 %v2065, %v2335
        %v2337 = vpop.f32.mrf.mxu0
        %v2338 = vadd.f32 %v2065, %v2337
        %2339 = vmatmul.bf16.gmra.mxu0 %v2016
        %v2340 = vpop.f32.mrf.mxu0
        %v2341 = vadd.f32 %v2065, %v2340
        %v2342 = vpop.f32.mrf.mxu0
        %v2343 = vadd.f32 %v2065, %v2342
        %2344 = vmatmul.bf16.gmra.mxu0 %v2017
        %v2345 = vpop.f32.mrf.mxu0
        %v2346 = vadd.f32 %v2065, %v2345
        %v2347 = vpop.f32.mrf.mxu0
        %v2348 = vadd.f32 %v2065, %v2347
        %2349 = vmatmul.bf16.gmra.mxu0 %v2018
        %v2350 = vpop.f32.mrf.mxu0
        %v2351 = vadd.f32 %v2065, %v2350
        %v2352 = vpop.f32.mrf.mxu0
        %v2353 = vadd.f32 %v2065, %v2352
        %2354 = vmatmul.bf16.gmra.mxu0 %v2019
        %v2355 = vpop.f32.mrf.mxu0
        %v2356 = vadd.f32 %v2065, %v2355
        %v2357 = vpop.f32.mrf.mxu0
        %v2358 = vadd.f32 %v2065, %v2357
        %2359 = vmatmul.bf16.gmra.mxu0 %v2020
        %v2360 = vpop.f32.mrf.mxu0
        %v2361 = vadd.f32 %v2065, %v2360
        %v2362 = vpop.f32.mrf.mxu0
        %v2363 = vadd.f32 %v2065, %v2362
        %2364 = vmatmul.bf16.gmra.mxu0 %v2021
        %v2365 = vpop.f32.mrf.mxu0
        %v2366 = vadd.f32 %v2065, %v2365
        %v2367 = vpop.f32.mrf.mxu0
        %v2368 = vadd.f32 %v2065, %v2367
        %2369 = vmatmul.bf16.gmra.mxu0 %v2022
        %v2370 = vpop.f32.mrf.mxu0
        %v2371 = vadd.f32 %v2065, %v2370
        %v2372 = vpop.f32.mrf.mxu0
        %v2373 = vadd.f32 %v2065, %v2372
        %2374 = vmatmul.bf16.gmra.mxu0 %v2023
        %v2375 = vpop.f32.mrf.mxu0
        %v2376 = vadd.f32 %v2065, %v2375
        %v2377 = vpop.f32.mrf.mxu0
        %v2378 = vadd.f32 %v2065, %v2377
        %2379 = vmatmul.bf16.gmra.mxu0 %v2024
        %v2380 = vpop.f32.mrf.mxu0
        %v2381 = vadd.f32 %v2065, %v2380
        %v2382 = vpop.f32.mrf.mxu0
        %v2383 = vadd.f32 %v2065, %v2382
        %2384 = vmatmul.bf16.gmra.mxu0 %v2025
        %v2385 = vpop.f32.mrf.mxu0
        %v2386 = vadd.f32 %v2065, %v2385
        %v2387 = vpop.f32.mrf.mxu0
        %v2388 = vadd.f32 %v2065, %v2387
        %2389 = vmatmul.bf16.gmra.mxu0 %v2026
        %v2390 = vpop.f32.mrf.mxu0
        %v2391 = vadd.f32 %v2065, %v2390
        %v2392 = vpop.f32.mrf.mxu0
        %v2393 = vadd.f32 %v2065, %v2392
        %2394 = vmatmul.bf16.gmra.mxu0 %v2027
        %v2395 = vpop.f32.mrf.mxu0
        %v2396 = vadd.f32 %v2065, %v2395
        %v2397 = vpop.f32.mrf.mxu0
        %v2398 = vadd.f32 %v2065, %v2397
        %2399 = vmatmul.bf16.gmra.mxu0 %v2028
        %v2400 = vpop.f32.mrf.mxu0
        %v2401 = vadd.f32 %v2065, %v2400
        %v2402 = vpop.f32.mrf.mxu0
        %v2403 = vadd.f32 %v2065, %v2402
        %2404 = vmatmul.bf16.gmra.mxu0 %v2029
        %v2405 = vpop.f32.mrf.mxu0
        %v2406 = vadd.f32 %v2065, %v2405
        %v2407 = vpop.f32.mrf.mxu0
        %v2408 = vadd.f32 %v2065, %v2407
        %2409 = vdwg.mxu0
        %2410 = vmatpush.bf16.msra.mxu0 %v2198
        %2411 = vmatpush.bf16.msra.mxu0 %v2194
        %2412 = vmatpush.bf16.msra.mxu0 %v2190
        %2413 = vmatpush.bf16.msra.mxu0 %v2186
        %2414 = vmatpush.bf16.msra.mxu0 %v2182
        %2415 = vmatpush.bf16.msra.mxu0 %v2178
        %2416 = vmatpush.bf16.msra.mxu0 %v2174
        %2417 = vmatpush.bf16.msra.mxu0 %v2170
        %2418 = vmatmul.bf16.gmra.mxu0 %v2014
        %v2419 = vpop.f32.mrf.mxu0
        %v2420 = vadd.f32 %v2066, %v2419
        %v2421 = vpop.f32.mrf.mxu0
        %v2422 = vadd.f32 %v2066, %v2421
        %2423 = vmatmul.bf16.gmra.mxu0 %v2015
        %v2424 = vpop.f32.mrf.mxu0
        %v2425 = vadd.f32 %v2066, %v2424
        %v2426 = vpop.f32.mrf.mxu0
        %v2427 = vadd.f32 %v2066, %v2426
        %2428 = vmatmul.bf16.gmra.mxu0 %v2016
        %v2429 = vpop.f32.mrf.mxu0
        %v2430 = vadd.f32 %v2066, %v2429
        %v2431 = vpop.f32.mrf.mxu0
        %v2432 = vadd.f32 %v2066, %v2431
        %2433 = vmatmul.bf16.gmra.mxu0 %v2017
        %v2434 = vpop.f32.mrf.mxu0
        %v2435 = vadd.f32 %v2066, %v2434
        %v2436 = vpop.f32.mrf.mxu0
        %v2437 = vadd.f32 %v2066, %v2436
        %2438 = vmatmul.bf16.gmra.mxu0 %v2018
        %v2439 = vpop.f32.mrf.mxu0
        %v2440 = vadd.f32 %v2066, %v2439
        %v2441 = vpop.f32.mrf.mxu0
        %v2442 = vadd.f32 %v2066, %v2441
        %2443 = vmatmul.bf16.gmra.mxu0 %v2019
        %v2444 = vpop.f32.mrf.mxu0
        %v2445 = vadd.f32 %v2066, %v2444
        %v2446 = vpop.f32.mrf.mxu0
        %v2447 = vadd.f32 %v2066, %v2446
        %2448 = vmatmul.bf16.gmra.mxu0 %v2020
        %v2449 = vpop.f32.mrf.mxu0
        %v2450 = vadd.f32 %v2066, %v2449
        %v2451 = vpop.f32.mrf.mxu0
        %v2452 = vadd.f32 %v2066, %v2451
        %2453 = vmatmul.bf16.gmra.mxu0 %v2021
        %v2454 = vpop.f32.mrf.mxu0
        %v2455 = vadd.f32 %v2066, %v2454
        %v2456 = vpop.f32.mrf.mxu0
        %v2457 = vadd.f32 %v2066, %v2456
        %2458 = vmatmul.bf16.gmra.mxu0 %v2022
        %v2459 = vpop.f32.mrf.mxu0
        %v2460 = vadd.f32 %v2066, %v2459
        %v2461 = vpop.f32.mrf.mxu0
        %v2462 = vadd.f32 %v2066, %v2461
        %2463 = vmatmul.bf16.gmra.mxu0 %v2023
        %v2464 = vpop.f32.mrf.mxu0
        %v2465 = vadd.f32 %v2066, %v2464
        %v2466 = vpop.f32.mrf.mxu0
        %v2467 = vadd.f32 %v2066, %v2466
        %2468 = vmatmul.bf16.gmra.mxu0 %v2024
        %v2469 = vpop.f32.mrf.mxu0
        %v2470 = vadd.f32 %v2066, %v2469
        %v2471 = vpop.f32.mrf.mxu0
        %v2472 = vadd.f32 %v2066, %v2471
        %2473 = vmatmul.bf16.gmra.mxu0 %v2025
        %v2474 = vpop.f32.mrf.mxu0
        %v2475 = vadd.f32 %v2066, %v2474
        %v2476 = vpop.f32.mrf.mxu0
        %v2477 = vadd.f32 %v2066, %v2476
        %2478 = vmatmul.bf16.gmra.mxu0 %v2026
        %v2479 = vpop.f32.mrf.mxu0
        %v2480 = vadd.f32 %v2066, %v2479
        %v2481 = vpop.f32.mrf.mxu0
        %v2482 = vadd.f32 %v2066, %v2481
        %2483 = vmatmul.bf16.gmra.mxu0 %v2027
        %v2484 = vpop.f32.mrf.mxu0
        %v2485 = vadd.f32 %v2066, %v2484
        %v2486 = vpop.f32.mrf.mxu0
        %v2487 = vadd.f32 %v2066, %v2486
        %2488 = vmatmul.bf16.gmra.mxu0 %v2028
        %v2489 = vpop.f32.mrf.mxu0
        %v2490 = vadd.f32 %v2066, %v2489
        %v2491 = vpop.f32.mrf.mxu0
        %v2492 = vadd.f32 %v2066, %v2491
        %2493 = vmatmul.bf16.gmra.mxu0 %v2029
        %v2494 = vpop.f32.mrf.mxu0
        %v2495 = vadd.f32 %v2066, %v2494
        %v2496 = vpop.f32.mrf.mxu0
        %v2497 = vadd.f32 %v2066, %v2496
        %2498 = vdwg.mxu0
        %2499 = vmatpush.bf16.msra.mxu0 %v2199
        %2500 = vmatpush.bf16.msra.mxu0 %v2195
        %2501 = vmatpush.bf16.msra.mxu0 %v2191
        %2502 = vmatpush.bf16.msra.mxu0 %v2187
        %2503 = vmatpush.bf16.msra.mxu0 %v2183
        %2504 = vmatpush.bf16.msra.mxu0 %v2179
        %2505 = vmatpush.bf16.msra.mxu0 %v2175
        %2506 = vmatpush.bf16.msra.mxu0 %v2171
        %2507 = vmatmul.bf16.gmra.mxu0 %v2014
        %v2508 = vpop.f32.mrf.mxu0
        %v2509 = vadd.f32 %v2067, %v2508
        %v2510 = vpop.f32.mrf.mxu0
        %v2511 = vadd.f32 %v2067, %v2510
        %2512 = vmatmul.bf16.gmra.mxu0 %v2015
        %v2513 = vpop.f32.mrf.mxu0
        %v2514 = vadd.f32 %v2067, %v2513
        %v2515 = vpop.f32.mrf.mxu0
        %v2516 = vadd.f32 %v2067, %v2515
        %2517 = vmatmul.bf16.gmra.mxu0 %v2016
        %v2518 = vpop.f32.mrf.mxu0
        %v2519 = vadd.f32 %v2067, %v2518
        %v2520 = vpop.f32.mrf.mxu0
        %v2521 = vadd.f32 %v2067, %v2520
        %2522 = vmatmul.bf16.gmra.mxu0 %v2017
        %v2523 = vpop.f32.mrf.mxu0
        %v2524 = vadd.f32 %v2067, %v2523
        %v2525 = vpop.f32.mrf.mxu0
        %v2526 = vadd.f32 %v2067, %v2525
        %2527 = vmatmul.bf16.gmra.mxu0 %v2018
        %v2528 = vpop.f32.mrf.mxu0
        %v2529 = vadd.f32 %v2067, %v2528
        %v2530 = vpop.f32.mrf.mxu0
        %v2531 = vadd.f32 %v2067, %v2530
        %2532 = vmatmul.bf16.gmra.mxu0 %v2019
        %v2533 = vpop.f32.mrf.mxu0
        %v2534 = vadd.f32 %v2067, %v2533
        %v2535 = vpop.f32.mrf.mxu0
        %v2536 = vadd.f32 %v2067, %v2535
        %2537 = vmatmul.bf16.gmra.mxu0 %v2020
        %v2538 = vpop.f32.mrf.mxu0
        %v2539 = vadd.f32 %v2067, %v2538
        %v2540 = vpop.f32.mrf.mxu0
        %v2541 = vadd.f32 %v2067, %v2540
        %2542 = vmatmul.bf16.gmra.mxu0 %v2021
        %v2543 = vpop.f32.mrf.mxu0
        %v2544 = vadd.f32 %v2067, %v2543
        %v2545 = vpop.f32.mrf.mxu0
        %v2546 = vadd.f32 %v2067, %v2545
        %2547 = vmatmul.bf16.gmra.mxu0 %v2022
        %v2548 = vpop.f32.mrf.mxu0
        %v2549 = vadd.f32 %v2067, %v2548
        %v2550 = vpop.f32.mrf.mxu0
        %v2551 = vadd.f32 %v2067, %v2550
        %2552 = vmatmul.bf16.gmra.mxu0 %v2023
        %v2553 = vpop.f32.mrf.mxu0
        %v2554 = vadd.f32 %v2067, %v2553
        %v2555 = vpop.f32.mrf.mxu0
        %v2556 = vadd.f32 %v2067, %v2555
        %2557 = vmatmul.bf16.gmra.mxu0 %v2024
        %v2558 = vpop.f32.mrf.mxu0
        %v2559 = vadd.f32 %v2067, %v2558
        %v2560 = vpop.f32.mrf.mxu0
        %v2561 = vadd.f32 %v2067, %v2560
        %2562 = vmatmul.bf16.gmra.mxu0 %v2025
        %v2563 = vpop.f32.mrf.mxu0
        %v2564 = vadd.f32 %v2067, %v2563
        %v2565 = vpop.f32.mrf.mxu0
        %v2566 = vadd.f32 %v2067, %v2565
        %2567 = vmatmul.bf16.gmra.mxu0 %v2026
        %v2568 = vpop.f32.mrf.mxu0
        %v2569 = vadd.f32 %v2067, %v2568
        %v2570 = vpop.f32.mrf.mxu0
        %v2571 = vadd.f32 %v2067, %v2570
        %2572 = vmatmul.bf16.gmra.mxu0 %v2027
        %v2573 = vpop.f32.mrf.mxu0
        %v2574 = vadd.f32 %v2067, %v2573
        %v2575 = vpop.f32.mrf.mxu0
        %v2576 = vadd.f32 %v2067, %v2575
        %2577 = vmatmul.bf16.gmra.mxu0 %v2028
        %v2578 = vpop.f32.mrf.mxu0
        %v2579 = vadd.f32 %v2067, %v2578
        %v2580 = vpop.f32.mrf.mxu0
        %v2581 = vadd.f32 %v2067, %v2580
        %2582 = vmatmul.bf16.gmra.mxu0 %v2029
        %v2583 = vpop.f32.mrf.mxu0
        %v2584 = vadd.f32 %v2067, %v2583
        %v2585 = vpop.f32.mrf.mxu0
        %v2586 = vadd.f32 %v2067, %v2585
        %2587 = vdwg.mxu0
        %v2588 = vmax.f32 %v2242, 0.0
        %v2589 = vmax.f32 %v2331, 0.0
        %v2590 = vmax.f32 %v2420, 0.0
        %v2591 = vmax.f32 %v2509, 0.0
        %v2592 = vmax.f32 %v2244, 0.0
        %v2593 = vmax.f32 %v2333, 0.0
        %v2594 = vmax.f32 %v2422, 0.0
        %v2595 = vmax.f32 %v2511, 0.0
        %v2596 = vmax.f32 %v2247, 0.0
        %v2597 = vmax.f32 %v2336, 0.0
        %v2598 = vmax.f32 %v2425, 0.0
        %v2599 = vmax.f32 %v2514, 0.0
        %v2600 = vmax.f32 %v2249, 0.0
        %v2601 = vmax.f32 %v2338, 0.0
        %v2602 = vmax.f32 %v2427, 0.0
        %v2603 = vmax.f32 %v2516, 0.0
        %v2604 = vmax.f32 %v2252, 0.0
        %v2605 = vmax.f32 %v2341, 0.0
        %v2606 = vmax.f32 %v2430, 0.0
        %v2607 = vmax.f32 %v2519, 0.0
        %v2608 = vmax.f32 %v2254, 0.0
        %v2609 = vmax.f32 %v2343, 0.0
        %v2610 = vmax.f32 %v2432, 0.0
        %v2611 = vmax.f32 %v2521, 0.0
        %v2612 = vmax.f32 %v2257, 0.0
        %v2613 = vmax.f32 %v2346, 0.0
        %v2614 = vmax.f32 %v2435, 0.0
        %v2615 = vmax.f32 %v2524, 0.0
        %v2616 = vmax.f32 %v2259, 0.0
        %v2617 = vmax.f32 %v2348, 0.0
        %v2618 = vmax.f32 %v2437, 0.0
        %v2619 = vmax.f32 %v2526, 0.0
        %v2620 = vmax.f32 %v2262, 0.0
        %v2621 = vmax.f32 %v2351, 0.0
        %v2622 = vmax.f32 %v2440, 0.0
        %v2623 = vmax.f32 %v2529, 0.0
        %v2624 = vmax.f32 %v2264, 0.0
        %v2625 = vmax.f32 %v2353, 0.0
        %v2626 = vmax.f32 %v2442, 0.0
        %v2627 = vmax.f32 %v2531, 0.0
        %v2628 = vmax.f32 %v2267, 0.0
        %v2629 = vmax.f32 %v2356, 0.0
        %v2630 = vmax.f32 %v2445, 0.0
        %v2631 = vmax.f32 %v2534, 0.0
        %v2632 = vmax.f32 %v2269, 0.0
        %v2633 = vmax.f32 %v2358, 0.0
        %v2634 = vmax.f32 %v2447, 0.0
        %v2635 = vmax.f32 %v2536, 0.0
        %v2636 = vmax.f32 %v2272, 0.0
        %v2637 = vmax.f32 %v2361, 0.0
        %v2638 = vmax.f32 %v2450, 0.0
        %v2639 = vmax.f32 %v2539, 0.0
        %v2640 = vmax.f32 %v2274, 0.0
        %v2641 = vmax.f32 %v2363, 0.0
        %v2642 = vmax.f32 %v2452, 0.0
        %v2643 = vmax.f32 %v2541, 0.0
        %v2644 = vmax.f32 %v2277, 0.0
        %v2645 = vmax.f32 %v2366, 0.0
        %v2646 = vmax.f32 %v2455, 0.0
        %v2647 = vmax.f32 %v2544, 0.0
        %v2648 = vmax.f32 %v2279, 0.0
        %v2649 = vmax.f32 %v2368, 0.0
        %v2650 = vmax.f32 %v2457, 0.0
        %v2651 = vmax.f32 %v2546, 0.0
        %v2652 = vmax.f32 %v2282, 0.0
        %v2653 = vmax.f32 %v2371, 0.0
        %v2654 = vmax.f32 %v2460, 0.0
        %v2655 = vmax.f32 %v2549, 0.0
        %v2656 = vmax.f32 %v2284, 0.0
        %v2657 = vmax.f32 %v2373, 0.0
        %v2658 = vmax.f32 %v2462, 0.0
        %v2659 = vmax.f32 %v2551, 0.0
        %v2660 = vmax.f32 %v2287, 0.0
        %v2661 = vmax.f32 %v2376, 0.0
        %v2662 = vmax.f32 %v2465, 0.0
        %v2663 = vmax.f32 %v2554, 0.0
        %v2664 = vmax.f32 %v2289, 0.0
        %v2665 = vmax.f32 %v2378, 0.0
        %v2666 = vmax.f32 %v2467, 0.0
        %v2667 = vmax.f32 %v2556, 0.0
        %v2668 = vmax.f32 %v2292, 0.0
        %v2669 = vmax.f32 %v2381, 0.0
        %v2670 = vmax.f32 %v2470, 0.0
        %v2671 = vmax.f32 %v2559, 0.0
        %v2672 = vmax.f32 %v2294, 0.0
        %v2673 = vmax.f32 %v2383, 0.0
        %v2674 = vmax.f32 %v2472, 0.0
        %v2675 = vmax.f32 %v2561, 0.0
        %v2676 = vmax.f32 %v2297, 0.0
        %v2677 = vmax.f32 %v2386, 0.0
        %v2678 = vmax.f32 %v2475, 0.0
        %v2679 = vmax.f32 %v2564, 0.0
        %v2680 = vmax.f32 %v2299, 0.0
        %v2681 = vmax.f32 %v2388, 0.0
        %v2682 = vmax.f32 %v2477, 0.0
        %v2683 = vmax.f32 %v2566, 0.0
        %v2684 = vmax.f32 %v2302, 0.0
        %v2685 = vmax.f32 %v2391, 0.0
        %v2686 = vmax.f32 %v2480, 0.0
        %v2687 = vmax.f32 %v2569, 0.0
        %v2688 = vmax.f32 %v2304, 0.0
        %v2689 = vmax.f32 %v2393, 0.0
        %v2690 = vmax.f32 %v2482, 0.0
        %v2691 = vmax.f32 %v2571, 0.0
        %v2692 = vmax.f32 %v2307, 0.0
        %v2693 = vmax.f32 %v2396, 0.0
        %v2694 = vmax.f32 %v2485, 0.0
        %v2695 = vmax.f32 %v2574, 0.0
        %v2696 = vmax.f32 %v2309, 0.0
        %v2697 = vmax.f32 %v2398, 0.0
        %v2698 = vmax.f32 %v2487, 0.0
        %v2699 = vmax.f32 %v2576, 0.0
        %v2700 = vmax.f32 %v2312, 0.0
        %v2701 = vmax.f32 %v2401, 0.0
        %v2702 = vmax.f32 %v2490, 0.0
        %v2703 = vmax.f32 %v2579, 0.0
        %v2704 = vmax.f32 %v2314, 0.0
        %v2705 = vmax.f32 %v2403, 0.0
        %v2706 = vmax.f32 %v2492, 0.0
        %v2707 = vmax.f32 %v2581, 0.0
        %v2708 = vmax.f32 %v2317, 0.0
        %v2709 = vmax.f32 %v2406, 0.0
        %v2710 = vmax.f32 %v2495, 0.0
        %v2711 = vmax.f32 %v2584, 0.0
        %v2712 = vmax.f32 %v2319, 0.0
        %v2713 = vmax.f32 %v2408, 0.0
        %v2714 = vmax.f32 %v2497, 0.0
        %v2715 = vmax.f32 %v2586, 0.0
        %v2716 = vpack.c.bf16 %v2592, %v2588
        %v2717 = vpack.c.bf16 %v2593, %v2589
        %v2718 = vpack.c.bf16 %v2594, %v2590
        %v2719 = vpack.c.bf16 %v2595, %v2591
        %v2720 = vpack.c.bf16 %v2600, %v2596
        %v2721 = vpack.c.bf16 %v2601, %v2597
        %v2722 = vpack.c.bf16 %v2602, %v2598
        %v2723 = vpack.c.bf16 %v2603, %v2599
        %v2724 = vpack.c.bf16 %v2608, %v2604
        %v2725 = vpack.c.bf16 %v2609, %v2605
        %v2726 = vpack.c.bf16 %v2610, %v2606
        %v2727 = vpack.c.bf16 %v2611, %v2607
        %v2728 = vpack.c.bf16 %v2616, %v2612
        %v2729 = vpack.c.bf16 %v2617, %v2613
        %v2730 = vpack.c.bf16 %v2618, %v2614
        %v2731 = vpack.c.bf16 %v2619, %v2615
        %v2732 = vpack.c.bf16 %v2624, %v2620
        %v2733 = vpack.c.bf16 %v2625, %v2621
        %v2734 = vpack.c.bf16 %v2626, %v2622
        %v2735 = vpack.c.bf16 %v2627, %v2623
        %v2736 = vpack.c.bf16 %v2632, %v2628
        %v2737 = vpack.c.bf16 %v2633, %v2629
        %v2738 = vpack.c.bf16 %v2634, %v2630
        %v2739 = vpack.c.bf16 %v2635, %v2631
        %v2740 = vpack.c.bf16 %v2640, %v2636
        %v2741 = vpack.c.bf16 %v2641, %v2637
        %v2742 = vpack.c.bf16 %v2642, %v2638
        %v2743 = vpack.c.bf16 %v2643, %v2639
        %v2744 = vpack.c.bf16 %v2648, %v2644
        %v2745 = vpack.c.bf16 %v2649, %v2645
        %v2746 = vpack.c.bf16 %v2650, %v2646
        %v2747 = vpack.c.bf16 %v2651, %v2647
        %v2748 = vpack.c.bf16 %v2656, %v2652
        %v2749 = vpack.c.bf16 %v2657, %v2653
        %v2750 = vpack.c.bf16 %v2658, %v2654
        %v2751 = vpack.c.bf16 %v2659, %v2655
        %v2752 = vpack.c.bf16 %v2664, %v2660
        %v2753 = vpack.c.bf16 %v2665, %v2661
        %v2754 = vpack.c.bf16 %v2666, %v2662
        %v2755 = vpack.c.bf16 %v2667, %v2663
        %v2756 = vpack.c.bf16 %v2672, %v2668
        %v2757 = vpack.c.bf16 %v2673, %v2669
        %v2758 = vpack.c.bf16 %v2674, %v2670
        %v2759 = vpack.c.bf16 %v2675, %v2671
        %v2760 = vpack.c.bf16 %v2680, %v2676
        %v2761 = vpack.c.bf16 %v2681, %v2677
        %v2762 = vpack.c.bf16 %v2682, %v2678
        %v2763 = vpack.c.bf16 %v2683, %v2679
        %v2764 = vpack.c.bf16 %v2688, %v2684
        %v2765 = vpack.c.bf16 %v2689, %v2685
        %v2766 = vpack.c.bf16 %v2690, %v2686
        %v2767 = vpack.c.bf16 %v2691, %v2687
        %v2768 = vpack.c.bf16 %v2696, %v2692
        %v2769 = vpack.c.bf16 %v2697, %v2693
        %v2770 = vpack.c.bf16 %v2698, %v2694
        %v2771 = vpack.c.bf16 %v2699, %v2695
        %v2772 = vpack.c.bf16 %v2704, %v2700
        %v2773 = vpack.c.bf16 %v2705, %v2701
        %v2774 = vpack.c.bf16 %v2706, %v2702
        %v2775 = vpack.c.bf16 %v2707, %v2703
        %v2776 = vpack.c.bf16 %v2712, %v2708
        %v2777 = vpack.c.bf16 %v2713, %v2709
        %v2778 = vpack.c.bf16 %v2714, %v2710
        %v2779 = vpack.c.bf16 %v2715, %v2711
        %v2780 = vld [vmem:[#allocation11] sm:$0xf]
        %v2781 = vld [vmem:[#allocation11 + $0x4] sm:$0xf]
        %v2782 = vld [vmem:[#allocation11 + $0x8] sm:$0xf]
        %v2783 = vld [vmem:[#allocation11 + $0xc] sm:$0xf]
        %v2784 = vld [vmem:[#allocation11 + $0x10] sm:$0xf]
        %v2785 = vld [vmem:[#allocation11 + $0x14] sm:$0xf]
        %v2786 = vld [vmem:[#allocation11 + $0x18] sm:$0xf]
        %v2787 = vld [vmem:[#allocation11 + $0x1c] sm:$0xf]
        %v2788 = vld [vmem:[#allocation11 + $0x20] sm:$0xf]
        %v2789 = vld [vmem:[#allocation11 + $0x24] sm:$0xf]
        %v2790 = vld [vmem:[#allocation11 + $0x28] sm:$0xf]
        %v2791 = vld [vmem:[#allocation11 + $0x2c] sm:$0xf]
        %v2792 = vld [vmem:[#allocation11 + $0x30] sm:$0xf]
        %v2793 = vld [vmem:[#allocation11 + $0x34] sm:$0xf]
        %v2794 = vld [vmem:[#allocation11 + $0x38] sm:$0xf]
        %v2795 = vld [vmem:[#allocation11 + $0x3c] sm:$0xf]
        %v2796 = vld [vmem:[#allocation11 + $0x40] sm:$0xf]
        %v2797 = vld [vmem:[#allocation11 + $0x44] sm:$0xf]
        %v2798 = vld [vmem:[#allocation11 + $0x48] sm:$0xf]
        %v2799 = vld [vmem:[#allocation11 + $0x4c] sm:$0xf]
        %v2800 = vld [vmem:[#allocation11 + $0x50] sm:$0xf]
        %v2801 = vld [vmem:[#allocation11 + $0x54] sm:$0xf]
        %v2802 = vld [vmem:[#allocation11 + $0x58] sm:$0xf]
        %v2803 = vld [vmem:[#allocation11 + $0x5c] sm:$0xf]
        %v2804 = vld [vmem:[#allocation11 + $0x60] sm:$0xf]
        %v2805 = vld [vmem:[#allocation11 + $0x64] sm:$0xf]
        %v2806 = vld [vmem:[#allocation11 + $0x68] sm:$0xf]
        %v2807 = vld [vmem:[#allocation11 + $0x6c] sm:$0xf]
        %v2808 = vld [vmem:[#allocation11 + $0x70] sm:$0xf]
        %v2809 = vld [vmem:[#allocation11 + $0x74] sm:$0xf]
        %v2810 = vld [vmem:[#allocation11 + $0x78] sm:$0xf]
        %v2811 = vld [vmem:[#allocation11 + $0x7c] sm:$0xf]
        %v2812 = vld [vmem:[#allocation11 + $0x80] sm:$0xf]
        %v2813 = vld [vmem:[#allocation11 + $0x84] sm:$0xf]
        %v2814 = vld [vmem:[#allocation11 + $0x88] sm:$0xf]
        %v2815 = vld [vmem:[#allocation11 + $0x8c] sm:$0xf]
        %v2816 = vld [vmem:[#allocation11 + $0x90] sm:$0xf]
        %v2817 = vld [vmem:[#allocation11 + $0x94] sm:$0xf]
        %v2818 = vld [vmem:[#allocation11 + $0x98] sm:$0xf]
        %v2819 = vld [vmem:[#allocation11 + $0x9c] sm:$0xf]
        %v2820 = vld [vmem:[#allocation11 + $0xa0] sm:$0xf]
        %v2821 = vld [vmem:[#allocation11 + $0xa4] sm:$0xf]
        %v2822 = vld [vmem:[#allocation11 + $0xa8] sm:$0xf]
        %v2823 = vld [vmem:[#allocation11 + $0xac] sm:$0xf]
        %v2824 = vld [vmem:[#allocation11 + $0xb0] sm:$0xf]
        %v2825 = vld [vmem:[#allocation11 + $0xb4] sm:$0xf]
        %v2826 = vld [vmem:[#allocation11 + $0xb8] sm:$0xf]
        %v2827 = vld [vmem:[#allocation11 + $0xbc] sm:$0xf]
        %v2828 = vld [vmem:[#allocation11 + $0xc0] sm:$0xf]
        %v2829 = vld [vmem:[#allocation11 + $0xc4] sm:$0xf]
        %v2830 = vld [vmem:[#allocation11 + $0xc8] sm:$0xf]
        %v2831 = vld [vmem:[#allocation11 + $0xcc] sm:$0xf]
        %v2832 = vld [vmem:[#allocation11 + $0xd0] sm:$0xf]
        %v2833 = vld [vmem:[#allocation11 + $0xd4] sm:$0xf]
        %v2834 = vld [vmem:[#allocation11 + $0xd8] sm:$0xf]
        %v2835 = vld [vmem:[#allocation11 + $0xdc] sm:$0xf]
        %v2836 = vld [vmem:[#allocation11 + $0xe0] sm:$0xf]
        %v2837 = vld [vmem:[#allocation11 + $0xe4] sm:$0xf]
        %v2838 = vld [vmem:[#allocation11 + $0xe8] sm:$0xf]
        %v2839 = vld [vmem:[#allocation11 + $0xec] sm:$0xf]
        %v2840 = vld [vmem:[#allocation11 + $0xf0] sm:$0xf]
        %v2841 = vld [vmem:[#allocation11 + $0xf4] sm:$0xf]
        %v2842 = vld [vmem:[#allocation11 + $0xf8] sm:$0xf]
        %v2843 = vld [vmem:[#allocation11 + $0xfc] sm:$0xf]
        %v2908 = vunpack.c.l.b16 %v2780
        %v2909 = vunpack.c.l.b16 %v2781
        %v2910 = vunpack.c.l.b16 %v2782
        %v2911 = vunpack.c.l.b16 %v2783
        %v2912 = vunpack.c.l.b16 %v2784
        %v2913 = vunpack.c.l.b16 %v2785
        %v2914 = vunpack.c.l.b16 %v2786
        %v2915 = vunpack.c.l.b16 %v2787
        %v2916 = vunpack.c.l.b16 %v2788
        %v2917 = vunpack.c.l.b16 %v2789
        %v2918 = vunpack.c.l.b16 %v2790
        %v2919 = vunpack.c.l.b16 %v2791
        %v2920 = vunpack.c.l.b16 %v2792
        %v2921 = vunpack.c.l.b16 %v2793
        %v2922 = vunpack.c.l.b16 %v2794
        %v2923 = vunpack.c.l.b16 %v2795
        %v2924 = vunpack.c.l.b16 %v2796
        %v2925 = vunpack.c.l.b16 %v2797
        %v2926 = vunpack.c.l.b16 %v2798
        %v2927 = vunpack.c.l.b16 %v2799
        %v2928 = vunpack.c.l.b16 %v2800
        %v2929 = vunpack.c.l.b16 %v2801
        %v2930 = vunpack.c.l.b16 %v2802
        %v2931 = vunpack.c.l.b16 %v2803
        %v2932 = vunpack.c.l.b16 %v2804
        %v2933 = vunpack.c.l.b16 %v2805
        %v2934 = vunpack.c.l.b16 %v2806
        %v2935 = vunpack.c.l.b16 %v2807
        %v2936 = vunpack.c.l.b16 %v2808
        %v2937 = vunpack.c.l.b16 %v2809
        %v2938 = vunpack.c.l.b16 %v2810
        %v2939 = vunpack.c.l.b16 %v2811
        %v2940 = vunpack.c.l.b16 %v2812
        %v2941 = vunpack.c.l.b16 %v2813
        %v2942 = vunpack.c.l.b16 %v2814
        %v2943 = vunpack.c.l.b16 %v2815
        %v2944 = vunpack.c.l.b16 %v2816
        %v2945 = vunpack.c.l.b16 %v2817
        %v2946 = vunpack.c.l.b16 %v2818
        %v2947 = vunpack.c.l.b16 %v2819
        %v2948 = vunpack.c.l.b16 %v2820
        %v2949 = vunpack.c.l.b16 %v2821
        %v2950 = vunpack.c.l.b16 %v2822
        %v2951 = vunpack.c.l.b16 %v2823
        %v2952 = vunpack.c.l.b16 %v2824
        %v2953 = vunpack.c.l.b16 %v2825
        %v2954 = vunpack.c.l.b16 %v2826
        %v2955 = vunpack.c.l.b16 %v2827
        %v2956 = vunpack.c.l.b16 %v2828
        %v2957 = vunpack.c.l.b16 %v2829
        %v2958 = vunpack.c.l.b16 %v2830
        %v2959 = vunpack.c.l.b16 %v2831
        %v2960 = vunpack.c.l.b16 %v2832
        %v2961 = vunpack.c.l.b16 %v2833
        %v2962 = vunpack.c.l.b16 %v2834
        %v2963 = vunpack.c.l.b16 %v2835
        %v2964 = vunpack.c.l.b16 %v2836
        %v2965 = vunpack.c.l.b16 %v2837
        %v2966 = vunpack.c.l.b16 %v2838
        %v2967 = vunpack.c.l.b16 %v2839
        %v2968 = vunpack.c.l.b16 %v2840
        %v2969 = vunpack.c.l.b16 %v2841
        %v2970 = vunpack.c.l.b16 %v2842
        %v2971 = vunpack.c.l.b16 %v2843
        %v2972 = vpack.c.b16 %v2909, %v2908
        %v2973 = vpack.c.b16 %v2911, %v2910
        %v2974 = vpack.c.b16 %v2913, %v2912
        %v2975 = vpack.c.b16 %v2915, %v2914
        %v2976 = vpack.c.b16 %v2917, %v2916
        %v2977 = vpack.c.b16 %v2919, %v2918
        %v2978 = vpack.c.b16 %v2921, %v2920
        %v2979 = vpack.c.b16 %v2923, %v2922
        %v2980 = vpack.c.b16 %v2925, %v2924
        %v2981 = vpack.c.b16 %v2927, %v2926
        %v2982 = vpack.c.b16 %v2929, %v2928
        %v2983 = vpack.c.b16 %v2931, %v2930
        %v2984 = vpack.c.b16 %v2933, %v2932
        %v2985 = vpack.c.b16 %v2935, %v2934
        %v2986 = vpack.c.b16 %v2937, %v2936
        %v2987 = vpack.c.b16 %v2939, %v2938
        %v2988 = vpack.c.b16 %v2941, %v2940
        %v2989 = vpack.c.b16 %v2943, %v2942
        %v2990 = vpack.c.b16 %v2945, %v2944
        %v2991 = vpack.c.b16 %v2947, %v2946
        %v2992 = vpack.c.b16 %v2949, %v2948
        %v2993 = vpack.c.b16 %v2951, %v2950
        %v2994 = vpack.c.b16 %v2953, %v2952
        %v2995 = vpack.c.b16 %v2955, %v2954
        %v2996 = vpack.c.b16 %v2957, %v2956
        %v2997 = vpack.c.b16 %v2959, %v2958
        %v2998 = vpack.c.b16 %v2961, %v2960
        %v2999 = vpack.c.b16 %v2963, %v2962
        %v3000 = vpack.c.b16 %v2965, %v2964
        %v3001 = vpack.c.b16 %v2967, %v2966
        %v3002 = vpack.c.b16 %v2969, %v2968
        %v3003 = vpack.c.b16 %v2971, %v2970
        %3036 = vmatpush.bf16.msra.mxu0 %v2979
        %3037 = vmatpush.bf16.msra.mxu0 %v2978
        %3038 = vmatpush.bf16.msra.mxu0 %v2977
        %3039 = vmatpush.bf16.msra.mxu0 %v2976
        %3040 = vmatpush.bf16.msra.mxu0 %v2975
        %3041 = vmatpush.bf16.msra.mxu0 %v2974
        %3042 = vmatpush.bf16.msra.mxu0 %v2973
        %3043 = vmatpush.bf16.msra.mxu0 %v2972
        %3044 = vmatmul.bf16.gmra.mxu0 %v2716
        %v3045 = vpop.f32.mrf.mxu0
        %v3046 = vadd.f32 0.0, %v3045
        %v3047 = vpop.f32.mrf.mxu0
        %v3048 = vadd.f32 0.0, %v3047
        %3049 = vmatmul.bf16.gmra.mxu0 %v2720
        %v3050 = vpop.f32.mrf.mxu0
        %v3051 = vadd.f32 0.0, %v3050
        %v3052 = vpop.f32.mrf.mxu0
        %v3053 = vadd.f32 0.0, %v3052
        %3054 = vmatmul.bf16.gmra.mxu0 %v2724
        %v3055 = vpop.f32.mrf.mxu0
        %v3056 = vadd.f32 0.0, %v3055
        %v3057 = vpop.f32.mrf.mxu0
        %v3058 = vadd.f32 0.0, %v3057
        %3059 = vmatmul.bf16.gmra.mxu0 %v2728
        %v3060 = vpop.f32.mrf.mxu0
        %v3061 = vadd.f32 0.0, %v3060
        %v3062 = vpop.f32.mrf.mxu0
        %v3063 = vadd.f32 0.0, %v3062
        %3064 = vmatmul.bf16.gmra.mxu0 %v2732
        %v3065 = vpop.f32.mrf.mxu0
        %v3066 = vadd.f32 0.0, %v3065
        %v3067 = vpop.f32.mrf.mxu0
        %v3068 = vadd.f32 0.0, %v3067
        %3069 = vmatmul.bf16.gmra.mxu0 %v2736
        %v3070 = vpop.f32.mrf.mxu0
        %v3071 = vadd.f32 0.0, %v3070
        %v3072 = vpop.f32.mrf.mxu0
        %v3073 = vadd.f32 0.0, %v3072
        %3074 = vmatmul.bf16.gmra.mxu0 %v2740
        %v3075 = vpop.f32.mrf.mxu0
        %v3076 = vadd.f32 0.0, %v3075
        %v3077 = vpop.f32.mrf.mxu0
        %v3078 = vadd.f32 0.0, %v3077
        %3079 = vmatmul.bf16.gmra.mxu0 %v2744
        %v3080 = vpop.f32.mrf.mxu0
        %v3081 = vadd.f32 0.0, %v3080
        %v3082 = vpop.f32.mrf.mxu0
        %v3083 = vadd.f32 0.0, %v3082
        %3084 = vmatmul.bf16.gmra.mxu0 %v2748
        %v3085 = vpop.f32.mrf.mxu0
        %v3086 = vadd.f32 0.0, %v3085
        %v3087 = vpop.f32.mrf.mxu0
        %v3088 = vadd.f32 0.0, %v3087
        %3089 = vmatmul.bf16.gmra.mxu0 %v2752
        %v3090 = vpop.f32.mrf.mxu0
        %v3091 = vadd.f32 0.0, %v3090
        %v3092 = vpop.f32.mrf.mxu0
        %v3093 = vadd.f32 0.0, %v3092
        %3094 = vmatmul.bf16.gmra.mxu0 %v2756
        %v3095 = vpop.f32.mrf.mxu0
        %v3096 = vadd.f32 0.0, %v3095
        %v3097 = vpop.f32.mrf.mxu0
        %v3098 = vadd.f32 0.0, %v3097
        %3099 = vmatmul.bf16.gmra.mxu0 %v2760
        %v3100 = vpop.f32.mrf.mxu0
        %v3101 = vadd.f32 0.0, %v3100
        %v3102 = vpop.f32.mrf.mxu0
        %v3103 = vadd.f32 0.0, %v3102
        %3104 = vmatmul.bf16.gmra.mxu0 %v2764
        %v3105 = vpop.f32.mrf.mxu0
        %v3106 = vadd.f32 0.0, %v3105
        %v3107 = vpop.f32.mrf.mxu0
        %v3108 = vadd.f32 0.0, %v3107
        %3109 = vmatmul.bf16.gmra.mxu0 %v2768
        %v3110 = vpop.f32.mrf.mxu0
        %v3111 = vadd.f32 0.0, %v3110
        %v3112 = vpop.f32.mrf.mxu0
        %v3113 = vadd.f32 0.0, %v3112
        %3114 = vmatmul.bf16.gmra.mxu0 %v2772
        %v3115 = vpop.f32.mrf.mxu0
        %v3116 = vadd.f32 0.0, %v3115
        %v3117 = vpop.f32.mrf.mxu0
        %v3118 = vadd.f32 0.0, %v3117
        %3119 = vmatmul.bf16.gmra.mxu0 %v2776
        %v3120 = vpop.f32.mrf.mxu0
        %v3121 = vadd.f32 0.0, %v3120
        %v3122 = vpop.f32.mrf.mxu0
        %v3123 = vadd.f32 0.0, %v3122
        %3124 = vdwg.mxu0
        %3125 = vmatpush.bf16.msra.mxu0 %v2987
        %3126 = vmatpush.bf16.msra.mxu0 %v2986
        %3127 = vmatpush.bf16.msra.mxu0 %v2985
        %3128 = vmatpush.bf16.msra.mxu0 %v2984
        %3129 = vmatpush.bf16.msra.mxu0 %v2983
        %3130 = vmatpush.bf16.msra.mxu0 %v2982
        %3131 = vmatpush.bf16.msra.mxu0 %v2981
        %3132 = vmatpush.bf16.msra.mxu0 %v2980
        %3133 = vmatmul.bf16.gmra.mxu0 %v2717
        %v3134 = vpop.f32.mrf.mxu0
        %v3135 = vadd.f32 %v3046, %v3134
        %v3136 = vpop.f32.mrf.mxu0
        %v3137 = vadd.f32 %v3048, %v3136
        %3138 = vmatmul.bf16.gmra.mxu0 %v2721
        %v3139 = vpop.f32.mrf.mxu0
        %v3140 = vadd.f32 %v3051, %v3139
        %v3141 = vpop.f32.mrf.mxu0
        %v3142 = vadd.f32 %v3053, %v3141
        %3143 = vmatmul.bf16.gmra.mxu0 %v2725
        %v3144 = vpop.f32.mrf.mxu0
        %v3145 = vadd.f32 %v3056, %v3144
        %v3146 = vpop.f32.mrf.mxu0
        %v3147 = vadd.f32 %v3058, %v3146
        %3148 = vmatmul.bf16.gmra.mxu0 %v2729
        %v3149 = vpop.f32.mrf.mxu0
        %v3150 = vadd.f32 %v3061, %v3149
        %v3151 = vpop.f32.mrf.mxu0
        %v3152 = vadd.f32 %v3063, %v3151
        %3153 = vmatmul.bf16.gmra.mxu0 %v2733
        %v3154 = vpop.f32.mrf.mxu0
        %v3155 = vadd.f32 %v3066, %v3154
        %v3156 = vpop.f32.mrf.mxu0
        %v3157 = vadd.f32 %v3068, %v3156
        %3158 = vmatmul.bf16.gmra.mxu0 %v2737
        %v3159 = vpop.f32.mrf.mxu0
        %v3160 = vadd.f32 %v3071, %v3159
        %v3161 = vpop.f32.mrf.mxu0
        %v3162 = vadd.f32 %v3073, %v3161
        %3163 = vmatmul.bf16.gmra.mxu0 %v2741
        %v3164 = vpop.f32.mrf.mxu0
        %v3165 = vadd.f32 %v3076, %v3164
        %v3166 = vpop.f32.mrf.mxu0
        %v3167 = vadd.f32 %v3078, %v3166
        %3168 = vmatmul.bf16.gmra.mxu0 %v2745
        %v3169 = vpop.f32.mrf.mxu0
        %v3170 = vadd.f32 %v3081, %v3169
        %v3171 = vpop.f32.mrf.mxu0
        %v3172 = vadd.f32 %v3083, %v3171
        %3173 = vmatmul.bf16.gmra.mxu0 %v2749
        %v3174 = vpop.f32.mrf.mxu0
        %v3175 = vadd.f32 %v3086, %v3174
        %v3176 = vpop.f32.mrf.mxu0
        %v3177 = vadd.f32 %v3088, %v3176
        %3178 = vmatmul.bf16.gmra.mxu0 %v2753
        %v3179 = vpop.f32.mrf.mxu0
        %v3180 = vadd.f32 %v3091, %v3179
        %v3181 = vpop.f32.mrf.mxu0
        %v3182 = vadd.f32 %v3093, %v3181
        %3183 = vmatmul.bf16.gmra.mxu0 %v2757
        %v3184 = vpop.f32.mrf.mxu0
        %v3185 = vadd.f32 %v3096, %v3184
        %v3186 = vpop.f32.mrf.mxu0
        %v3187 = vadd.f32 %v3098, %v3186
        %3188 = vmatmul.bf16.gmra.mxu0 %v2761
        %v3189 = vpop.f32.mrf.mxu0
        %v3190 = vadd.f32 %v3101, %v3189
        %v3191 = vpop.f32.mrf.mxu0
        %v3192 = vadd.f32 %v3103, %v3191
        %3193 = vmatmul.bf16.gmra.mxu0 %v2765
        %v3194 = vpop.f32.mrf.mxu0
        %v3195 = vadd.f32 %v3106, %v3194
        %v3196 = vpop.f32.mrf.mxu0
        %v3197 = vadd.f32 %v3108, %v3196
        %3198 = vmatmul.bf16.gmra.mxu0 %v2769
        %v3199 = vpop.f32.mrf.mxu0
        %v3200 = vadd.f32 %v3111, %v3199
        %v3201 = vpop.f32.mrf.mxu0
        %v3202 = vadd.f32 %v3113, %v3201
        %3203 = vmatmul.bf16.gmra.mxu0 %v2773
        %v3204 = vpop.f32.mrf.mxu0
        %v3205 = vadd.f32 %v3116, %v3204
        %v3206 = vpop.f32.mrf.mxu0
        %v3207 = vadd.f32 %v3118, %v3206
        %3208 = vmatmul.bf16.gmra.mxu0 %v2777
        %v3209 = vpop.f32.mrf.mxu0
        %v3210 = vadd.f32 %v3121, %v3209
        %v3211 = vpop.f32.mrf.mxu0
        %v3212 = vadd.f32 %v3123, %v3211
        %3213 = vdwg.mxu0
        %3214 = vmatpush.bf16.msra.mxu0 %v2995
        %3215 = vmatpush.bf16.msra.mxu0 %v2994
        %3216 = vmatpush.bf16.msra.mxu0 %v2993
        %3217 = vmatpush.bf16.msra.mxu0 %v2992
        %3218 = vmatpush.bf16.msra.mxu0 %v2991
        %3219 = vmatpush.bf16.msra.mxu0 %v2990
        %3220 = vmatpush.bf16.msra.mxu0 %v2989
        %3221 = vmatpush.bf16.msra.mxu0 %v2988
        %3222 = vmatmul.bf16.gmra.mxu0 %v2718
        %v3223 = vpop.f32.mrf.mxu0
        %v3224 = vadd.f32 %v3135, %v3223
        %v3225 = vpop.f32.mrf.mxu0
        %v3226 = vadd.f32 %v3137, %v3225
        %3227 = vmatmul.bf16.gmra.mxu0 %v2722
        %v3228 = vpop.f32.mrf.mxu0
        %v3229 = vadd.f32 %v3140, %v3228
        %v3230 = vpop.f32.mrf.mxu0
        %v3231 = vadd.f32 %v3142, %v3230
        %3232 = vmatmul.bf16.gmra.mxu0 %v2726
        %v3233 = vpop.f32.mrf.mxu0
        %v3234 = vadd.f32 %v3145, %v3233
        %v3235 = vpop.f32.mrf.mxu0
        %v3236 = vadd.f32 %v3147, %v3235
        %3237 = vmatmul.bf16.gmra.mxu0 %v2730
        %v3238 = vpop.f32.mrf.mxu0
        %v3239 = vadd.f32 %v3150, %v3238
        %v3240 = vpop.f32.mrf.mxu0
        %v3241 = vadd.f32 %v3152, %v3240
        %3242 = vmatmul.bf16.gmra.mxu0 %v2734
        %v3243 = vpop.f32.mrf.mxu0
        %v3244 = vadd.f32 %v3155, %v3243
        %v3245 = vpop.f32.mrf.mxu0
        %v3246 = vadd.f32 %v3157, %v3245
        %3247 = vmatmul.bf16.gmra.mxu0 %v2738
        %v3248 = vpop.f32.mrf.mxu0
        %v3249 = vadd.f32 %v3160, %v3248
        %v3250 = vpop.f32.mrf.mxu0
        %v3251 = vadd.f32 %v3162, %v3250
        %3252 = vmatmul.bf16.gmra.mxu0 %v2742
        %v3253 = vpop.f32.mrf.mxu0
        %v3254 = vadd.f32 %v3165, %v3253
        %v3255 = vpop.f32.mrf.mxu0
        %v3256 = vadd.f32 %v3167, %v3255
        %3257 = vmatmul.bf16.gmra.mxu0 %v2746
        %v3258 = vpop.f32.mrf.mxu0
        %v3259 = vadd.f32 %v3170, %v3258
        %v3260 = vpop.f32.mrf.mxu0
        %v3261 = vadd.f32 %v3172, %v3260
        %3262 = vmatmul.bf16.gmra.mxu0 %v2750
        %v3263 = vpop.f32.mrf.mxu0
        %v3264 = vadd.f32 %v3175, %v3263
        %v3265 = vpop.f32.mrf.mxu0
        %v3266 = vadd.f32 %v3177, %v3265
        %3267 = vmatmul.bf16.gmra.mxu0 %v2754
        %v3268 = vpop.f32.mrf.mxu0
        %v3269 = vadd.f32 %v3180, %v3268
        %v3270 = vpop.f32.mrf.mxu0
        %v3271 = vadd.f32 %v3182, %v3270
        %3272 = vmatmul.bf16.gmra.mxu0 %v2758
        %v3273 = vpop.f32.mrf.mxu0
        %v3274 = vadd.f32 %v3185, %v3273
        %v3275 = vpop.f32.mrf.mxu0
        %v3276 = vadd.f32 %v3187, %v3275
        %3277 = vmatmul.bf16.gmra.mxu0 %v2762
        %v3278 = vpop.f32.mrf.mxu0
        %v3279 = vadd.f32 %v3190, %v3278
        %v3280 = vpop.f32.mrf.mxu0
        %v3281 = vadd.f32 %v3192, %v3280
        %3282 = vmatmul.bf16.gmra.mxu0 %v2766
        %v3283 = vpop.f32.mrf.mxu0
        %v3284 = vadd.f32 %v3195, %v3283
        %v3285 = vpop.f32.mrf.mxu0
        %v3286 = vadd.f32 %v3197, %v3285
        %3287 = vmatmul.bf16.gmra.mxu0 %v2770
        %v3288 = vpop.f32.mrf.mxu0
        %v3289 = vadd.f32 %v3200, %v3288
        %v3290 = vpop.f32.mrf.mxu0
        %v3291 = vadd.f32 %v3202, %v3290
        %3292 = vmatmul.bf16.gmra.mxu0 %v2774
        %v3293 = vpop.f32.mrf.mxu0
        %v3294 = vadd.f32 %v3205, %v3293
        %v3295 = vpop.f32.mrf.mxu0
        %v3296 = vadd.f32 %v3207, %v3295
        %3297 = vmatmul.bf16.gmra.mxu0 %v2778
        %v3298 = vpop.f32.mrf.mxu0
        %v3299 = vadd.f32 %v3210, %v3298
        %v3300 = vpop.f32.mrf.mxu0
        %v3301 = vadd.f32 %v3212, %v3300
        %3302 = vdwg.mxu0
        %3303 = vmatpush.bf16.msra.mxu0 %v3003
        %3304 = vmatpush.bf16.msra.mxu0 %v3002
        %3305 = vmatpush.bf16.msra.mxu0 %v3001
        %3306 = vmatpush.bf16.msra.mxu0 %v3000
        %3307 = vmatpush.bf16.msra.mxu0 %v2999
        %3308 = vmatpush.bf16.msra.mxu0 %v2998
        %3309 = vmatpush.bf16.msra.mxu0 %v2997
        %3310 = vmatpush.bf16.msra.mxu0 %v2996
        %3311 = vmatmul.bf16.gmra.mxu0 %v2719
        %v3312 = vpop.f32.mrf.mxu0
        %v3313 = vadd.f32 %v3224, %v3312
        %v3314 = vpop.f32.mrf.mxu0
        %v3315 = vadd.f32 %v3226, %v3314
        %3316 = vmatmul.bf16.gmra.mxu0 %v2723
        %v3317 = vpop.f32.mrf.mxu0
        %v3318 = vadd.f32 %v3229, %v3317
        %v3319 = vpop.f32.mrf.mxu0
        %v3320 = vadd.f32 %v3231, %v3319
        %3321 = vmatmul.bf16.gmra.mxu0 %v2727
        %v3322 = vpop.f32.mrf.mxu0
        %v3323 = vadd.f32 %v3234, %v3322
        %v3324 = vpop.f32.mrf.mxu0
        %v3325 = vadd.f32 %v3236, %v3324
        %3326 = vmatmul.bf16.gmra.mxu0 %v2731
        %v3327 = vpop.f32.mrf.mxu0
        %v3328 = vadd.f32 %v3239, %v3327
        %v3329 = vpop.f32.mrf.mxu0
        %v3330 = vadd.f32 %v3241, %v3329
        %3331 = vmatmul.bf16.gmra.mxu0 %v2735
        %v3332 = vpop.f32.mrf.mxu0
        %v3333 = vadd.f32 %v3244, %v3332
        %v3334 = vpop.f32.mrf.mxu0
        %v3335 = vadd.f32 %v3246, %v3334
        %3336 = vmatmul.bf16.gmra.mxu0 %v2739
        %v3337 = vpop.f32.mrf.mxu0
        %v3338 = vadd.f32 %v3249, %v3337
        %v3339 = vpop.f32.mrf.mxu0
        %v3340 = vadd.f32 %v3251, %v3339
        %3341 = vmatmul.bf16.gmra.mxu0 %v2743
        %v3342 = vpop.f32.mrf.mxu0
        %v3343 = vadd.f32 %v3254, %v3342
        %v3344 = vpop.f32.mrf.mxu0
        %v3345 = vadd.f32 %v3256, %v3344
        %3346 = vmatmul.bf16.gmra.mxu0 %v2747
        %v3347 = vpop.f32.mrf.mxu0
        %v3348 = vadd.f32 %v3259, %v3347
        %v3349 = vpop.f32.mrf.mxu0
        %v3350 = vadd.f32 %v3261, %v3349
        %3351 = vmatmul.bf16.gmra.mxu0 %v2751
        %v3352 = vpop.f32.mrf.mxu0
        %v3353 = vadd.f32 %v3264, %v3352
        %v3354 = vpop.f32.mrf.mxu0
        %v3355 = vadd.f32 %v3266, %v3354
        %3356 = vmatmul.bf16.gmra.mxu0 %v2755
        %v3357 = vpop.f32.mrf.mxu0
        %v3358 = vadd.f32 %v3269, %v3357
        %v3359 = vpop.f32.mrf.mxu0
        %v3360 = vadd.f32 %v3271, %v3359
        %3361 = vmatmul.bf16.gmra.mxu0 %v2759
        %v3362 = vpop.f32.mrf.mxu0
        %v3363 = vadd.f32 %v3274, %v3362
        %v3364 = vpop.f32.mrf.mxu0
        %v3365 = vadd.f32 %v3276, %v3364
        %3366 = vmatmul.bf16.gmra.mxu0 %v2763
        %v3367 = vpop.f32.mrf.mxu0
        %v3368 = vadd.f32 %v3279, %v3367
        %v3369 = vpop.f32.mrf.mxu0
        %v3370 = vadd.f32 %v3281, %v3369
        %3371 = vmatmul.bf16.gmra.mxu0 %v2767
        %v3372 = vpop.f32.mrf.mxu0
        %v3373 = vadd.f32 %v3284, %v3372
        %v3374 = vpop.f32.mrf.mxu0
        %v3375 = vadd.f32 %v3286, %v3374
        %3376 = vmatmul.bf16.gmra.mxu0 %v2771
        %v3377 = vpop.f32.mrf.mxu0
        %v3378 = vadd.f32 %v3289, %v3377
        %v3379 = vpop.f32.mrf.mxu0
        %v3380 = vadd.f32 %v3291, %v3379
        %3381 = vmatmul.bf16.gmra.mxu0 %v2775
        %v3382 = vpop.f32.mrf.mxu0
        %v3383 = vadd.f32 %v3294, %v3382
        %v3384 = vpop.f32.mrf.mxu0
        %v3385 = vadd.f32 %v3296, %v3384
        %3386 = vmatmul.bf16.gmra.mxu0 %v2779
        %v3387 = vpop.f32.mrf.mxu0
        %v3388 = vadd.f32 %v3299, %v3387
        %v3389 = vpop.f32.mrf.mxu0
        %v3390 = vadd.f32 %v3301, %v3389
        %3391 = vdwg.mxu0
        %v3392 = vadd.f32 %v1270, %v3313
        %v3393 = vadd.f32 %v1271, %v3315
        %v3394 = vadd.f32 %v1272, %v3318
        %v3395 = vadd.f32 %v1273, %v3320
        %v3396 = vadd.f32 %v1274, %v3323
        %v3397 = vadd.f32 %v1275, %v3325
        %v3398 = vadd.f32 %v1276, %v3328
        %v3399 = vadd.f32 %v1277, %v3330
        %v3400 = vadd.f32 %v1278, %v3333
        %v3401 = vadd.f32 %v1279, %v3335
        %v3402 = vadd.f32 %v1280, %v3338
        %v3403 = vadd.f32 %v1281, %v3340
        %v3404 = vadd.f32 %v1282, %v3343
        %v3405 = vadd.f32 %v1283, %v3345
        %v3406 = vadd.f32 %v1284, %v3348
        %v3407 = vadd.f32 %v1285, %v3350
        %v3408 = vadd.f32 %v1286, %v3353
        %v3409 = vadd.f32 %v1287, %v3355
        %v3410 = vadd.f32 %v1288, %v3358
        %v3411 = vadd.f32 %v1289, %v3360
        %v3412 = vadd.f32 %v1290, %v3363
        %v3413 = vadd.f32 %v1291, %v3365
        %v3414 = vadd.f32 %v1292, %v3368
        %v3415 = vadd.f32 %v1293, %v3370
        %v3416 = vadd.f32 %v1294, %v3373
        %v3417 = vadd.f32 %v1295, %v3375
        %v3418 = vadd.f32 %v1296, %v3378
        %v3419 = vadd.f32 %v1297, %v3380
        %v3420 = vadd.f32 %v1298, %v3383
        %v3421 = vadd.f32 %v1299, %v3385
        %v3422 = vadd.f32 %v1300, %v3388
        %v3423 = vadd.f32 %v1301, %v3390
        %v3424 = vld [vmem:[%s9] sm:$0x1]
        %v3426 = vperm.slane %v3424, 0
        %v3428 = vadd.f32 %v3392, %v3426
        %v3429 = vadd.f32 %v3393, %v3426
        %v3430 = vadd.f32 %v3394, %v3426
        %v3431 = vadd.f32 %v3395, %v3426
        %v3432 = vadd.f32 %v3396, %v3426
        %v3433 = vadd.f32 %v3397, %v3426
        %v3434 = vadd.f32 %v3398, %v3426
        %v3435 = vadd.f32 %v3399, %v3426
        %v3436 = vadd.f32 %v3400, %v3426
        %v3437 = vadd.f32 %v3401, %v3426
        %v3438 = vadd.f32 %v3402, %v3426
        %v3439 = vadd.f32 %v3403, %v3426
        %v3440 = vadd.f32 %v3404, %v3426
        %v3441 = vadd.f32 %v3405, %v3426
        %v3442 = vadd.f32 %v3406, %v3426
        %v3443 = vadd.f32 %v3407, %v3426
        %v3444 = vadd.f32 %v3408, %v3426
        %v3445 = vadd.f32 %v3409, %v3426
        %v3446 = vadd.f32 %v3410, %v3426
        %v3447 = vadd.f32 %v3411, %v3426
        %v3448 = vadd.f32 %v3412, %v3426
        %v3449 = vadd.f32 %v3413, %v3426
        %v3450 = vadd.f32 %v3414, %v3426
        %v3451 = vadd.f32 %v3415, %v3426
        %v3452 = vadd.f32 %v3416, %v3426
        %v3453 = vadd.f32 %v3417, %v3426
        %v3454 = vadd.f32 %v3418, %v3426
        %v3455 = vadd.f32 %v3419, %v3426
        %v3456 = vadd.f32 %v3420, %v3426
        %v3457 = vadd.f32 %v3421, %v3426
        %v3458 = vadd.f32 %v3422, %v3426
        %v3459 = vadd.f32 %v3423, %v3426
        %3460 = vst [vmem:[%s483] sm:$0xff] %v3428
        %3461 = vst [vmem:[%s483 + $0x8] sm:$0xff] %v3429
        %3462 = vst [vmem:[%s483 + $0x10] sm:$0xff] %v3430
        %3463 = vst [vmem:[%s483 + $0x18] sm:$0xff] %v3431
        %3464 = vst [vmem:[%s483 + $0x20] sm:$0xff] %v3432
        %3465 = vst [vmem:[%s483 + $0x28] sm:$0xff] %v3433
        %3466 = vst [vmem:[%s483 + $0x30] sm:$0xff] %v3434
        %3467 = vst [vmem:[%s483 + $0x38] sm:$0xff] %v3435
        %3468 = vst [vmem:[%s483 + $0x40] sm:$0xff] %v3436
        %3469 = vst [vmem:[%s483 + $0x48] sm:$0xff] %v3437
        %3470 = vst [vmem:[%s483 + $0x50] sm:$0xff] %v3438
        %3471 = vst [vmem:[%s483 + $0x58] sm:$0xff] %v3439
        %3472 = vst [vmem:[%s483 + $0x60] sm:$0xff] %v3440
        %3473 = vst [vmem:[%s483 + $0x68] sm:$0xff] %v3441
        %3474 = vst [vmem:[%s483 + $0x70] sm:$0xff] %v3442
        %3475 = vst [vmem:[%s483 + $0x78] sm:$0xff] %v3443
        %3476 = vst [vmem:[%s483 + $0x80] sm:$0xff] %v3444
        %3477 = vst [vmem:[%s483 + $0x88] sm:$0xff] %v3445
        %3478 = vst [vmem:[%s483 + $0x90] sm:$0xff] %v3446
        %3479 = vst [vmem:[%s483 + $0x98] sm:$0xff] %v3447
        %3480 = vst [vmem:[%s483 + $0xa0] sm:$0xff] %v3448
        %3481 = vst [vmem:[%s483 + $0xa8] sm:$0xff] %v3449
        %3482 = vst [vmem:[%s483 + $0xb0] sm:$0xff] %v3450
        %3483 = vst [vmem:[%s483 + $0xb8] sm:$0xff] %v3451
        %3484 = vst [vmem:[%s483 + $0xc0] sm:$0xff] %v3452
        %3485 = vst [vmem:[%s483 + $0xc8] sm:$0xff] %v3453
        %3486 = vst [vmem:[%s483 + $0xd0] sm:$0xff] %v3454
        %3487 = vst [vmem:[%s483 + $0xd8] sm:$0xff] %v3455
        %3488 = vst [vmem:[%s483 + $0xe0] sm:$0xff] %v3456
        %3489 = vst [vmem:[%s483 + $0xe8] sm:$0xff] %v3457
        %3490 = vst [vmem:[%s483 + $0xf0] sm:$0xff] %v3458
        %3491 = vst [vmem:[%s483 + $0xf8] sm:$0xff] %v3459
        %s3492 = sand.u32 %s260, 1
        %s3493 = scalar_lea.sflag [#allocation4], %s3492
        %s3494 = sand.u32 %s260, 1
        %s3495 = smul.addr %s3494, 256
        %s3496 = scalar_lea.vmem [#allocation13], %s3495
        // Predicated region
        $region85: #{tpu_custom_call.1} parent=59 // pred_check
          %p3497 = pneg %p270
        $region86: #{tpu_custom_call.1} parent=59 // pred_check_branch
          %3499 = sbr.rel (%p3497) target = $region88
        $region87: #{tpu_custom_call.1} parent=59 // pred_region
          %s3500 = smul.u32 32, %s32
          %3502 = vsyncadd %s3493, 0
          %s3503 = smul.addr %s3500, 8
          %s3504 = scalar_lea.hbm %s10, %s3503
          %s3505 = sshll.u32 %s3496, 4
          %s3506 = int_to_ptr.vmem [resolvable:$true] %s3505
          %s3507 = sshll.u32 %s3504, 4
          %s3508 = int_to_ptr.hbm [resolvable:$true] %s3507
          %3513 = dma.vmem_to_hbm [thread:$0]  %s3506, 4096, %s3508, %s3493, 128, 128, 8
        $region88: #{tpu_custom_call.1} parent=59 // pred_fallthru
          _
      $region60: #{tpu_custom_call.1} parent=5 // pred_fallthru
        _
      %p3514 = scmp.le.s32.totalorder 2, %s27
      // Predicated region
      $region89: #{tpu_custom_call.1} parent=5 // pred_check
        %p3515 = pneg %p3514
      $region90: #{tpu_custom_call.1} parent=5 // pred_check_branch
        %3517 = sbr.rel (%p3515) target = $region92
      $region91: #{tpu_custom_call.1} parent=5 // pred_region
        %s3518 = ssub.s32 %s27, 2
        // Predicated region
        $region93: #{tpu_custom_call.1} parent=91 // pred_check
          %p3519 = pneg %p276
        $region94: #{tpu_custom_call.1} parent=91 // pred_check_branch
          %3521 = sbr.rel (%p3519) target = $region96
        $region95: #{tpu_custom_call.1} parent=91 // pred_region
          %s3522 = sand.u32 %s261, 1
          %s3523 = scalar_lea.sflag [#allocation4], %s3522
          %s3524 = sand.u32 %s261, 1
          %s3525 = smul.addr %s3524, 256
          %s3526 = scalar_lea.vmem [#allocation13], %s3525
          %3528 = dma.done %s3523, 4096
        $region96: #{tpu_custom_call.1} parent=91 // pred_fallthru
          _
      $region92: #{tpu_custom_call.1} parent=5 // pred_fallthru
        _
    $region6: #{tpu_custom_call.1} parent=1 // loop_footer
      %s31 = sadd.s32 1, %s27
    $region7: #{tpu_custom_call.1} parent=1 // loop_footer_branch
      %26 = sbr.rel target = $region3
    $region8: #{tpu_custom_call.1} parent=1 // loop_exit
      _
    %3529 = vsyncpa [#allocation3], 1
    %s3530 = scalar_lea.sflag [#allocation3], 1
    %3531 = vsyncpa %s3530, 1
    %3532 = vsyncpa [#allocation6], 1
    %s3533 = scalar_lea.sflag [#allocation6], 1
    %3534 = vsyncpa %s3533, 1
    %3535 = vsyncpa [#allocation9], 1
    %3536 = vsyncpa [#allocation12], 1
    %3537 = vsyncpa [#allocation4], 1
    %s3538 = scalar_lea.sflag [#allocation4], 1
    %3539 = vsyncpa %s3538, 1

</llo_original>
